<compile_context>
chip_gen: v7x
topology: tpu7x:2x2x1
jax: 0.10.0
libtpu: 0.0.40
codegen_flags: <defaults>
</compile_context>

<pallas_src>
import numpy as np
import jax
import jax.numpy as jnp
from jax.experimental import pallas as pl
from jax.experimental.pallas import tpu as pltpu


# ------------------------------ helpers (host) ------------------------------

def _round_up(v, m):
    return ((v + m - 1) // m) * m


def bilinear_matrix(out_size, in_size):
    """(out, in) interpolation matrix for bilinear upsample, align_corners=True
    (matches nn.UpsamplingBilinear2d)."""
    A = np.zeros((out_size, in_size), np.float32)
    if out_size == 1 or in_size == 1:
        A[:, 0] = 1.0
        return A
    scale = (in_size - 1) / (out_size - 1)
    for i in range(out_size):
        src = i * scale
        i0 = min(int(np.floor(src)), in_size - 1)
        frac = src - i0
        i1 = min(i0 + 1, in_size - 1)
        A[i, i0] += 1.0 - frac
        A[i, i1] += frac
    return A


def _build_upsample_matrix(Ho, Wo, Hu, Wu, Wd, Hp, Wp, Q_pad):
    """Constant matrix U (Ho*Wd, Q_pad) folding:
         junk-column removal of the wide down-conv layout (width Wd = Wo+1)
       + bilinear x2 upsample (align_corners=True)
       + zero padding (2) for the following 5x5 conv,
       producing the padded up-conv input flattened as (Hp * Wp)."""
    Ah = bilinear_matrix(Hu, Ho)                     # (Hu, Ho)
    Aw = bilinear_matrix(Wu, Wo)                     # (Wu, Wo)
    # core[ph, pw, qh, qw] = Ah[qh, ph] * Aw[qw, pw]
    core = np.einsum('qp,rw->pwqr', Ah, Aw).astype(np.float32)
    U4 = np.zeros((Ho, Wd, Hp, Wp), np.float32)
    U4[:, :Wo, 2:2 + Hu, 2:2 + Wu] = core            # junk col (pw=Wo) stays zero
    U = np.zeros((Ho * Wd, Q_pad), np.float32)
    U[:, :Hp * Wp] = U4.reshape(Ho * Wd, Hp * Wp)
    return U


# ------------------------------ Pallas kernels ------------------------------

def make_fused_kernel(Ci, Co, Ld, Lu, Wd, Wp):
    """Fused per-batch: LeakyReLU -> conv4x4/s2 -> ReLU -> bilinear x2 (+pad)
    -> conv5x5 -> per-batch BN partial sums.  Everything stays in VMEM."""

    def kernel(xph_ref, w1g_ref, umat_ref, w2t_ref, vmask_ref,
               y2_ref, bsum_ref, bsq_ref):
        # LeakyReLU(0.2) on the phase-split, padded activation (pre-expansion).
        a = xph_ref[0]                                       # (4*Cin, Pd_pad)
        a = jnp.where(a >= 0.0, a, 0.2 * a)

        # Down conv k=4 s=2 p=1: 4 grouped tap matmuls (phases packed on the
        # contraction axis), unit-stride lane slices, lane-dense (Ci, Ld) acc.
        acc1 = jnp.zeros((Ci, Ld), jnp.float32)
        for oi in range(2):
            for oj in range(2):
                off = oi * Wd + oj
                acc1 = acc1 + jnp.dot(w1g_ref[oi * 2 + oj],
                                      a[:, off:off + Ld],
                                      preferred_element_type=jnp.float32)

        # ReLU -> bilinear x2 upsample (align_corners=True) -> zero pad for the
        # 5x5 conv, folded into one constant GEMM.
        u = jnp.dot(jnp.maximum(acc1, 0.0), umat_ref[...],
                    preferred_element_type=jnp.float32)      # (Ci, Q_pad)

        # Up conv k=5 s=1 p=2: 25 tap matmuls over unit-stride lane slices.
        acc2 = jnp.zeros((Co, Lu), jnp.float32)
        for ki in range(5):
            for kj in range(5):
                off = ki * Wp + kj
                acc2 = acc2 + jnp.dot(w2t_ref[ki * 5 + kj],
                                      u[:, off:off + Lu],
                                      preferred_element_type=jnp.float32)

        y2_ref[0] = acc2                                     # lane-dense store

        # BatchNorm partial sums for this batch element (junk lanes masked).
        yv = acc2 * vmask_ref[...]                           # (Co, Lu)
        bsum_ref[0] = jnp.sum(yv, axis=1, keepdims=True)     # (Co, 1)
        bsq_ref[0] = jnp.sum(yv * yv, axis=1, keepdims=True)

    return kernel


def make_bn_kernel(count):
    """Second (tiny) pass: reduce per-batch partials -> batch stats -> normalize."""
    inv_count = 1.0 / float(count)

    def kernel(y2_ref, bsum_ref, bsq_ref, gamma_ref, beta_ref, o_ref):
        s = jnp.sum(bsum_ref[...], axis=0)                   # (Co, 1)
        q = jnp.sum(bsq_ref[...], axis=0)                    # (Co, 1)
        mean = s * inv_count
        var = q * inv_count - mean * mean                    # biased (training-mode)
        inv = jax.lax.rsqrt(var + 1e-5)
        y = (y2_ref[0] - mean) * inv
        o_ref[0] = y * gamma_ref[...] + beta_ref[...]

    return kernel


# ------------------------------ forward wrapper ------------------------------

def unet_innermost_forward(x, params):
    w1 = params["w_down"]       # (inner_nc, input_nc, 4, 4)
    w2 = params["w_up"]         # (outer_nc, inner_nc, 5, 5)
    gamma = params["bn_gamma"]  # (outer_nc,)
    beta = params["bn_beta"]    # (outer_nc,)

    N, Cin, H, W = x.shape
    Ci = w1.shape[0]
    Co = w2.shape[0]
    Ho, Wo = H // 2, W // 2               # down-conv output spatial
    Hu, Wu = H, W                         # after x2 bilinear upsample
    Wd = Wo + 1                           # wide width of the down-conv layout
    Ld = Ho * Wd                          # down-conv tap slice / acc length
    Hp, Wp = Hu + 4, Wu + 4               # padded 5x5 conv input spatial
    Lu = Hu * Wp                          # up-conv tap slice / output length
    Pd = (Ho + 1) * (Wo + 1)              # phase-plane flat size
    Pd_pad = _round_up(max(Pd, (Wd + 1) + Ld), 128)
    Q_pad = _round_up(max(Hp * Wp, 4 * Wp + 4 + Lu), 128)

    # ---- layout plumbing in XLA (pure permutations, zero expansion) ----
    xp = jnp.pad(x, ((0, 0), (0, 0), (1, 1), (1, 1)))
    phases = [xp[:, :, pi::2, pj::2] for pi in (0, 1) for pj in (0, 1)]
    xph = jnp.stack(phases, axis=1).reshape(N, 4 * Cin, Pd)
    xph = jnp.pad(xph, ((0, 0), (0, 0), (0, Pd_pad - Pd)))      # (N, 4*Cin, Pd_pad)

    # Down-conv weights grouped by phase offset: (4, Ci, 4*Cin),
    # row order of the contraction axis = (phase=pi*2+pj, ci).
    w1r = w1.reshape(Ci, Cin, 2, 2, 2, 2)                       # (co,ci,oi,pi,oj,pj)
    w1g = jnp.transpose(w1r, (2, 4, 0, 3, 5, 1)).reshape(4, Ci, 4 * Cin)

    # Up-conv weights per tap: (25, Co, Ci) with tap index ki*5+kj.
    w2t = jnp.transpose(w2, (2, 3, 0, 1)).reshape(25, Co, Ci)

    # Constant upsample(+pad) matrix and valid-lane mask (trace-time constants).
    u_mat = jnp.asarray(_build_upsample_matrix(Ho, Wo, Hu, Wu, Wd, Hp, Wp, Q_pad))
    vm = np.zeros((Hu, Wp), np.float32)
    vm[:, :Wu] = 1.0
    vmask = jnp.asarray(vm.reshape(1, Lu))

    cparams = pltpu.CompilerParams(
        dimension_semantics=("parallel",),
        vmem_limit_bytes=32 * 1024 * 1024,
    )

    # ---- pass 1: fused down->up path + BN partial sums, one grid step / image ----
    y2_pre, bsum, bsq = pl.pallas_call(
        make_fused_kernel(Ci, Co, Ld, Lu, Wd, Wp),
        out_shape=(
            jax.ShapeDtypeStruct((N, Co, Lu), jnp.float32),
            jax.ShapeDtypeStruct((N, Co, 1), jnp.float32),
            jax.ShapeDtypeStruct((N, Co, 1), jnp.float32),
        ),
        grid=(N,),
        in_specs=[
            pl.BlockSpec((1, 4 * Cin, Pd_pad), lambda b: (b, 0, 0)),
            pl.BlockSpec((4, Ci, 4 * Cin), lambda b: (0, 0, 0)),
            pl.BlockSpec((Ld, Q_pad), lambda b: (0, 0)),
            pl.BlockSpec((25, Co, Ci), lambda b: (0, 0, 0)),
            pl.BlockSpec((1, Lu), lambda b: (0, 0)),
        ],
        out_specs=(
            pl.BlockSpec((1, Co, Lu), lambda b: (b, 0, 0)),
            pl.BlockSpec((1, Co, 1), lambda b: (b, 0, 0)),
            pl.BlockSpec((1, Co, 1), lambda b: (b, 0, 0)),
        ),
        compiler_params=cparams,
    )(xph, w1g, u_mat, w2t, vmask)

    # ---- pass 2: BatchNorm finalize (reduce partials, normalize), per image ----
    gamma2 = gamma.reshape(Co, 1).astype(jnp.float32)
    beta2 = beta.reshape(Co, 1).astype(jnp.float32)
    y2_bn = pl.pallas_call(
        make_bn_kernel(N * Hu * Wu),
        out_shape=jax.ShapeDtypeStruct((N, Co, Lu), jnp.float32),
        grid=(N,),
        in_specs=[
            pl.BlockSpec((1, Co, Lu), lambda b: (b, 0, 0)),
            pl.BlockSpec((N, Co, 1), lambda b: (0, 0, 0)),
            pl.BlockSpec((N, Co, 1), lambda b: (0, 0, 0)),
            pl.BlockSpec((Co, 1), lambda b: (0, 0)),
            pl.BlockSpec((Co, 1), lambda b: (0, 0)),
        ],
        out_specs=pl.BlockSpec((1, Co, Lu), lambda b: (b, 0, 0)),
        compiler_params=cparams,
    )(y2_pre, bsum, bsq, gamma2, beta2)

    # Strip the junk lanes of the wide (Hu, Wp) layout and concat the skip path.
    y2 = y2_bn.reshape(N, Co, Hu, Wp)[:, :, :, :Wu]
    return jnp.concatenate([x, y2], axis=1)


# TODO(synk): only the innermost (batch-norm, bilinear) branch is implemented;
# the outermost/middle variants, ConvTranspose2d / InstanceNorm branches and the
# recursive submodule wiring are module composition, not kernel compute.


# ------------------------------ pure-JAX reference ------------------------------

def reference_forward(x, params):
    hp = jax.lax.Precision.HIGHEST
    w1 = params["w_down"]
    w2 = params["w_up"]
    a = jnp.where(x >= 0.0, x, 0.2 * x)
    y1 = jax.lax.conv_general_dilated(
        a, w1, (2, 2), ((1, 1), (1, 1)),
        dimension_numbers=("NCHW", "OIHW", "NCHW"), precision=hp)
    y1 = jnp.maximum(y1, 0.0)
    Ho, Wo = y1.shape[2], y1.shape[3]
    Ah = jnp.asarray(bilinear_matrix(2 * Ho, Ho))
    Aw = jnp.asarray(bilinear_matrix(2 * Wo, Wo))
    up = jnp.einsum('hp,ncpq,wq->nchw', Ah, y1, Aw, precision=hp)
    y2 = jax.lax.conv_general_dilated(
        up, w2, (1, 1), ((2, 2), (2, 2)),
        dimension_numbers=("NCHW", "OIHW", "NCHW"), precision=hp)
    mean = jnp.mean(y2, axis=(0, 2, 3), keepdims=True)
    var = jnp.mean((y2 - mean) ** 2, axis=(0, 2, 3), keepdims=True)
    y2 = (y2 - mean) * jax.lax.rsqrt(var + 1e-5)
    y2 = y2 * params["bn_gamma"].reshape(1, -1, 1, 1) + params["bn_beta"].reshape(1, -1, 1, 1)
    return jnp.concatenate([x, y2], axis=1)


# ------------------------------------ main ------------------------------------

if __name__ == "__main__":
    N, H, W = 2, 16, 16
    outer_nc, inner_nc = 4, 8
    input_nc = outer_nc            # PyTorch default: input_nc = outer_nc when None

    key = jax.random.PRNGKey(0)
    kx, k1, k2 = jax.random.split(key, 3)
    x = jax.random.normal(kx, (N, input_nc, H, W), jnp.float32)

    params = {
        "w_down": jax.random.normal(k1, (inner_nc, input_nc, 4, 4), jnp.float32) * 0.05,
        "w_up": jax.random.normal(k2, (outer_nc, inner_nc, 5, 5), jnp.float32) * 0.05,
        "bn_gamma": jnp.ones((outer_nc,), jnp.float32),   # PyTorch BN default init
        "bn_beta": jnp.zeros((outer_nc,), jnp.float32),
    }

    out = jax.jit(unet_innermost_forward)(x, params)
    out = jax.block_until_ready(out)

    assert out.shape == (N, input_nc + outer_nc, H, W), out.shape
    assert out.dtype == jnp.float32
    assert bool(jnp.all(jnp.isfinite(out)))
    # skip branch of the concat must be the identity of x
    assert bool(jnp.allclose(out[:, :input_nc], x))

    # numerical check against a pure-JAX (XLA) reference of the same module
    ref = reference_forward(x, params)
    err = float(jnp.max(jnp.abs(out - ref)))
    assert err < 2e-3, f"max abs error vs reference = {err}"

    print("KERNEL_OK")
</pallas_src>

<mosaic_0001>
module attributes {stable_mosaic.version = 11 : i64} {
  func.func @kernel(%arg0: i32, %arg1: memref<1x4x320xf32, #tpu.memory_space<vmem>>, %arg2: memref<2x4x1xf32, #tpu.memory_space<vmem>>, %arg3: memref<2x4x1xf32, #tpu.memory_space<vmem>>, %arg4: memref<4x1xf32, #tpu.memory_space<vmem>>, %arg5: memref<4x1xf32, #tpu.memory_space<vmem>>, %arg6: memref<1x4x320xf32, #tpu.memory_space<vmem>>) attributes {dimension_semantics = [#tpu.dimension_semantics<parallel>], iteration_bounds = array<i64: 2>, scalar_prefetch = 0 : i64, scratch_operands = 0 : i64, tpu.core_type = #tpu.core_type<tc>, window_params = [{transform_indices = @transform_0, window_bounds = array<i64: 1, 4, 320>}, {pipeline_mode = #tpu.pipeline_mode<synchronous>, transform_indices = @transform_1, window_bounds = array<i64: 2, 4, 1>}, {pipeline_mode = #tpu.pipeline_mode<synchronous>, transform_indices = @transform_2, window_bounds = array<i64: 2, 4, 1>}, {pipeline_mode = #tpu.pipeline_mode<synchronous>, transform_indices = @transform_3, window_bounds = array<i64: 4, 1>}, {pipeline_mode = #tpu.pipeline_mode<synchronous>, transform_indices = @transform_4, window_bounds = array<i64: 4, 1>}, {transform_indices = @transform_5, window_bounds = array<i64: 1, 4, 320>}]} {
    %c0 = arith.constant 0 : index
    %c0_0 = arith.constant 0 : index
    %c0_1 = arith.constant 0 : index
    %0 = vector.load %arg2[%c0, %c0_0, %c0_1] : memref<2x4x1xf32, #tpu.memory_space<vmem>>, vector<2x4x1xf32>
    %cst = arith.constant dense<0.000000e+00> : vector<4x1xf32>
    %1 = vector.multi_reduction <add>, %0, %cst [0] : vector<2x4x1xf32> to vector<4x1xf32>
    %c0_2 = arith.constant 0 : index
    %c0_3 = arith.constant 0 : index
    %c0_4 = arith.constant 0 : index
    %2 = vector.load %arg3[%c0_2, %c0_3, %c0_4] : memref<2x4x1xf32, #tpu.memory_space<vmem>>, vector<2x4x1xf32>
    %cst_5 = arith.constant dense<0.000000e+00> : vector<4x1xf32>
    %3 = vector.multi_reduction <add>, %2, %cst_5 [0] : vector<2x4x1xf32> to vector<4x1xf32>
    %cst_6 = arith.constant 0.001953125 : f32
    %4 = vector.broadcast %cst_6 : f32 to vector<4x1xf32>
    %5 = arith.mulf %1, %4 : vector<4x1xf32>
    %cst_7 = arith.constant 0.001953125 : f32
    %6 = vector.broadcast %cst_7 : f32 to vector<4x1xf32>
    %7 = arith.mulf %3, %6 : vector<4x1xf32>
    %8 = arith.mulf %5, %5 : vector<4x1xf32>
    %9 = arith.subf %7, %8 : vector<4x1xf32>
    %cst_8 = arith.constant 9.99999974E-6 : f32
    %10 = vector.broadcast %cst_8 : f32 to vector<4x1xf32>
    %11 = arith.addf %9, %10 : vector<4x1xf32>
    %12 = math.rsqrt %11 : vector<4x1xf32>
    %c0_9 = arith.constant 0 : index
    %c0_10 = arith.constant 0 : index
    %c0_11 = arith.constant 0 : index
    %13 = vector.load %arg1[%c0_9, %c0_10, %c0_11] : memref<1x4x320xf32, #tpu.memory_space<vmem>>, vector<1x4x320xf32>
    %14 = vector.shape_cast %13 : vector<1x4x320xf32> to vector<4x320xf32>
    %15 = vector.broadcast %5 : vector<4x1xf32> to vector<4x320xf32>
    %16 = arith.subf %14, %15 : vector<4x320xf32>
    %17 = vector.broadcast %12 : vector<4x1xf32> to vector<4x320xf32>
    %18 = arith.mulf %16, %17 : vector<4x320xf32>
    %c0_12 = arith.constant 0 : index
    %c0_13 = arith.constant 0 : index
    %19 = vector.load %arg4[%c0_12, %c0_13] : memref<4x1xf32, #tpu.memory_space<vmem>>, vector<4x1xf32>
    %20 = vector.broadcast %19 : vector<4x1xf32> to vector<4x320xf32>
    %21 = arith.mulf %18, %20 : vector<4x320xf32>
    %c0_14 = arith.constant 0 : index
    %c0_15 = arith.constant 0 : index
    %22 = vector.load %arg5[%c0_14, %c0_15] : memref<4x1xf32, #tpu.memory_space<vmem>>, vector<4x1xf32>
    %23 = vector.broadcast %22 : vector<4x1xf32> to vector<4x320xf32>
    %24 = arith.addf %21, %23 : vector<4x320xf32>
    %c0_16 = arith.constant 0 : index
    %c0_17 = arith.constant 0 : index
    %c0_18 = arith.constant 0 : index
    %25 = vector.load %arg6[%c0_16, %c0_17, %c0_18] : memref<1x4x320xf32, #tpu.memory_space<vmem>>, vector<1x4x320xf32>
    %26 = vector.shape_cast %25 : vector<1x4x320xf32> to vector<4x320xf32>
    %27 = vector.shape_cast %24 : vector<4x320xf32> to vector<1x4x320xf32>
    tpu.vector_store %arg6[%c0_16, %c0_17, %c0_18], %27 {strides = array<i32>} : memref<1x4x320xf32, #tpu.memory_space<vmem>>, vector<1x4x320xf32>,
    return
  }
  func.func @transform_0(%arg0: i32) -> (i32, i32, i32) {
    %c0_i32 = arith.constant 0 : i32
    %c0_i32_0 = arith.constant 0 : i32
    %c0_i32_1 = arith.constant 0 : i32
    return %arg0, %c0_i32, %c0_i32_0 : i32, i32, i32
  }
  func.func @transform_1(%arg0: i32) -> (i32, i32, i32) {
    %c0_i32 = arith.constant 0 : i32
    %c0_i32_0 = arith.constant 0 : i32
    %c0_i32_1 = arith.constant 0 : i32
    %c0_i32_2 = arith.constant 0 : i32
    return %c0_i32, %c0_i32_0, %c0_i32_1 : i32, i32, i32
  }
  func.func @transform_2(%arg0: i32) -> (i32, i32, i32) {
    %c0_i32 = arith.constant 0 : i32
    %c0_i32_0 = arith.constant 0 : i32
    %c0_i32_1 = arith.constant 0 : i32
    %c0_i32_2 = arith.constant 0 : i32
    return %c0_i32, %c0_i32_0, %c0_i32_1 : i32, i32, i32
  }
  func.func @transform_3(%arg0: i32) -> (i32, i32) {
    %c0_i32 = arith.constant 0 : i32
    %c0_i32_0 = arith.constant 0 : i32
    %c0_i32_1 = arith.constant 0 : i32
    return %c0_i32, %c0_i32_0 : i32, i32
  }
  func.func @transform_4(%arg0: i32) -> (i32, i32) {
    %c0_i32 = arith.constant 0 : i32
    %c0_i32_0 = arith.constant 0 : i32
    %c0_i32_1 = arith.constant 0 : i32
    return %c0_i32, %c0_i32_0 : i32, i32
  }
  func.func @transform_5(%arg0: i32) -> (i32, i32, i32) {
    %c0_i32 = arith.constant 0 : i32
    %c0_i32_0 = arith.constant 0 : i32
    %c0_i32_1 = arith.constant 0 : i32
    return %arg0, %c0_i32, %c0_i32_0 : i32, i32, i32
  }
}

module attributes {stable_mosaic.version = 11 : i64} {
  func.func @kernel(%arg0: i32, %arg1: memref<1x16x128xf32, #tpu.memory_space<vmem>>, %arg2: memref<4x8x16xf32, #tpu.memory_space<vmem>>, %arg3: memref<72x512xf32, #tpu.memory_space<vmem>>, %arg4: memref<25x4x8xf32, #tpu.memory_space<vmem>>, %arg5: memref<1x320xf32, #tpu.memory_space<vmem>>, %arg6: memref<1x4x320xf32, #tpu.memory_space<vmem>>, %arg7: memref<1x4x1xf32, #tpu.memory_space<vmem>>, %arg8: memref<1x4x1xf32, #tpu.memory_space<vmem>>) attributes {dimension_semantics = [#tpu.dimension_semantics<parallel>], iteration_bounds = array<i64: 2>, scalar_prefetch = 0 : i64, scratch_operands = 0 : i64, tpu.core_type = #tpu.core_type<tc>, window_params = [{transform_indices = @transform_0, window_bounds = array<i64: 1, 16, 128>}, {pipeline_mode = #tpu.pipeline_mode<synchronous>, transform_indices = @transform_1, window_bounds = array<i64: 4, 8, 16>}, {pipeline_mode = #tpu.pipeline_mode<synchronous>, transform_indices = @transform_2, window_bounds = array<i64: 72, 512>}, {pipeline_mode = #tpu.pipeline_mode<synchronous>, transform_indices = @transform_3, window_bounds = array<i64: 25, 4, 8>}, {pipeline_mode = #tpu.pipeline_mode<synchronous>, transform_indices = @transform_4, window_bounds = array<i64: 1, 320>}, {transform_indices = @transform_5, window_bounds = array<i64: 1, 4, 320>}, {transform_indices = @transform_6, window_bounds = array<i64: 1, 4, 1>}, {transform_indices = @transform_7, window_bounds = array<i64: 1, 4, 1>}]} {
    %c0 = arith.constant 0 : index
    %c0_0 = arith.constant 0 : index
    %c0_1 = arith.constant 0 : index
    %0 = vector.load %arg1[%c0, %c0_0, %c0_1] : memref<1x16x128xf32, #tpu.memory_space<vmem>>, vector<1x16x128xf32>
    %1 = vector.shape_cast %0 : vector<1x16x128xf32> to vector<16x128xf32>
    %cst = arith.constant 0.000000e+00 : f32
    %2 = vector.broadcast %cst : f32 to vector<16x128xf32>
    %3 = arith.cmpf oge, %1, %2 : vector<16x128xf32>
    %cst_2 = arith.constant 2.000000e-01 : f32
    %4 = vector.broadcast %cst_2 : f32 to vector<16x128xf32>
    %5 = arith.mulf %4, %1 : vector<16x128xf32>
    %6 = arith.select %3, %1, %5 : vector<16x128xi1>, vector<16x128xf32>
    %cst_3 = arith.constant 0.000000e+00 : f32
    %7 = vector.broadcast %cst_3 : f32 to vector<8x72xf32>
    %c0_4 = arith.constant 0 : index
    %c0_5 = arith.constant 0 : index
    %c0_6 = arith.constant 0 : index
    %8 = vector.load %arg2[%c0_4, %c0_5, %c0_6] : memref<4x8x16xf32, #tpu.memory_space<vmem>>, vector<1x8x16xf32>
    %9 = vector.shape_cast %8 : vector<1x8x16xf32> to vector<8x16xf32>
    %10 = vector.extract_strided_slice %6 {offsets = [0, 0], sizes = [16, 72], strides = [1, 1]} : vector<16x128xf32> to vector<16x72xf32>
    %cst_7 = arith.constant dense<0.000000e+00> : vector<8x72xf32>
    %11 = tpu.matmul %9, %10, %cst_7 {dimension_numbers = #tpu.dot_dimension_numbers<[1], [0], [0], [1], [0, 0, 1, 1], [], []>} : vector<8x16xf32>, vector<16x72xf32>, vector<8x72xf32> -> vector<8x72xf32>
    %12 = arith.addf %7, %11 : vector<8x72xf32>
    %c1 = arith.constant 1 : index
    %c0_8 = arith.constant 0 : index
    %c0_9 = arith.constant 0 : index
    %13 = vector.load %arg2[%c1, %c0_8, %c0_9] : memref<4x8x16xf32, #tpu.memory_space<vmem>>, vector<1x8x16xf32>
    %14 = vector.shape_cast %13 : vector<1x8x16xf32> to vector<8x16xf32>
    %15 = vector.extract_strided_slice %6 {offsets = [0, 1], sizes = [16, 72], strides = [1, 1]} : vector<16x128xf32> to vector<16x72xf32>
    %cst_10 = arith.constant dense<0.000000e+00> : vector<8x72xf32>
    %16 = tpu.matmul %14, %15, %cst_10 {dimension_numbers = #tpu.dot_dimension_numbers<[1], [0], [0], [1], [0, 0, 1, 1], [], []>} : vector<8x16xf32>, vector<16x72xf32>, vector<8x72xf32> -> vector<8x72xf32>
    %17 = arith.addf %12, %16 : vector<8x72xf32>
    %c2 = arith.constant 2 : index
    %c0_11 = arith.constant 0 : index
    %c0_12 = arith.constant 0 : index
    %18 = vector.load %arg2[%c2, %c0_11, %c0_12] : memref<4x8x16xf32, #tpu.memory_space<vmem>>, vector<1x8x16xf32>
    %19 = vector.shape_cast %18 : vector<1x8x16xf32> to vector<8x16xf32>
    %20 = vector.extract_strided_slice %6 {offsets = [0, 9], sizes = [16, 72], strides = [1, 1]} : vector<16x128xf32> to vector<16x72xf32>
    %cst_13 = arith.constant dense<0.000000e+00> : vector<8x72xf32>
    %21 = tpu.matmul %19, %20, %cst_13 {dimension_numbers = #tpu.dot_dimension_numbers<[1], [0], [0], [1], [0, 0, 1, 1], [], []>} : vector<8x16xf32>, vector<16x72xf32>, vector<8x72xf32> -> vector<8x72xf32>
    %22 = arith.addf %17, %21 : vector<8x72xf32>
    %c3 = arith.constant 3 : index
    %c0_14 = arith.constant 0 : index
    %c0_15 = arith.constant 0 : index
    %23 = vector.load %arg2[%c3, %c0_14, %c0_15] : memref<4x8x16xf32, #tpu.memory_space<vmem>>, vector<1x8x16xf32>
    %24 = vector.shape_cast %23 : vector<1x8x16xf32> to vector<8x16xf32>
    %25 = vector.extract_strided_slice %6 {offsets = [0, 10], sizes = [16, 72], strides = [1, 1]} : vector<16x128xf32> to vector<16x72xf32>
    %cst_16 = arith.constant dense<0.000000e+00> : vector<8x72xf32>
    %26 = tpu.matmul %24, %25, %cst_16 {dimension_numbers = #tpu.dot_dimension_numbers<[1], [0], [0], [1], [0, 0, 1, 1], [], []>} : vector<8x16xf32>, vector<16x72xf32>, vector<8x72xf32> -> vector<8x72xf32>
    %27 = arith.addf %22, %26 : vector<8x72xf32>
    %cst_17 = arith.constant 0.000000e+00 : f32
    %28 = vector.broadcast %cst_17 : f32 to vector<8x72xf32>
    %29 = arith.maximumf %27, %28 : vector<8x72xf32>
    %c0_18 = arith.constant 0 : index
    %c0_19 = arith.constant 0 : index
    %30 = vector.load %arg3[%c0_18, %c0_19] : memref<72x512xf32, #tpu.memory_space<vmem>>, vector<72x512xf32>
    %cst_20 = arith.constant dense<0.000000e+00> : vector<8x512xf32>
    %31 = tpu.matmul %29, %30, %cst_20 {dimension_numbers = #tpu.dot_dimension_numbers<[1], [0], [0], [1], [0, 0, 1, 1], [], []>} : vector<8x72xf32>, vector<72x512xf32>, vector<8x512xf32> -> vector<8x512xf32>
    %cst_21 = arith.constant 0.000000e+00 : f32
    %32 = vector.broadcast %cst_21 : f32 to vector<4x320xf32>
    %c0_22 = arith.constant 0 : index
    %c0_23 = arith.constant 0 : index
    %c0_24 = arith.constant 0 : index
    %33 = vector.load %arg4[%c0_22, %c0_23, %c0_24] : memref<25x4x8xf32, #tpu.memory_space<vmem>>, vector<1x4x8xf32>
    %34 = vector.shape_cast %33 : vector<1x4x8xf32> to vector<4x8xf32>
    %35 = vector.extract_strided_slice %31 {offsets = [0, 0], sizes = [8, 320], strides = [1, 1]} : vector<8x512xf32> to vector<8x320xf32>
    %cst_25 = arith.constant dense<0.000000e+00> : vector<4x320xf32>
    %36 = tpu.matmul %34, %35, %cst_25 {dimension_numbers = #tpu.dot_dimension_numbers<[1], [0], [0], [1], [0, 0, 1, 1], [], []>} : vector<4x8xf32>, vector<8x320xf32>, vector<4x320xf32> -> vector<4x320xf32>
    %37 = arith.addf %32, %36 : vector<4x320xf32>
    %c1_26 = arith.constant 1 : index
    %c0_27 = arith.constant 0 : index
    %c0_28 = arith.constant 0 : index
    %38 = vector.load %arg4[%c1_26, %c0_27, %c0_28] : memref<25x4x8xf32, #tpu.memory_space<vmem>>, vector<1x4x8xf32>
    %39 = vector.shape_cast %38 : vector<1x4x8xf32> to vector<4x8xf32>
    %40 = vector.extract_strided_slice %31 {offsets = [0, 1], sizes = [8, 320], strides = [1, 1]} : vector<8x512xf32> to vector<8x320xf32>
    %cst_29 = arith.constant dense<0.000000e+00> : vector<4x320xf32>
    %41 = tpu.matmul %39, %40, %cst_29 {dimension_numbers = #tpu.dot_dimension_numbers<[1], [0], [0], [1], [0, 0, 1, 1], [], []>} : vector<4x8xf32>, vector<8x320xf32>, vector<4x320xf32> -> vector<4x320xf32>
    %42 = arith.addf %37, %41 : vector<4x320xf32>
    %c2_30 = arith.constant 2 : index
    %c0_31 = arith.constant 0 : index
    %c0_32 = arith.constant 0 : index
    %43 = vector.load %arg4[%c2_30, %c0_31, %c0_32] : memref<25x4x8xf32, #tpu.memory_space<vmem>>, vector<1x4x8xf32>
    %44 = vector.shape_cast %43 : vector<1x4x8xf32> to vector<4x8xf32>
    %45 = vector.extract_strided_slice %31 {offsets = [0, 2], sizes = [8, 320], strides = [1, 1]} : vector<8x512xf32> to vector<8x320xf32>
    %cst_33 = arith.constant dense<0.000000e+00> : vector<4x320xf32>
    %46 = tpu.matmul %44, %45, %cst_33 {dimension_numbers = #tpu.dot_dimension_numbers<[1], [0], [0], [1], [0, 0, 1, 1], [], []>} : vector<4x8xf32>, vector<8x320xf32>, vector<4x320xf32> -> vector<4x320xf32>
    %47 = arith.addf %42, %46 : vector<4x320xf32>
    %c3_34 = arith.constant 3 : index
    %c0_35 = arith.constant 0 : index
    %c0_36 = arith.constant 0 : index
    %48 = vector.load %arg4[%c3_34, %c0_35, %c0_36] : memref<25x4x8xf32, #tpu.memory_space<vmem>>, vector<1x4x8xf32>
    %49 = vector.shape_cast %48 : vector<1x4x8xf32> to vector<4x8xf32>
    %50 = vector.extract_strided_slice %31 {offsets = [0, 3], sizes = [8, 320], strides = [1, 1]} : vector<8x512xf32> to vector<8x320xf32>
    %cst_37 = arith.constant dense<0.000000e+00> : vector<4x320xf32>
    %51 = tpu.matmul %49, %50, %cst_37 {dimension_numbers = #tpu.dot_dimension_numbers<[1], [0], [0], [1], [0, 0, 1, 1], [], []>} : vector<4x8xf32>, vector<8x320xf32>, vector<4x320xf32> -> vector<4x320xf32>
    %52 = arith.addf %47, %51 : vector<4x320xf32>
    %c4 = arith.constant 4 : index
    %c0_38 = arith.constant 0 : index
    %c0_39 = arith.constant 0 : index
    %53 = vector.load %arg4[%c4, %c0_38, %c0_39] : memref<25x4x8xf32, #tpu.memory_space<vmem>>, vector<1x4x8xf32>
    %54 = vector.shape_cast %53 : vector<1x4x8xf32> to vector<4x8xf32>
    %55 = vector.extract_strided_slice %31 {offsets = [0, 4], sizes = [8, 320], strides = [1, 1]} : vector<8x512xf32> to vector<8x320xf32>
    %cst_40 = arith.constant dense<0.000000e+00> : vector<4x320xf32>
    %56 = tpu.matmul %54, %55, %cst_40 {dimension_numbers = #tpu.dot_dimension_numbers<[1], [0], [0], [1], [0, 0, 1, 1], [], []>} : vector<4x8xf32>, vector<8x320xf32>, vector<4x320xf32> -> vector<4x320xf32>
    %57 = arith.addf %52, %56 : vector<4x320xf32>
    %c5 = arith.constant 5 : index
    %c0_41 = arith.constant 0 : index
    %c0_42 = arith.constant 0 : index
    %58 = vector.load %arg4[%c5, %c0_41, %c0_42] : memref<25x4x8xf32, #tpu.memory_space<vmem>>, vector<1x4x8xf32>
    %59 = vector.shape_cast %58 : vector<1x4x8xf32> to vector<4x8xf32>
    %60 = vector.extract_strided_slice %31 {offsets = [0, 20], sizes = [8, 320], strides = [1, 1]} : vector<8x512xf32> to vector<8x320xf32>
    %cst_43 = arith.constant dense<0.000000e+00> : vector<4x320xf32>
    %61 = tpu.matmul %59, %60, %cst_43 {dimension_numbers = #tpu.dot_dimension_numbers<[1], [0], [0], [1], [0, 0, 1, 1], [], []>} : vector<4x8xf32>, vector<8x320xf32>, vector<4x320xf32> -> vector<4x320xf32>
    %62 = arith.addf %57, %61 : vector<4x320xf32>
    %c6 = arith.constant 6 : index
    %c0_44 = arith.constant 0 : index
    %c0_45 = arith.constant 0 : index
    %63 = vector.load %arg4[%c6, %c0_44, %c0_45] : memref<25x4x8xf32, #tpu.memory_space<vmem>>, vector<1x4x8xf32>
    %64 = vector.shape_cast %63 : vector<1x4x8xf32> to vector<4x8xf32>
    %65 = vector.extract_strided_slice %31 {offsets = [0, 21], sizes = [8, 320], strides = [1, 1]} : vector<8x512xf32> to vector<8x320xf32>
    %cst_46 = arith.constant dense<0.000000e+00> : vector<4x320xf32>
    %66 = tpu.matmul %64, %65, %cst_46 {dimension_numbers = #tpu.dot_dimension_numbers<[1], [0], [0], [1], [0, 0, 1, 1], [], []>} : vector<4x8xf32>, vector<8x320xf32>, vector<4x320xf32> -> vector<4x320xf32>
    %67 = arith.addf %62, %66 : vector<4x320xf32>
    %c7 = arith.constant 7 : index
    %c0_47 = arith.constant 0 : index
    %c0_48 = arith.constant 0 : index
    %68 = vector.load %arg4[%c7, %c0_47, %c0_48] : memref<25x4x8xf32, #tpu.memory_space<vmem>>, vector<1x4x8xf32>
    %69 = vector.shape_cast %68 : vector<1x4x8xf32> to vector<4x8xf32>
    %70 = vector.extract_strided_slice %31 {offsets = [0, 22], sizes = [8, 320], strides = [1, 1]} : vector<8x512xf32> to vector<8x320xf32>
    %cst_49 = arith.constant dense<0.000000e+00> : vector<4x320xf32>
    %71 = tpu.matmul %69, %70, %cst_49 {dimension_numbers = #tpu.dot_dimension_numbers<[1], [0], [0], [1], [0, 0, 1, 1], [], []>} : vector<4x8xf32>, vector<8x320xf32>, vector<4x320xf32> -> vector<4x320xf32>
    %72 = arith.addf %67, %71 : vector<4x320xf32>
    %c8 = arith.constant 8 : index
    %c0_50 = arith.constant 0 : index
    %c0_51 = arith.constant 0 : index
    %73 = vector.load %arg4[%c8, %c0_50, %c0_51] : memref<25x4x8xf32, #tpu.memory_space<vmem>>, vector<1x4x8xf32>
    %74 = vector.shape_cast %73 : vector<1x4x8xf32> to vector<4x8xf32>
    %75 = vector.extract_strided_slice %31 {offsets = [0, 23], sizes = [8, 320], strides = [1, 1]} : vector<8x512xf32> to vector<8x320xf32>
    %cst_52 = arith.constant dense<0.000000e+00> : vector<4x320xf32>
    %76 = tpu.matmul %74, %75, %cst_52 {dimension_numbers = #tpu.dot_dimension_numbers<[1], [0], [0], [1], [0, 0, 1, 1], [], []>} : vector<4x8xf32>, vector<8x320xf32>, vector<4x320xf32> -> vector<4x320xf32>
    %77 = arith.addf %72, %76 : vector<4x320xf32>
    %c9 = arith.constant 9 : index
    %c0_53 = arith.constant 0 : index
    %c0_54 = arith.constant 0 : index
    %78 = vector.load %arg4[%c9, %c0_53, %c0_54] : memref<25x4x8xf32, #tpu.memory_space<vmem>>, vector<1x4x8xf32>
    %79 = vector.shape_cast %78 : vector<1x4x8xf32> to vector<4x8xf32>
    %80 = vector.extract_strided_slice %31 {offsets = [0, 24], sizes = [8, 320], strides = [1, 1]} : vector<8x512xf32> to vector<8x320xf32>
    %cst_55 = arith.constant dense<0.000000e+00> : vector<4x320xf32>
    %81 = tpu.matmul %79, %80, %cst_55 {dimension_numbers = #tpu.dot_dimension_numbers<[1], [0], [0], [1], [0, 0, 1, 1], [], []>} : vector<4x8xf32>, vector<8x320xf32>, vector<4x320xf32> -> vector<4x320xf32>
    %82 = arith.addf %77, %81 : vector<4x320xf32>
    %c10 = arith.constant 10 : index
    %c0_56 = arith.constant 0 : index
    %c0_57 = arith.constant 0 : index
    %83 = vector.load %arg4[%c10, %c0_56, %c0_57] : memref<25x4x8xf32, #tpu.memory_space<vmem>>, vector<1x4x8xf32>
    %84 = vector.shape_cast %83 : vector<1x4x8xf32> to vector<4x8xf32>
    %85 = vector.extract_strided_slice %31 {offsets = [0, 40], sizes = [8, 320], strides = [1, 1]} : vector<8x512xf32> to vector<8x320xf32>
    %cst_58 = arith.constant dense<0.000000e+00> : vector<4x320xf32>
    %86 = tpu.matmul %84, %85, %cst_58 {dimension_numbers = #tpu.dot_dimension_numbers<[1], [0], [0], [1], [0, 0, 1, 1], [], []>} : vector<4x8xf32>, vector<8x320xf32>, vector<4x320xf32> -> vector<4x320xf32>
    %87 = arith.addf %82, %86 : vector<4x320xf32>
    %c11 = arith.constant 11 : index
    %c0_59 = arith.constant 0 : index
    %c0_60 = arith.constant 0 : index
    %88 = vector.load %arg4[%c11, %c0_59, %c0_60] : memref<25x4x8xf32, #tpu.memory_space<vmem>>, vector<1x4x8xf32>
    %89 = vector.shape_cast %88 : vector<1x4x8xf32> to vector<4x8xf32>
    %90 = vector.extract_strided_slice %31 {offsets = [0, 41], sizes = [8, 320], strides = [1, 1]} : vector<8x512xf32> to vector<8x320xf32>
    %cst_61 = arith.constant dense<0.000000e+00> : vector<4x320xf32>
    %91 = tpu.matmul %89, %90, %cst_61 {dimension_numbers = #tpu.dot_dimension_numbers<[1], [0], [0], [1], [0, 0, 1, 1], [], []>} : vector<4x8xf32>, vector<8x320xf32>, vector<4x320xf32> -> vector<4x320xf32>
    %92 = arith.addf %87, %91 : vector<4x320xf32>
    %c12 = arith.constant 12 : index
    %c0_62 = arith.constant 0 : index
    %c0_63 = arith.constant 0 : index
    %93 = vector.load %arg4[%c12, %c0_62, %c0_63] : memref<25x4x8xf32, #tpu.memory_space<vmem>>, vector<1x4x8xf32>
    %94 = vector.shape_cast %93 : vector<1x4x8xf32> to vector<4x8xf32>
    %95 = vector.extract_strided_slice %31 {offsets = [0, 42], sizes = [8, 320], strides = [1, 1]} : vector<8x512xf32> to vector<8x320xf32>
    %cst_64 = arith.constant dense<0.000000e+00> : vector<4x320xf32>
    %96 = tpu.matmul %94, %95, %cst_64 {dimension_numbers = #tpu.dot_dimension_numbers<[1], [0], [0], [1], [0, 0, 1, 1], [], []>} : vector<4x8xf32>, vector<8x320xf32>, vector<4x320xf32> -> vector<4x320xf32>
    %97 = arith.addf %92, %96 : vector<4x320xf32>
    %c13 = arith.constant 13 : index
    %c0_65 = arith.constant 0 : index
    %c0_66 = arith.constant 0 : index
    %98 = vector.load %arg4[%c13, %c0_65, %c0_66] : memref<25x4x8xf32, #tpu.memory_space<vmem>>, vector<1x4x8xf32>
    %99 = vector.shape_cast %98 : vector<1x4x8xf32> to vector<4x8xf32>
    %100 = vector.extract_strided_slice %31 {offsets = [0, 43], sizes = [8, 320], strides = [1, 1]} : vector<8x512xf32> to vector<8x320xf32>
    %cst_67 = arith.constant dense<0.000000e+00> : vector<4x320xf32>
    %101 = tpu.matmul %99, %100, %cst_67 {dimension_numbers = #tpu.dot_dimension_numbers<[1], [0], [0], [1], [0, 0, 1, 1], [], []>} : vector<4x8xf32>, vector<8x320xf32>, vector<4x320xf32> -> vector<4x320xf32>
    %102 = arith.addf %97, %101 : vector<4x320xf32>
    %c14 = arith.constant 14 : index
    %c0_68 = arith.constant 0 : index
    %c0_69 = arith.constant 0 : index
    %103 = vector.load %arg4[%c14, %c0_68, %c0_69] : memref<25x4x8xf32, #tpu.memory_space<vmem>>, vector<1x4x8xf32>
    %104 = vector.shape_cast %103 : vector<1x4x8xf32> to vector<4x8xf32>
    %105 = vector.extract_strided_slice %31 {offsets = [0, 44], sizes = [8, 320], strides = [1, 1]} : vector<8x512xf32> to vector<8x320xf32>
    %cst_70 = arith.constant dense<0.000000e+00> : vector<4x320xf32>
    %106 = tpu.matmul %104, %105, %cst_70 {dimension_numbers = #tpu.dot_dimension_numbers<[1], [0], [0], [1], [0, 0, 1, 1], [], []>} : vector<4x8xf32>, vector<8x320xf32>, vector<4x320xf32> -> vector<4x320xf32>
    %107 = arith.addf %102, %106 : vector<4x320xf32>
    %c15 = arith.constant 15 : index
    %c0_71 = arith.constant 0 : index
    %c0_72 = arith.constant 0 : index
    %108 = vector.load %arg4[%c15, %c0_71, %c0_72] : memref<25x4x8xf32, #tpu.memory_space<vmem>>, vector<1x4x8xf32>
    %109 = vector.shape_cast %108 : vector<1x4x8xf32> to vector<4x8xf32>
    %110 = vector.extract_strided_slice %31 {offsets = [0, 60], sizes = [8, 320], strides = [1, 1]} : vector<8x512xf32> to vector<8x320xf32>
    %cst_73 = arith.constant dense<0.000000e+00> : vector<4x320xf32>
    %111 = tpu.matmul %109, %110, %cst_73 {dimension_numbers = #tpu.dot_dimension_numbers<[1], [0], [0], [1], [0, 0, 1, 1], [], []>} : vector<4x8xf32>, vector<8x320xf32>, vector<4x320xf32> -> vector<4x320xf32>
    %112 = arith.addf %107, %111 : vector<4x320xf32>
    %c16 = arith.constant 16 : index
    %c0_74 = arith.constant 0 : index
    %c0_75 = arith.constant 0 : index
    %113 = vector.load %arg4[%c16, %c0_74, %c0_75] : memref<25x4x8xf32, #tpu.memory_space<vmem>>, vector<1x4x8xf32>
    %114 = vector.shape_cast %113 : vector<1x4x8xf32> to vector<4x8xf32>
    %115 = vector.extract_strided_slice %31 {offsets = [0, 61], sizes = [8, 320], strides = [1, 1]} : vector<8x512xf32> to vector<8x320xf32>
    %cst_76 = arith.constant dense<0.000000e+00> : vector<4x320xf32>
    %116 = tpu.matmul %114, %115, %cst_76 {dimension_numbers = #tpu.dot_dimension_numbers<[1], [0], [0], [1], [0, 0, 1, 1], [], []>} : vector<4x8xf32>, vector<8x320xf32>, vector<4x320xf32> -> vector<4x320xf32>
    %117 = arith.addf %112, %116 : vector<4x320xf32>
    %c17 = arith.constant 17 : index
    %c0_77 = arith.constant 0 : index
    %c0_78 = arith.constant 0 : index
    %118 = vector.load %arg4[%c17, %c0_77, %c0_78] : memref<25x4x8xf32, #tpu.memory_space<vmem>>, vector<1x4x8xf32>
    %119 = vector.shape_cast %118 : vector<1x4x8xf32> to vector<4x8xf32>
    %120 = vector.extract_strided_slice %31 {offsets = [0, 62], sizes = [8, 320], strides = [1, 1]} : vector<8x512xf32> to vector<8x320xf32>
    %cst_79 = arith.constant dense<0.000000e+00> : vector<4x320xf32>
    %121 = tpu.matmul %119, %120, %cst_79 {dimension_numbers = #tpu.dot_dimension_numbers<[1], [0], [0], [1], [0, 0, 1, 1], [], []>} : vector<4x8xf32>, vector<8x320xf32>, vector<4x320xf32> -> vector<4x320xf32>
    %122 = arith.addf %117, %121 : vector<4x320xf32>
    %c18 = arith.constant 18 : index
    %c0_80 = arith.constant 0 : index
    %c0_81 = arith.constant 0 : index
    %123 = vector.load %arg4[%c18, %c0_80, %c0_81] : memref<25x4x8xf32, #tpu.memory_space<vmem>>, vector<1x4x8xf32>
    %124 = vector.shape_cast %123 : vector<1x4x8xf32> to vector<4x8xf32>
    %125 = vector.extract_strided_slice %31 {offsets = [0, 63], sizes = [8, 320], strides = [1, 1]} : vector<8x512xf32> to vector<8x320xf32>
    %cst_82 = arith.constant dense<0.000000e+00> : vector<4x320xf32>
    %126 = tpu.matmul %124, %125, %cst_82 {dimension_numbers = #tpu.dot_dimension_numbers<[1], [0], [0], [1], [0, 0, 1, 1], [], []>} : vector<4x8xf32>, vector<8x320xf32>, vector<4x320xf32> -> vector<4x320xf32>
    %127 = arith.addf %122, %126 : vector<4x320xf32>
    %c19 = arith.constant 19 : index
    %c0_83 = arith.constant 0 : index
    %c0_84 = arith.constant 0 : index
    %128 = vector.load %arg4[%c19, %c0_83, %c0_84] : memref<25x4x8xf32, #tpu.memory_space<vmem>>, vector<1x4x8xf32>
    %129 = vector.shape_cast %128 : vector<1x4x8xf32> to vector<4x8xf32>
    %130 = vector.extract_strided_slice %31 {offsets = [0, 64], sizes = [8, 320], strides = [1, 1]} : vector<8x512xf32> to vector<8x320xf32>
    %cst_85 = arith.constant dense<0.000000e+00> : vector<4x320xf32>
    %131 = tpu.matmul %129, %130, %cst_85 {dimension_numbers = #tpu.dot_dimension_numbers<[1], [0], [0], [1], [0, 0, 1, 1], [], []>} : vector<4x8xf32>, vector<8x320xf32>, vector<4x320xf32> -> vector<4x320xf32>
    %132 = arith.addf %127, %131 : vector<4x320xf32>
    %c20 = arith.constant 20 : index
    %c0_86 = arith.constant 0 : index
    %c0_87 = arith.constant 0 : index
    %133 = vector.load %arg4[%c20, %c0_86, %c0_87] : memref<25x4x8xf32, #tpu.memory_space<vmem>>, vector<1x4x8xf32>
    %134 = vector.shape_cast %133 : vector<1x4x8xf32> to vector<4x8xf32>
    %135 = vector.extract_strided_slice %31 {offsets = [0, 80], sizes = [8, 320], strides = [1, 1]} : vector<8x512xf32> to vector<8x320xf32>
    %cst_88 = arith.constant dense<0.000000e+00> : vector<4x320xf32>
    %136 = tpu.matmul %134, %135, %cst_88 {dimension_numbers = #tpu.dot_dimension_numbers<[1], [0], [0], [1], [0, 0, 1, 1], [], []>} : vector<4x8xf32>, vector<8x320xf32>, vector<4x320xf32> -> vector<4x320xf32>
    %137 = arith.addf %132, %136 : vector<4x320xf32>
    %c21 = arith.constant 21 : index
    %c0_89 = arith.constant 0 : index
    %c0_90 = arith.constant 0 : index
    %138 = vector.load %arg4[%c21, %c0_89, %c0_90] : memref<25x4x8xf32, #tpu.memory_space<vmem>>, vector<1x4x8xf32>
    %139 = vector.shape_cast %138 : vector<1x4x8xf32> to vector<4x8xf32>
    %140 = vector.extract_strided_slice %31 {offsets = [0, 81], sizes = [8, 320], strides = [1, 1]} : vector<8x512xf32> to vector<8x320xf32>
    %cst_91 = arith.constant dense<0.000000e+00> : vector<4x320xf32>
    %141 = tpu.matmul %139, %140, %cst_91 {dimension_numbers = #tpu.dot_dimension_numbers<[1], [0], [0], [1], [0, 0, 1, 1], [], []>} : vector<4x8xf32>, vector<8x320xf32>, vector<4x320xf32> -> vector<4x320xf32>
    %142 = arith.addf %137, %141 : vector<4x320xf32>
    %c22 = arith.constant 22 : index
    %c0_92 = arith.constant 0 : index
    %c0_93 = arith.constant 0 : index
    %143 = vector.load %arg4[%c22, %c0_92, %c0_93] : memref<25x4x8xf32, #tpu.memory_space<vmem>>, vector<1x4x8xf32>
    %144 = vector.shape_cast %143 : vector<1x4x8xf32> to vector<4x8xf32>
    %145 = vector.extract_strided_slice %31 {offsets = [0, 82], sizes = [8, 320], strides = [1, 1]} : vector<8x512xf32> to vector<8x320xf32>
    %cst_94 = arith.constant dense<0.000000e+00> : vector<4x320xf32>
    %146 = tpu.matmul %144, %145, %cst_94 {dimension_numbers = #tpu.dot_dimension_numbers<[1], [0], [0], [1], [0, 0, 1, 1], [], []>} : vector<4x8xf32>, vector<8x320xf32>, vector<4x320xf32> -> vector<4x320xf32>
    %147 = arith.addf %142, %146 : vector<4x320xf32>
    %c23 = arith.constant 23 : index
    %c0_95 = arith.constant 0 : index
    %c0_96 = arith.constant 0 : index
    %148 = vector.load %arg4[%c23, %c0_95, %c0_96] : memref<25x4x8xf32, #tpu.memory_space<vmem>>, vector<1x4x8xf32>
    %149 = vector.shape_cast %148 : vector<1x4x8xf32> to vector<4x8xf32>
    %150 = vector.extract_strided_slice %31 {offsets = [0, 83], sizes = [8, 320], strides = [1, 1]} : vector<8x512xf32> to vector<8x320xf32>
    %cst_97 = arith.constant dense<0.000000e+00> : vector<4x320xf32>
    %151 = tpu.matmul %149, %150, %cst_97 {dimension_numbers = #tpu.dot_dimension_numbers<[1], [0], [0], [1], [0, 0, 1, 1], [], []>} : vector<4x8xf32>, vector<8x320xf32>, vector<4x320xf32> -> vector<4x320xf32>
    %152 = arith.addf %147, %151 : vector<4x320xf32>
    %c24 = arith.constant 24 : index
    %c0_98 = arith.constant 0 : index
    %c0_99 = arith.constant 0 : index
    %153 = vector.load %arg4[%c24, %c0_98, %c0_99] : memref<25x4x8xf32, #tpu.memory_space<vmem>>, vector<1x4x8xf32>
    %154 = vector.shape_cast %153 : vector<1x4x8xf32> to vector<4x8xf32>
    %155 = vector.extract_strided_slice %31 {offsets = [0, 84], sizes = [8, 320], strides = [1, 1]} : vector<8x512xf32> to vector<8x320xf32>
    %cst_100 = arith.constant dense<0.000000e+00> : vector<4x320xf32>
    %156 = tpu.matmul %154, %155, %cst_100 {dimension_numbers = #tpu.dot_dimension_numbers<[1], [0], [0], [1], [0, 0, 1, 1], [], []>} : vector<4x8xf32>, vector<8x320xf32>, vector<4x320xf32> -> vector<4x320xf32>
    %157 = arith.addf %152, %156 : vector<4x320xf32>
    %c0_101 = arith.constant 0 : index
    %c0_102 = arith.constant 0 : index
    %c0_103 = arith.constant 0 : index
    %158 = vector.load %arg6[%c0_101, %c0_102, %c0_103] : memref<1x4x320xf32, #tpu.memory_space<vmem>>, vector<1x4x320xf32>
    %159 = vector.shape_cast %158 : vector<1x4x320xf32> to vector<4x320xf32>
    %160 = vector.shape_cast %157 : vector<4x320xf32> to vector<1x4x320xf32>
    tpu.vector_store %arg6[%c0_101, %c0_102, %c0_103], %160 {strides = array<i32>} : memref<1x4x320xf32, #tpu.memory_space<vmem>>, vector<1x4x320xf32>,
    %c0_104 = arith.constant 0 : index
    %c0_105 = arith.constant 0 : index
    %161 = vector.load %arg5[%c0_104, %c0_105] : memref<1x320xf32, #tpu.memory_space<vmem>>, vector<1x320xf32>
    %162 = vector.broadcast %161 : vector<1x320xf32> to vector<4x320xf32>
    %163 = arith.mulf %157, %162 : vector<4x320xf32>
    %cst_106 = arith.constant dense<0.000000e+00> : vector<4xf32>
    %164 = vector.multi_reduction <add>, %163, %cst_106 [1] : vector<4x320xf32> to vector<4xf32>
    %165 = vector.shape_cast %164 : vector<4xf32> to vector<4x1xf32>
    %c0_107 = arith.constant 0 : index
    %c0_108 = arith.constant 0 : index
    %c0_109 = arith.constant 0 : index
    %166 = vector.load %arg7[%c0_107, %c0_108, %c0_109] : memref<1x4x1xf32, #tpu.memory_space<vmem>>, vector<1x4x1xf32>
    %167 = vector.shape_cast %166 : vector<1x4x1xf32> to vector<4x1xf32>
    %168 = vector.shape_cast %165 : vector<4x1xf32> to vector<1x4x1xf32>
    tpu.vector_store %arg7[%c0_107, %c0_108, %c0_109], %168 {strides = array<i32>} : memref<1x4x1xf32, #tpu.memory_space<vmem>>, vector<1x4x1xf32>,
    %169 = arith.mulf %163, %163 : vector<4x320xf32>
    %cst_110 = arith.constant dense<0.000000e+00> : vector<4xf32>
    %170 = vector.multi_reduction <add>, %169, %cst_110 [1] : vector<4x320xf32> to vector<4xf32>
    %171 = vector.shape_cast %170 : vector<4xf32> to vector<4x1xf32>
    %c0_111 = arith.constant 0 : index
    %c0_112 = arith.constant 0 : index
    %c0_113 = arith.constant 0 : index
    %172 = vector.load %arg8[%c0_111, %c0_112, %c0_113] : memref<1x4x1xf32, #tpu.memory_space<vmem>>, vector<1x4x1xf32>
    %173 = vector.shape_cast %172 : vector<1x4x1xf32> to vector<4x1xf32>
    %174 = vector.shape_cast %171 : vector<4x1xf32> to vector<1x4x1xf32>
    tpu.vector_store %arg8[%c0_111, %c0_112, %c0_113], %174 {strides = array<i32>} : memref<1x4x1xf32, #tpu.memory_space<vmem>>, vector<1x4x1xf32>,
    return
  }
  func.func @transform_0(%arg0: i32) -> (i32, i32, i32) {
    %c0_i32 = arith.constant 0 : i32
    %c0_i32_0 = arith.constant 0 : i32
    %c0_i32_1 = arith.constant 0 : i32
    return %arg0, %c0_i32, %c0_i32_0 : i32, i32, i32
  }
  func.func @transform_1(%arg0: i32) -> (i32, i32, i32) {
    %c0_i32 = arith.constant 0 : i32
    %c0_i32_0 = arith.constant 0 : i32
    %c0_i32_1 = arith.constant 0 : i32
    %c0_i32_2 = arith.constant 0 : i32
    return %c0_i32, %c0_i32_0, %c0_i32_1 : i32, i32, i32
  }
  func.func @transform_2(%arg0: i32) -> (i32, i32) {
    %c0_i32 = arith.constant 0 : i32
    %c0_i32_0 = arith.constant 0 : i32
    %c0_i32_1 = arith.constant 0 : i32
    return %c0_i32, %c0_i32_0 : i32, i32
  }
  func.func @transform_3(%arg0: i32) -> (i32, i32, i32) {
    %c0_i32 = arith.constant 0 : i32
    %c0_i32_0 = arith.constant 0 : i32
    %c0_i32_1 = arith.constant 0 : i32
    %c0_i32_2 = arith.constant 0 : i32
    return %c0_i32, %c0_i32_0, %c0_i32_1 : i32, i32, i32
  }
  func.func @transform_4(%arg0: i32) -> (i32, i32) {
    %c0_i32 = arith.constant 0 : i32
    %c0_i32_0 = arith.constant 0 : i32
    %c0_i32_1 = arith.constant 0 : i32
    return %c0_i32, %c0_i32_0 : i32, i32
  }
  func.func @transform_5(%arg0: i32) -> (i32, i32, i32) {
    %c0_i32 = arith.constant 0 : i32
    %c0_i32_0 = arith.constant 0 : i32
    %c0_i32_1 = arith.constant 0 : i32
    return %arg0, %c0_i32, %c0_i32_0 : i32, i32, i32
  }
  func.func @transform_6(%arg0: i32) -> (i32, i32, i32) {
    %c0_i32 = arith.constant 0 : i32
    %c0_i32_0 = arith.constant 0 : i32
    %c0_i32_1 = arith.constant 0 : i32
    return %arg0, %c0_i32, %c0_i32_0 : i32, i32, i32
  }
  func.func @transform_7(%arg0: i32) -> (i32, i32, i32) {
    %c0_i32 = arith.constant 0 : i32
    %c0_i32_0 = arith.constant 0 : i32
    %c0_i32_1 = arith.constant 0 : i32
    return %arg0, %c0_i32, %c0_i32_0 : i32, i32, i32
  }
}

</mosaic_0001>

<llo_original>
// kernel: unet_innermost_forward.3
$region0: #{unet_innermost_forward.3}
  #allocation0 [shape = 'u32[]', space=smem, size = 0x4, offset = 0x4, fixed_abs, tag = 'smem constant byte address 0x4 - core index']
  #allocation1 [shape = 'u32[144,128]{1,0:T(1,128)}', space=vmem, size = 0x12000, scoped, tag = 'internal scratch']
  %s0 = inlined_call_operand.vmem [shape: f32[2,4,320], index: 0, kind: input, shape index: {}]
  %s1 = inlined_call_operand.vmem [shape: f32[2,4,1], index: 1, kind: input, shape index: {}]
  %s2 = inlined_call_operand.vmem [shape: f32[2,4,1], index: 2, kind: input, shape index: {}]
  %s3 = inlined_call_operand.vmem [shape: f32[4,1], index: 3, kind: input, shape index: {}]
  %s4 = inlined_call_operand.vmem [shape: f32[4,1], index: 4, kind: input, shape index: {}]
  %s5 = inlined_call_operand.vmem [shape: f32[2,4,320], index: 5, kind: output, shape index: {}]
  %s6 = sld [smem:[#allocation0]]
  $region53: #{unet_innermost_forward.3} parent=0
    _
  %s8 = ssub.s32 1, %s6
  %s9 = scalar_select 0, %s8, %s6
  loop: start=0, step=1, limit=4
  $region2: #{unet_innermost_forward.3} parent=0 // loop_pre_header
    _
  $region3: #{unet_innermost_forward.3} parent=0 // loop_header
    %s11 = sphi 0, %s15
    %p12 = scmp.ge.s32.totalorder %s11, 4
    %s21 = sphi 0, %s23
    %s24 = sphi 0, %s21
    %s25 = sphi 0, %s24
    %s41 = sphi 0, %s25
    %s45 = sphi 0, %s45
    %s47 = sphi 0, %s45
    %s48 = sphi 0, %s47
    %s62 = sphi 0, %s48
    %s66 = sphi 0, %s66
    %s68 = sphi 0, %s66
    %s69 = sphi 0, %s68
    %s83 = sphi 0, %s69
    %s87 = sphi 0, %s87
    %s89 = sphi 0, %s87
    %s90 = sphi 0, %s89
    %s104 = sphi 0, %s90
    %s108 = sphi 0, %s108
    %s110 = sphi 0, %s108
    %s111 = sphi 0, %s110
    %s125 = sphi 0, %s111
    %s131 = sphi 0, %s133
    %s134 = sphi 0, %s131
    %s135 = sphi 0, %s134
    %s151 = sphi 0, %s135
  $region4: #{unet_innermost_forward.3} parent=0 // loop_header_branch
    %14 = sbr.rel (%p12) target = $region8
  $region5: #{unet_innermost_forward.3} parent=0 // loop_body
    %s16 = ssub.s32 %s11, 1
    %s17 = ssub.s32 %s11, 2
    %s18 = sadd.s32 %s11, 1
    %s19 = ssub.s32 %s11, %s18
    %p20 = scmp.eq.s32.totalorder %s19, 0
    %s22 = sadd.s32 %s21, 1
    %s23 = scalar_select %p20, %s21, %s22
    %p26 = pneg %p20
    %p27 = scmp.eq.s32.totalorder %s11, 1
    %p28 = por %p26, %p27
    %p29 = scmp.ne.s32.totalorder %s21, %s24
    %p30 = scmp.eq.s32.totalorder %s11, 0
    %p31 = por %p29, %p30
    %p32 = scmp.ne.s32.totalorder %s21, %s24
    %p33 = scmp.eq.s32.totalorder %s16, 1
    %p34 = por %p32, %p33
    %p35 = scmp.ne.s32.totalorder %s24, %s25
    %p36 = scmp.eq.s32.totalorder %s16, 0
    %p37 = por %p35, %p36
    %p38 = scmp.ne.s32.totalorder %s24, %s25
    %p39 = scmp.eq.s32.totalorder %s17, 1
    %p40 = por %p38, %p39
    %p42 = scmp.ne.s32.totalorder %s25, %s41
    %p43 = scmp.eq.s32.totalorder %s17, 0
    %p44 = por %p42, %p43
    %s46 = sadd.s32 %s45, 1
    %p49 = scmp.eq.s32.totalorder %s11, 1
    %p50 = scmp.ne.s32.totalorder %s45, %s47
    %p51 = scmp.eq.s32.totalorder %s11, 0
    %p52 = por %p50, %p51
    %p53 = scmp.ne.s32.totalorder %s45, %s47
    %p54 = scmp.eq.s32.totalorder %s16, 1
    %p55 = por %p53, %p54
    %p56 = scmp.ne.s32.totalorder %s47, %s48
    %p57 = scmp.eq.s32.totalorder %s16, 0
    %p58 = por %p56, %p57
    %p59 = scmp.ne.s32.totalorder %s47, %s48
    %p60 = scmp.eq.s32.totalorder %s17, 1
    %p61 = por %p59, %p60
    %p63 = scmp.ne.s32.totalorder %s48, %s62
    %p64 = scmp.eq.s32.totalorder %s17, 0
    %p65 = por %p63, %p64
    %s67 = sadd.s32 %s66, 1
    %p70 = scmp.eq.s32.totalorder %s11, 1
    %p71 = scmp.ne.s32.totalorder %s66, %s68
    %p72 = scmp.eq.s32.totalorder %s11, 0
    %p73 = por %p71, %p72
    %p74 = scmp.ne.s32.totalorder %s66, %s68
    %p75 = scmp.eq.s32.totalorder %s16, 1
    %p76 = por %p74, %p75
    %p77 = scmp.ne.s32.totalorder %s68, %s69
    %p78 = scmp.eq.s32.totalorder %s16, 0
    %p79 = por %p77, %p78
    %p80 = scmp.ne.s32.totalorder %s68, %s69
    %p81 = scmp.eq.s32.totalorder %s17, 1
    %p82 = por %p80, %p81
    %p84 = scmp.ne.s32.totalorder %s69, %s83
    %p85 = scmp.eq.s32.totalorder %s17, 0
    %p86 = por %p84, %p85
    %s88 = sadd.s32 %s87, 1
    %p91 = scmp.eq.s32.totalorder %s11, 1
    %p92 = scmp.ne.s32.totalorder %s87, %s89
    %p93 = scmp.eq.s32.totalorder %s11, 0
    %p94 = por %p92, %p93
    %p95 = scmp.ne.s32.totalorder %s87, %s89
    %p96 = scmp.eq.s32.totalorder %s16, 1
    %p97 = por %p95, %p96
    %p98 = scmp.ne.s32.totalorder %s89, %s90
    %p99 = scmp.eq.s32.totalorder %s16, 0
    %p100 = por %p98, %p99
    %p101 = scmp.ne.s32.totalorder %s89, %s90
    %p102 = scmp.eq.s32.totalorder %s17, 1
    %p103 = por %p101, %p102
    %p105 = scmp.ne.s32.totalorder %s90, %s104
    %p106 = scmp.eq.s32.totalorder %s17, 0
    %p107 = por %p105, %p106
    %s109 = sadd.s32 %s108, 1
    %p112 = scmp.eq.s32.totalorder %s11, 1
    %p113 = scmp.ne.s32.totalorder %s108, %s110
    %p114 = scmp.eq.s32.totalorder %s11, 0
    %p115 = por %p113, %p114
    %p116 = scmp.ne.s32.totalorder %s108, %s110
    %p117 = scmp.eq.s32.totalorder %s16, 1
    %p118 = por %p116, %p117
    %p119 = scmp.ne.s32.totalorder %s110, %s111
    %p120 = scmp.eq.s32.totalorder %s16, 0
    %p121 = por %p119, %p120
    %p122 = scmp.ne.s32.totalorder %s110, %s111
    %p123 = scmp.eq.s32.totalorder %s17, 1
    %p124 = por %p122, %p123
    %p126 = scmp.ne.s32.totalorder %s111, %s125
    %p127 = scmp.eq.s32.totalorder %s17, 0
    %p128 = por %p126, %p127
    %s129 = ssub.s32 %s11, %s18
    %p130 = scmp.eq.s32.totalorder %s129, 0
    %s132 = sadd.s32 %s131, 1
    %s133 = scalar_select %p130, %s131, %s132
    %p136 = pneg %p130
    %p137 = scmp.eq.s32.totalorder %s11, 1
    %p138 = por %p136, %p137
    %p139 = scmp.ne.s32.totalorder %s131, %s134
    %p140 = scmp.eq.s32.totalorder %s11, 0
    %p141 = por %p139, %p140
    %p142 = scmp.ne.s32.totalorder %s131, %s134
    %p143 = scmp.eq.s32.totalorder %s16, 1
    %p144 = por %p142, %p143
    %p145 = scmp.ne.s32.totalorder %s134, %s135
    %p146 = scmp.eq.s32.totalorder %s16, 0
    %p147 = por %p145, %p146
    %p148 = scmp.ne.s32.totalorder %s134, %s135
    %p149 = scmp.eq.s32.totalorder %s17, 1
    %p150 = por %p148, %p149
    %p152 = scmp.ne.s32.totalorder %s135, %s151
    %p153 = scmp.eq.s32.totalorder %s17, 0
    %p154 = por %p152, %p153
    %p155 = scmp.le.s32.totalorder 1, %s11
    %p156 = scmp.lt.s32.totalorder %s11, 3
    %p157 = pnand %p155, %p156
    %p158 = pneg %p157
    // Predicated region
    $region9: #{unet_innermost_forward.3} parent=5 // pred_check
      _
    $region10: #{unet_innermost_forward.3} parent=5 // pred_check_branch
      %160 = sbr.rel (%p157) target = $region12
    $region11: #{unet_innermost_forward.3} parent=5 // pred_region
      %s161 = ssub.s32 %s11, 1
      // Predicated region
      $region13: #{unet_innermost_forward.3} parent=11 // pred_check
        %p162 = pneg %p58
      $region14: #{unet_innermost_forward.3} parent=11 // pred_check_branch
        %164 = sbr.rel (%p162) target = $region16
      $region15: #{unet_innermost_forward.3} parent=11 // pred_region
        _
      $region16: #{unet_innermost_forward.3} parent=11 // pred_fallthru
        _
      // Predicated region
      $region17: #{unet_innermost_forward.3} parent=11 // pred_check
        %p165 = pneg %p79
      $region18: #{unet_innermost_forward.3} parent=11 // pred_check_branch
        %167 = sbr.rel (%p165) target = $region20
      $region19: #{unet_innermost_forward.3} parent=11 // pred_region
        _
      $region20: #{unet_innermost_forward.3} parent=11 // pred_fallthru
        _
      // Predicated region
      $region21: #{unet_innermost_forward.3} parent=11 // pred_check
        %p168 = pneg %p100
      $region22: #{unet_innermost_forward.3} parent=11 // pred_check_branch
        %170 = sbr.rel (%p168) target = $region24
      $region23: #{unet_innermost_forward.3} parent=11 // pred_region
        _
      $region24: #{unet_innermost_forward.3} parent=11 // pred_fallthru
        _
      // Predicated region
      $region25: #{unet_innermost_forward.3} parent=11 // pred_check
        %p171 = pneg %p121
      $region26: #{unet_innermost_forward.3} parent=11 // pred_check_branch
        %173 = sbr.rel (%p171) target = $region28
      $region27: #{unet_innermost_forward.3} parent=11 // pred_region
        _
      $region28: #{unet_innermost_forward.3} parent=11 // pred_fallthru
        _
    $region12: #{unet_innermost_forward.3} parent=5 // pred_fallthru
      _
    %p174 = scmp.lt.s32.totalorder %s11, 2
    // Predicated region
    $region29: #{unet_innermost_forward.3} parent=5 // pred_check
      %p175 = pneg %p174
    $region30: #{unet_innermost_forward.3} parent=5 // pred_check_branch
      %177 = sbr.rel (%p175) target = $region32
    $region31: #{unet_innermost_forward.3} parent=5 // pred_region
      // Predicated region
      $region33: #{unet_innermost_forward.3} parent=31 // pred_check
        %p178 = pneg %p31
      $region34: #{unet_innermost_forward.3} parent=31 // pred_check_branch
        %180 = sbr.rel (%p178) target = $region36
      $region35: #{unet_innermost_forward.3} parent=31 // pred_region
        %p181 = scmp.lt.s32.totalorder %s11, 1
        %s182 = scalar_select %p181, %s11, 1
        %s183 = smul.addr %s182, 3
        %s184 = smul.addr %s183, 4
        %s185 = scalar_lea.vmem %s0, %s184
      $region36: #{unet_innermost_forward.3} parent=31 // pred_fallthru
        _
    $region32: #{unet_innermost_forward.3} parent=5 // pred_fallthru
      _
    %p186 = scmp.le.s32.totalorder 1, %s11
    %p187 = scmp.lt.s32.totalorder %s11, 3
    %p188 = pnand %p186, %p187
    %p189 = pneg %p188
    // Predicated region
    $region37: #{unet_innermost_forward.3} parent=5 // pred_check
      _
    $region38: #{unet_innermost_forward.3} parent=5 // pred_check_branch
      %191 = sbr.rel (%p188) target = $region40
    $region39: #{unet_innermost_forward.3} parent=5 // pred_region
      %s192 = ssub.s32 %s11, 1
      %p193 = scmp.lt.s32.totalorder %s16, 1
      %s194 = scalar_select %p193, %s16, 1
      %s195 = smul.addr %s194, 3
      %s196 = smul.addr %s195, 4
      %s197 = scalar_lea.vmem %s0, %s196
      %p198 = pneg %p37
      %p199 = pneg %p34
      %p200 = pneg %p58
      %p201 = pneg %p55
      %p202 = pneg %p79
      %p203 = pneg %p76
      %p204 = pneg %p100
      %p205 = pneg %p97
      %p206 = pneg %p121
      %p207 = pneg %p118
      %p208 = pneg %p147
      %p209 = pneg %p144
      %p210 = scmp.lt.s32.totalorder %s16, 1
      %s211 = scalar_select %p210, %s16, 1
      %s212 = smul.addr %s211, 3
      %s213 = smul.addr %s212, 4
      %s214 = scalar_lea.vmem %s5, %s213
      %p215 = scmp.lt.s32.totalorder %s16, 1
      %s216 = scalar_select %p215, %s16, 1
      %s217 = smul.addr %s216, 3
      %s218 = smul.addr %s217, 4
      %s219 = scalar_lea.vmem %s0, %s218
      %p220 = scmp.lt.s32.totalorder %s16, 1
      %s221 = scalar_select %p220, %s16, 1
      %s222 = smul.addr %s221, 3
      %s223 = smul.addr %s222, 4
      %s224 = scalar_lea.vmem %s5, %s223
      %v225 = vld [vmem:[%s1] sm:$0xf]
      %v226 = vld [vmem:[%s1 + $0x4] sm:$0xf]
      %vm227 = vcmask 3072
      %v228 = vsel %vm227, %v225, 0.0
      %v229 = vsel %vm227, %v226, 0.0
      %v230 = vadd.f32 %v228, %v229
      %v231 = vld [vmem:[%s2] sm:$0xf]
      %v232 = vld [vmem:[%s2 + $0x4] sm:$0xf]
      %v233 = vsel %vm227, %v231, 0.0
      %v234 = vsel %vm227, %v232, 0.0
      %v235 = vadd.f32 %v233, %v234
      %v236 = vmul.f32 %v230, 0.001953125
      %v237 = vmul.f32 %v235, 0.001953125
      %v238 = vmul.f32 %v236, %v236
      %v239 = vsub.f32 %v237, %v238
      %v240 = vadd.f32 %v239, 1e-05
      %v241 = vrsqrt.pop %v240
      %v242 = vld [vmem:[%s219] sm:$0xff]
      %v243 = vld [vmem:[%s219 + $0x8] sm:$0xf]
      %245 = vset.pattern.permute.xlu0 0
      %246 = vperm.xlu0 %245, %v236
      %v247 = vpop.permute.xlu0 %246
      %v249 = vunpack.c.l.s4 839922192
      %v250 = vunpack.c.0.s8 %v249
      %v251 = vlaneseq
      %v252 = vshrl.u32 %v251, 7
      %v253 = vsub.s32 %v250, %v252
      %v254 = vrot.slane %v247, %v253
      %v256 = vsub.f32 %v242, %v254
      %v257 = vsub.f32 %v243, %v254
      %259 = vset.pattern.permute.xlu0 0
      %260 = vperm.xlu0 %259, %v241
      %v261 = vpop.permute.xlu0 %260
      %v263 = vunpack.c.l.s4 839922192
      %v264 = vunpack.c.0.s8 %v263
      %v265 = vlaneseq
      %v266 = vshrl.u32 %v265, 7
      %v267 = vsub.s32 %v264, %v266
      %v268 = vrot.slane %v261, %v267
      %v270 = vmul.f32 %v256, %v268
      %v271 = vmul.f32 %v257, %v268
      %v272 = vld [vmem:[%s3] sm:$0xf]
      %274 = vset.pattern.permute.xlu0 0
      %275 = vperm.xlu0 %274, %v272
      %v276 = vpop.permute.xlu0 %275
      %v278 = vunpack.c.l.s4 839922192
      %v279 = vunpack.c.0.s8 %v278
      %v280 = vlaneseq
      %v281 = vshrl.u32 %v280, 7
      %v282 = vsub.s32 %v279, %v281
      %v283 = vrot.slane %v276, %v282
      %v285 = vmul.f32 %v270, %v283
      %v286 = vmul.f32 %v271, %v283
      %v287 = vld [vmem:[%s4] sm:$0xf]
      %289 = vset.pattern.permute.xlu0 0
      %290 = vperm.xlu0 %289, %v287
      %v291 = vpop.permute.xlu0 %290
      %v293 = vunpack.c.l.s4 839922192
      %v294 = vunpack.c.0.s8 %v293
      %v295 = vlaneseq
      %v296 = vshrl.u32 %v295, 7
      %v297 = vsub.s32 %v294, %v296
      %v298 = vrot.slane %v291, %v297
      %v300 = vadd.f32 %v285, %v298
      %v301 = vadd.f32 %v286, %v298
      %302 = vst [vmem:[%s224] sm:$0xff] %v300
      %vm303 = vcmask 519168
      %304 = vst.msk [vmem:[%s224 + $0x8] sm:$0xf] %vm303, %v301
      %p305 = scmp.lt.s32.totalorder %s16, 1
      %s306 = scalar_select %p305, %s16, 1
      %s307 = smul.addr %s306, 3
      %s308 = smul.addr %s307, 4
      %s309 = scalar_lea.vmem %s5, %s308
      // Predicated region
      $region41: #{unet_innermost_forward.3} parent=39 // pred_check
        %p310 = pneg %p144
      $region42: #{unet_innermost_forward.3} parent=39 // pred_check_branch
        %312 = sbr.rel (%p310) target = $region44
      $region43: #{unet_innermost_forward.3} parent=39 // pred_region
        _
      $region44: #{unet_innermost_forward.3} parent=39 // pred_fallthru
        _
    $region40: #{unet_innermost_forward.3} parent=5 // pred_fallthru
      _
    %p313 = scmp.le.s32.totalorder 2, %s11
    // Predicated region
    $region45: #{unet_innermost_forward.3} parent=5 // pred_check
      %p314 = pneg %p313
    $region46: #{unet_innermost_forward.3} parent=5 // pred_check_branch
      %316 = sbr.rel (%p314) target = $region48
    $region47: #{unet_innermost_forward.3} parent=5 // pred_region
      %s317 = ssub.s32 %s11, 2
      // Predicated region
      $region49: #{unet_innermost_forward.3} parent=47 // pred_check
        %p318 = pneg %p150
      $region50: #{unet_innermost_forward.3} parent=47 // pred_check_branch
        %320 = sbr.rel (%p318) target = $region52
      $region51: #{unet_innermost_forward.3} parent=47 // pred_region
        %p321 = scmp.lt.s32.totalorder %s17, 1
        %s322 = scalar_select %p321, %s17, 1
        %s323 = smul.addr %s322, 3
        %s324 = smul.addr %s323, 4
        %s325 = scalar_lea.vmem %s5, %s324
      $region52: #{unet_innermost_forward.3} parent=47 // pred_fallthru
        _
    $region48: #{unet_innermost_forward.3} parent=5 // pred_fallthru
      _
  $region6: #{unet_innermost_forward.3} parent=0 // loop_footer
    %s15 = sadd.s32 1, %s11
  $region7: #{unet_innermost_forward.3} parent=0 // loop_footer_branch
    %10 = sbr.rel target = $region3
  $region8: #{unet_innermost_forward.3} parent=0 // loop_exit
    _

// kernel: unet_innermost_forward.2
$region0: #{unet_innermost_forward.2}
  #allocation0 [shape = 'u32[]', space=smem, size = 0x4, offset = 0x4, fixed_abs, tag = 'smem constant byte address 0x4 - core index']
  #allocation1 [shape = 'u32[144,128]{1,0:T(1,128)}', space=vmem, size = 0x12000, scoped, tag = 'internal scratch']
  %s0 = inlined_call_operand.vmem [shape: f32[2,16,128], index: 0, kind: input, shape index: {}]
  %s1 = inlined_call_operand.vmem [shape: f32[4,8,16], index: 1, kind: input, shape index: {}]
  %s2 = inlined_call_operand.vmem [shape: f32[72,512], index: 2, kind: input, shape index: {}]
  %s3 = inlined_call_operand.vmem [shape: f32[25,4,8], index: 3, kind: input, shape index: {}]
  %s4 = inlined_call_operand.vmem [shape: f32[1,320], index: 4, kind: input, shape index: {}]
  %s5 = inlined_call_operand.vmem [shape: f32[2,4,320], index: 5, kind: output, shape index: {0}]
  %s6 = inlined_call_operand.vmem [shape: f32[2,4,1], index: 6, kind: output, shape index: {1}]
  %s7 = inlined_call_operand.vmem [shape: f32[2,4,1], index: 7, kind: output, shape index: {2}]
  %8 = xla_tuple %s5, %s6, %s7
  %s9 = sld [smem:[#allocation0]]
  $region69: #{unet_innermost_forward.2} parent=0
    _
  %s11 = ssub.s32 1, %s9
  %s12 = scalar_select 0, %s11, %s9
  loop: start=0, step=1, limit=4
  $region2: #{unet_innermost_forward.2} parent=0 // loop_pre_header
    _
  $region3: #{unet_innermost_forward.2} parent=0 // loop_header
    %s14 = sphi 0, %s18
    %p15 = scmp.ge.s32.totalorder %s14, 4
    %s24 = sphi 0, %s26
    %s27 = sphi 0, %s24
    %s28 = sphi 0, %s27
    %s44 = sphi 0, %s28
    %s48 = sphi 0, %s48
    %s50 = sphi 0, %s48
    %s51 = sphi 0, %s50
    %s65 = sphi 0, %s51
    %s69 = sphi 0, %s69
    %s71 = sphi 0, %s69
    %s72 = sphi 0, %s71
    %s86 = sphi 0, %s72
    %s90 = sphi 0, %s90
    %s92 = sphi 0, %s90
    %s93 = sphi 0, %s92
    %s107 = sphi 0, %s93
    %s111 = sphi 0, %s111
    %s113 = sphi 0, %s111
    %s114 = sphi 0, %s113
    %s128 = sphi 0, %s114
    %s134 = sphi 0, %s136
    %s137 = sphi 0, %s134
    %s138 = sphi 0, %s137
    %s154 = sphi 0, %s138
    %s160 = sphi 0, %s162
    %s163 = sphi 0, %s160
    %s164 = sphi 0, %s163
    %s180 = sphi 0, %s164
    %s186 = sphi 0, %s188
    %s189 = sphi 0, %s186
    %s190 = sphi 0, %s189
    %s206 = sphi 0, %s190
  $region4: #{unet_innermost_forward.2} parent=0 // loop_header_branch
    %17 = sbr.rel (%p15) target = $region8
  $region5: #{unet_innermost_forward.2} parent=0 // loop_body
    %s19 = ssub.s32 %s14, 1
    %s20 = ssub.s32 %s14, 2
    %s21 = sadd.s32 %s14, 1
    %s22 = ssub.s32 %s14, %s21
    %p23 = scmp.eq.s32.totalorder %s22, 0
    %s25 = sadd.s32 %s24, 1
    %s26 = scalar_select %p23, %s24, %s25
    %p29 = pneg %p23
    %p30 = scmp.eq.s32.totalorder %s14, 1
    %p31 = por %p29, %p30
    %p32 = scmp.ne.s32.totalorder %s24, %s27
    %p33 = scmp.eq.s32.totalorder %s14, 0
    %p34 = por %p32, %p33
    %p35 = scmp.ne.s32.totalorder %s24, %s27
    %p36 = scmp.eq.s32.totalorder %s19, 1
    %p37 = por %p35, %p36
    %p38 = scmp.ne.s32.totalorder %s27, %s28
    %p39 = scmp.eq.s32.totalorder %s19, 0
    %p40 = por %p38, %p39
    %p41 = scmp.ne.s32.totalorder %s27, %s28
    %p42 = scmp.eq.s32.totalorder %s20, 1
    %p43 = por %p41, %p42
    %p45 = scmp.ne.s32.totalorder %s28, %s44
    %p46 = scmp.eq.s32.totalorder %s20, 0
    %p47 = por %p45, %p46
    %s49 = sadd.s32 %s48, 1
    %p52 = scmp.eq.s32.totalorder %s14, 1
    %p53 = scmp.ne.s32.totalorder %s48, %s50
    %p54 = scmp.eq.s32.totalorder %s14, 0
    %p55 = por %p53, %p54
    %p56 = scmp.ne.s32.totalorder %s48, %s50
    %p57 = scmp.eq.s32.totalorder %s19, 1
    %p58 = por %p56, %p57
    %p59 = scmp.ne.s32.totalorder %s50, %s51
    %p60 = scmp.eq.s32.totalorder %s19, 0
    %p61 = por %p59, %p60
    %p62 = scmp.ne.s32.totalorder %s50, %s51
    %p63 = scmp.eq.s32.totalorder %s20, 1
    %p64 = por %p62, %p63
    %p66 = scmp.ne.s32.totalorder %s51, %s65
    %p67 = scmp.eq.s32.totalorder %s20, 0
    %p68 = por %p66, %p67
    %s70 = sadd.s32 %s69, 1
    %p73 = scmp.eq.s32.totalorder %s14, 1
    %p74 = scmp.ne.s32.totalorder %s69, %s71
    %p75 = scmp.eq.s32.totalorder %s14, 0
    %p76 = por %p74, %p75
    %p77 = scmp.ne.s32.totalorder %s69, %s71
    %p78 = scmp.eq.s32.totalorder %s19, 1
    %p79 = por %p77, %p78
    %p80 = scmp.ne.s32.totalorder %s71, %s72
    %p81 = scmp.eq.s32.totalorder %s19, 0
    %p82 = por %p80, %p81
    %p83 = scmp.ne.s32.totalorder %s71, %s72
    %p84 = scmp.eq.s32.totalorder %s20, 1
    %p85 = por %p83, %p84
    %p87 = scmp.ne.s32.totalorder %s72, %s86
    %p88 = scmp.eq.s32.totalorder %s20, 0
    %p89 = por %p87, %p88
    %s91 = sadd.s32 %s90, 1
    %p94 = scmp.eq.s32.totalorder %s14, 1
    %p95 = scmp.ne.s32.totalorder %s90, %s92
    %p96 = scmp.eq.s32.totalorder %s14, 0
    %p97 = por %p95, %p96
    %p98 = scmp.ne.s32.totalorder %s90, %s92
    %p99 = scmp.eq.s32.totalorder %s19, 1
    %p100 = por %p98, %p99
    %p101 = scmp.ne.s32.totalorder %s92, %s93
    %p102 = scmp.eq.s32.totalorder %s19, 0
    %p103 = por %p101, %p102
    %p104 = scmp.ne.s32.totalorder %s92, %s93
    %p105 = scmp.eq.s32.totalorder %s20, 1
    %p106 = por %p104, %p105
    %p108 = scmp.ne.s32.totalorder %s93, %s107
    %p109 = scmp.eq.s32.totalorder %s20, 0
    %p110 = por %p108, %p109
    %s112 = sadd.s32 %s111, 1
    %p115 = scmp.eq.s32.totalorder %s14, 1
    %p116 = scmp.ne.s32.totalorder %s111, %s113
    %p117 = scmp.eq.s32.totalorder %s14, 0
    %p118 = por %p116, %p117
    %p119 = scmp.ne.s32.totalorder %s111, %s113
    %p120 = scmp.eq.s32.totalorder %s19, 1
    %p121 = por %p119, %p120
    %p122 = scmp.ne.s32.totalorder %s113, %s114
    %p123 = scmp.eq.s32.totalorder %s19, 0
    %p124 = por %p122, %p123
    %p125 = scmp.ne.s32.totalorder %s113, %s114
    %p126 = scmp.eq.s32.totalorder %s20, 1
    %p127 = por %p125, %p126
    %p129 = scmp.ne.s32.totalorder %s114, %s128
    %p130 = scmp.eq.s32.totalorder %s20, 0
    %p131 = por %p129, %p130
    %s132 = ssub.s32 %s14, %s21
    %p133 = scmp.eq.s32.totalorder %s132, 0
    %s135 = sadd.s32 %s134, 1
    %s136 = scalar_select %p133, %s134, %s135
    %p139 = pneg %p133
    %p140 = scmp.eq.s32.totalorder %s14, 1
    %p141 = por %p139, %p140
    %p142 = scmp.ne.s32.totalorder %s134, %s137
    %p143 = scmp.eq.s32.totalorder %s14, 0
    %p144 = por %p142, %p143
    %p145 = scmp.ne.s32.totalorder %s134, %s137
    %p146 = scmp.eq.s32.totalorder %s19, 1
    %p147 = por %p145, %p146
    %p148 = scmp.ne.s32.totalorder %s137, %s138
    %p149 = scmp.eq.s32.totalorder %s19, 0
    %p150 = por %p148, %p149
    %p151 = scmp.ne.s32.totalorder %s137, %s138
    %p152 = scmp.eq.s32.totalorder %s20, 1
    %p153 = por %p151, %p152
    %p155 = scmp.ne.s32.totalorder %s138, %s154
    %p156 = scmp.eq.s32.totalorder %s20, 0
    %p157 = por %p155, %p156
    %s158 = ssub.s32 %s14, %s21
    %p159 = scmp.eq.s32.totalorder %s158, 0
    %s161 = sadd.s32 %s160, 1
    %s162 = scalar_select %p159, %s160, %s161
    %p165 = pneg %p159
    %p166 = scmp.eq.s32.totalorder %s14, 1
    %p167 = por %p165, %p166
    %p168 = scmp.ne.s32.totalorder %s160, %s163
    %p169 = scmp.eq.s32.totalorder %s14, 0
    %p170 = por %p168, %p169
    %p171 = scmp.ne.s32.totalorder %s160, %s163
    %p172 = scmp.eq.s32.totalorder %s19, 1
    %p173 = por %p171, %p172
    %p174 = scmp.ne.s32.totalorder %s163, %s164
    %p175 = scmp.eq.s32.totalorder %s19, 0
    %p176 = por %p174, %p175
    %p177 = scmp.ne.s32.totalorder %s163, %s164
    %p178 = scmp.eq.s32.totalorder %s20, 1
    %p179 = por %p177, %p178
    %p181 = scmp.ne.s32.totalorder %s164, %s180
    %p182 = scmp.eq.s32.totalorder %s20, 0
    %p183 = por %p181, %p182
    %s184 = ssub.s32 %s14, %s21
    %p185 = scmp.eq.s32.totalorder %s184, 0
    %s187 = sadd.s32 %s186, 1
    %s188 = scalar_select %p185, %s186, %s187
    %p191 = pneg %p185
    %p192 = scmp.eq.s32.totalorder %s14, 1
    %p193 = por %p191, %p192
    %p194 = scmp.ne.s32.totalorder %s186, %s189
    %p195 = scmp.eq.s32.totalorder %s14, 0
    %p196 = por %p194, %p195
    %p197 = scmp.ne.s32.totalorder %s186, %s189
    %p198 = scmp.eq.s32.totalorder %s19, 1
    %p199 = por %p197, %p198
    %p200 = scmp.ne.s32.totalorder %s189, %s190
    %p201 = scmp.eq.s32.totalorder %s19, 0
    %p202 = por %p200, %p201
    %p203 = scmp.ne.s32.totalorder %s189, %s190
    %p204 = scmp.eq.s32.totalorder %s20, 1
    %p205 = por %p203, %p204
    %p207 = scmp.ne.s32.totalorder %s190, %s206
    %p208 = scmp.eq.s32.totalorder %s20, 0
    %p209 = por %p207, %p208
    %p210 = scmp.le.s32.totalorder 1, %s14
    %p211 = scmp.lt.s32.totalorder %s14, 3
    %p212 = pnand %p210, %p211
    %p213 = pneg %p212
    // Predicated region
    $region9: #{unet_innermost_forward.2} parent=5 // pred_check
      _
    $region10: #{unet_innermost_forward.2} parent=5 // pred_check_branch
      %215 = sbr.rel (%p212) target = $region12
    $region11: #{unet_innermost_forward.2} parent=5 // pred_region
      %s216 = ssub.s32 %s14, 1
      // Predicated region
      $region13: #{unet_innermost_forward.2} parent=11 // pred_check
        %p217 = pneg %p61
      $region14: #{unet_innermost_forward.2} parent=11 // pred_check_branch
        %219 = sbr.rel (%p217) target = $region16
      $region15: #{unet_innermost_forward.2} parent=11 // pred_region
        _
      $region16: #{unet_innermost_forward.2} parent=11 // pred_fallthru
        _
      // Predicated region
      $region17: #{unet_innermost_forward.2} parent=11 // pred_check
        %p220 = pneg %p82
      $region18: #{unet_innermost_forward.2} parent=11 // pred_check_branch
        %222 = sbr.rel (%p220) target = $region20
      $region19: #{unet_innermost_forward.2} parent=11 // pred_region
        _
      $region20: #{unet_innermost_forward.2} parent=11 // pred_fallthru
        _
      // Predicated region
      $region21: #{unet_innermost_forward.2} parent=11 // pred_check
        %p223 = pneg %p103
      $region22: #{unet_innermost_forward.2} parent=11 // pred_check_branch
        %225 = sbr.rel (%p223) target = $region24
      $region23: #{unet_innermost_forward.2} parent=11 // pred_region
        _
      $region24: #{unet_innermost_forward.2} parent=11 // pred_fallthru
        _
      // Predicated region
      $region25: #{unet_innermost_forward.2} parent=11 // pred_check
        %p226 = pneg %p124
      $region26: #{unet_innermost_forward.2} parent=11 // pred_check_branch
        %228 = sbr.rel (%p226) target = $region28
      $region27: #{unet_innermost_forward.2} parent=11 // pred_region
        _
      $region28: #{unet_innermost_forward.2} parent=11 // pred_fallthru
        _
    $region12: #{unet_innermost_forward.2} parent=5 // pred_fallthru
      _
    %p229 = scmp.lt.s32.totalorder %s14, 2
    // Predicated region
    $region29: #{unet_innermost_forward.2} parent=5 // pred_check
      %p230 = pneg %p229
    $region30: #{unet_innermost_forward.2} parent=5 // pred_check_branch
      %232 = sbr.rel (%p230) target = $region32
    $region31: #{unet_innermost_forward.2} parent=5 // pred_region
      // Predicated region
      $region33: #{unet_innermost_forward.2} parent=31 // pred_check
        %p233 = pneg %p34
      $region34: #{unet_innermost_forward.2} parent=31 // pred_check_branch
        %235 = sbr.rel (%p233) target = $region36
      $region35: #{unet_innermost_forward.2} parent=31 // pred_region
        %p236 = scmp.lt.s32.totalorder %s14, 1
        %s237 = scalar_select %p236, %s14, 1
        %s238 = smul.addr %s237, 2
        %s239 = smul.addr %s238, 8
        %s240 = scalar_lea.vmem %s0, %s239
      $region36: #{unet_innermost_forward.2} parent=31 // pred_fallthru
        _
    $region32: #{unet_innermost_forward.2} parent=5 // pred_fallthru
      _
    %p241 = scmp.le.s32.totalorder 1, %s14
    %p242 = scmp.lt.s32.totalorder %s14, 3
    %p243 = pnand %p241, %p242
    %p244 = pneg %p243
    // Predicated region
    $region37: #{unet_innermost_forward.2} parent=5 // pred_check
      _
    $region38: #{unet_innermost_forward.2} parent=5 // pred_check_branch
      %246 = sbr.rel (%p243) target = $region40
    $region39: #{unet_innermost_forward.2} parent=5 // pred_region
      %s247 = ssub.s32 %s14, 1
      %p248 = scmp.lt.s32.totalorder %s19, 1
      %s249 = scalar_select %p248, %s19, 1
      %s250 = smul.addr %s249, 2
      %s251 = smul.addr %s250, 8
      %s252 = scalar_lea.vmem %s0, %s251
      %p253 = pneg %p40
      %p254 = pneg %p37
      %p255 = pneg %p61
      %p256 = pneg %p58
      %p257 = pneg %p82
      %p258 = pneg %p79
      %p259 = pneg %p103
      %p260 = pneg %p100
      %p261 = pneg %p124
      %p262 = pneg %p121
      %p263 = pneg %p150
      %p264 = pneg %p147
      %p265 = scmp.lt.s32.totalorder %s19, 1
      %s266 = scalar_select %p265, %s19, 1
      %s267 = smul.addr %s266, 3
      %s268 = smul.addr %s267, 4
      %s269 = scalar_lea.vmem %s5, %s268
      %p270 = pneg %p176
      %p271 = pneg %p173
      %p272 = scmp.lt.s32.totalorder %s19, 1
      %s273 = scalar_select %p272, %s19, 1
      %s274 = smul.addr %s273, 4
      %s275 = scalar_lea.vmem %s6, %s274
      %p276 = pneg %p202
      %p277 = pneg %p199
      %p278 = scmp.lt.s32.totalorder %s19, 1
      %s279 = scalar_select %p278, %s19, 1
      %s280 = smul.addr %s279, 4
      %s281 = scalar_lea.vmem %s7, %s280
      %p282 = scmp.lt.s32.totalorder %s19, 1
      %s283 = scalar_select %p282, %s19, 1
      %s284 = smul.addr %s283, 2
      %s285 = smul.addr %s284, 8
      %s286 = scalar_lea.vmem %s0, %s285
      %p287 = scmp.lt.s32.totalorder %s19, 1
      %s288 = scalar_select %p287, %s19, 1
      %s289 = smul.addr %s288, 3
      %s290 = smul.addr %s289, 4
      %s291 = scalar_lea.vmem %s5, %s290
      %p292 = scmp.lt.s32.totalorder %s19, 1
      %s293 = scalar_select %p292, %s19, 1
      %s294 = smul.addr %s293, 4
      %s295 = scalar_lea.vmem %s6, %s294
      %p296 = scmp.lt.s32.totalorder %s19, 1
      %s297 = scalar_select %p296, %s19, 1
      %s298 = smul.addr %s297, 4
      %s299 = scalar_lea.vmem %s7, %s298
      %v300 = vld [vmem:[%s286] sm:$0xff]
      %v301 = vld [vmem:[%s286 + $0x8] sm:$0xff]
      %vm302 = vcmp.ge.f32.partialorder %v300, 0.0
      %vm303 = vcmp.ge.f32.partialorder %v301, 0.0
      %v304 = vmul.f32 %v300, 0.2
      %v305 = vmul.f32 %v301, 0.2
      %v306 = vsel %vm302, %v300, %v304
      %v307 = vsel %vm303, %v301, %v305
      %v308 = vld [vmem:[%s1] sm:$0xff]
      %s309 = scalar_lea.vmem %s1, 8
      %v310 = vld [vmem:[%s309] sm:$0xff]
      %313 = vrot.lane.b32.xlu0 %v306, 127
      %v314 = vpop.permute.xlu0 %313
      %315 = vrot.lane.b32.xlu0 %v307, 127
      %v316 = vpop.permute.xlu0 %315
      %vm319 = vcmask 130048
      %v321 = vsel %vm319, %v310, 0
      %323 = vmatprep.subr.mxu0 0.0
      %324 = vmatpush1.msra.mxu0 %v314
      %325 = vmatprep.subr.mxu0 0.0
      %326 = vmatpush1.msra.mxu0 %v316
      %327 = vmatprep.subr.mxu0 0.0
      %328 = vmatpush1.msra.mxu0 0.0
      %329 = vmatprep.subr.mxu0 0.0
      %330 = vmatpush1.msra.mxu0 0.0
      %331 = vmatprep.subr.mxu0 0.0
      %332 = vmatpush1.msra.mxu0 0.0
      %333 = vmatprep.subr.mxu0 0.0
      %334 = vmatpush1.msra.mxu0 0.0
      %335 = vmatprep.subr.mxu0 0.0
      %336 = vmatpush1.msra.mxu0 0.0
      %337 = vmatprep.subr.mxu0 0.0
      %338 = vmatpush1.msra.mxu0 0.0
      %339 = vmatprep.subr.mxu0 0.0
      %340 = vmatpush1.msra.mxu0 0.0
      %341 = vmatprep.subr.mxu0 0.0
      %342 = vmatpush1.msra.mxu0 0.0
      %343 = vmatprep.subr.mxu0 0.0
      %344 = vmatpush1.msra.mxu0 0.0
      %345 = vmatprep.subr.mxu0 0.0
      %346 = vmatpush1.msra.mxu0 0.0
      %347 = vmatprep.subr.mxu0 0.0
      %348 = vmatpush1.msra.mxu0 0.0
      %349 = vmatprep.subr.mxu0 0.0
      %350 = vmatpush1.msra.mxu0 0.0
      %351 = vmatprep.subr.mxu0 0.0
      %352 = vmatpush1.msra.mxu0 0.0
      %353 = vmatprep.subr.mxu0 0.0
      %354 = vmatpush1.msra.mxu0 0.0
      %355 = vmatprep.subr.mxu0 0.0
      %356 = vmatpush1.msra.mxu0 0.0
      %357 = vmatprep.subr.mxu0 0.0
      %358 = vmatpush1.msra.mxu0 0.0
      %359 = vmatprep.subr.mxu0 0.0
      %360 = vmatpush1.msra.mxu0 0.0
      %361 = vmatprep.subr.mxu0 0.0
      %362 = vmatpush1.msra.mxu0 0.0
      %363 = vmatprep.subr.mxu0 0.0
      %364 = vmatpush1.msra.mxu0 0.0
      %365 = vmatprep.subr.mxu0 0.0
      %366 = vmatpush1.msra.mxu0 0.0
      %367 = vmatprep.subr.mxu0 0.0
      %368 = vmatpush1.msra.mxu0 0.0
      %369 = vmatprep.subr.mxu0 0.0
      %370 = vmatpush1.msra.mxu0 0.0
      %371 = vmatprep.subr.mxu0 0.0
      %372 = vmatpush1.msra.mxu0 0.0
      %373 = vmatprep.subr.mxu0 0.0
      %374 = vmatpush1.msra.mxu0 0.0
      %375 = vmatprep.subr.mxu0 0.0
      %376 = vmatpush1.msra.mxu0 0.0
      %377 = vmatprep.subr.mxu0 0.0
      %378 = vmatpush1.msra.mxu0 0.0
      %379 = vmatprep.subr.mxu0 0.0
      %380 = vmatpush1.msra.mxu0 0.0
      %381 = vmatprep.subr.mxu0 0.0
      %382 = vmatpush1.msra.mxu0 0.0
      %383 = vmatprep.subr.mxu0 0.0
      %384 = vmatpush1.msra.mxu0 0.0
      %385 = vmatprep.subr.mxu0 0.0
      %386 = vmatpush1.msra.mxu0 0.0
      %387 = vmatprep.mubr.f32.mxu0 0.0
      %388 = vmatmul.mubr.f32.gmra.mrb[0].mxu0 %v321
      %v389 = vpop.f32.mrb[0].mxu0
      %v390 = vadd.f32 0.0, %v389
      %v391 = vpop.f32.mrb[0].mxu0
      %392 = vdwg.mxu0
      %v394 = vsel %vm319, %v308, 0
      %396 = vmatprep.subr.mxu0 0.0
      %397 = vmatpush1.msra.mxu0 %v306
      %398 = vmatprep.subr.mxu0 0.0
      %399 = vmatpush1.msra.mxu0 %v307
      %400 = vmatprep.subr.mxu0 0.0
      %401 = vmatpush1.msra.mxu0 0.0
      %402 = vmatprep.subr.mxu0 0.0
      %403 = vmatpush1.msra.mxu0 0.0
      %404 = vmatprep.subr.mxu0 0.0
      %405 = vmatpush1.msra.mxu0 0.0
      %406 = vmatprep.subr.mxu0 0.0
      %407 = vmatpush1.msra.mxu0 0.0
      %408 = vmatprep.subr.mxu0 0.0
      %409 = vmatpush1.msra.mxu0 0.0
      %410 = vmatprep.subr.mxu0 0.0
      %411 = vmatpush1.msra.mxu0 0.0
      %412 = vmatprep.subr.mxu0 0.0
      %413 = vmatpush1.msra.mxu0 0.0
      %414 = vmatprep.subr.mxu0 0.0
      %415 = vmatpush1.msra.mxu0 0.0
      %416 = vmatprep.subr.mxu0 0.0
      %417 = vmatpush1.msra.mxu0 0.0
      %418 = vmatprep.subr.mxu0 0.0
      %419 = vmatpush1.msra.mxu0 0.0
      %420 = vmatprep.subr.mxu0 0.0
      %421 = vmatpush1.msra.mxu0 0.0
      %422 = vmatprep.subr.mxu0 0.0
      %423 = vmatpush1.msra.mxu0 0.0
      %424 = vmatprep.subr.mxu0 0.0
      %425 = vmatpush1.msra.mxu0 0.0
      %426 = vmatprep.subr.mxu0 0.0
      %427 = vmatpush1.msra.mxu0 0.0
      %428 = vmatprep.subr.mxu0 0.0
      %429 = vmatpush1.msra.mxu0 0.0
      %430 = vmatprep.subr.mxu0 0.0
      %431 = vmatpush1.msra.mxu0 0.0
      %432 = vmatprep.subr.mxu0 0.0
      %433 = vmatpush1.msra.mxu0 0.0
      %434 = vmatprep.subr.mxu0 0.0
      %435 = vmatpush1.msra.mxu0 0.0
      %436 = vmatprep.subr.mxu0 0.0
      %437 = vmatpush1.msra.mxu0 0.0
      %438 = vmatprep.subr.mxu0 0.0
      %439 = vmatpush1.msra.mxu0 0.0
      %440 = vmatprep.subr.mxu0 0.0
      %441 = vmatpush1.msra.mxu0 0.0
      %442 = vmatprep.subr.mxu0 0.0
      %443 = vmatpush1.msra.mxu0 0.0
      %444 = vmatprep.subr.mxu0 0.0
      %445 = vmatpush1.msra.mxu0 0.0
      %446 = vmatprep.subr.mxu0 0.0
      %447 = vmatpush1.msra.mxu0 0.0
      %448 = vmatprep.subr.mxu0 0.0
      %449 = vmatpush1.msra.mxu0 0.0
      %450 = vmatprep.subr.mxu0 0.0
      %451 = vmatpush1.msra.mxu0 0.0
      %452 = vmatprep.subr.mxu0 0.0
      %453 = vmatpush1.msra.mxu0 0.0
      %454 = vmatprep.subr.mxu0 0.0
      %455 = vmatpush1.msra.mxu0 0.0
      %456 = vmatprep.subr.mxu0 0.0
      %457 = vmatpush1.msra.mxu0 0.0
      %458 = vmatprep.subr.mxu0 0.0
      %459 = vmatpush1.msra.mxu0 0.0
      %460 = vmatprep.mubr.f32.mxu0 0.0
      %461 = vmatmul.mubr.f32.gmra.mrb[0].mxu0 %v394
      %v462 = vpop.f32.mrb[0].mxu0
      %v463 = vadd.f32 %v390, %v462
      %v464 = vpop.f32.mrb[0].mxu0
      %465 = vdwg.mxu0
      %s466 = scalar_lea.vmem %s1, 16
      %v467 = vld [vmem:[%s466] sm:$0xff]
      %468 = vrot.lane.b32.xlu0 %v306, 119
      %v469 = vpop.permute.xlu0 %468
      %470 = vrot.lane.b32.xlu0 %v307, 119
      %v471 = vpop.permute.xlu0 %470
      %v475 = vsel %vm319, %v467, 0
      %477 = vmatprep.subr.mxu0 0.0
      %478 = vmatpush1.msra.mxu0 %v469
      %479 = vmatprep.subr.mxu0 0.0
      %480 = vmatpush1.msra.mxu0 %v471
      %481 = vmatprep.subr.mxu0 0.0
      %482 = vmatpush1.msra.mxu0 0.0
      %483 = vmatprep.subr.mxu0 0.0
      %484 = vmatpush1.msra.mxu0 0.0
      %485 = vmatprep.subr.mxu0 0.0
      %486 = vmatpush1.msra.mxu0 0.0
      %487 = vmatprep.subr.mxu0 0.0
      %488 = vmatpush1.msra.mxu0 0.0
      %489 = vmatprep.subr.mxu0 0.0
      %490 = vmatpush1.msra.mxu0 0.0
      %491 = vmatprep.subr.mxu0 0.0
      %492 = vmatpush1.msra.mxu0 0.0
      %493 = vmatprep.subr.mxu0 0.0
      %494 = vmatpush1.msra.mxu0 0.0
      %495 = vmatprep.subr.mxu0 0.0
      %496 = vmatpush1.msra.mxu0 0.0
      %497 = vmatprep.subr.mxu0 0.0
      %498 = vmatpush1.msra.mxu0 0.0
      %499 = vmatprep.subr.mxu0 0.0
      %500 = vmatpush1.msra.mxu0 0.0
      %501 = vmatprep.subr.mxu0 0.0
      %502 = vmatpush1.msra.mxu0 0.0
      %503 = vmatprep.subr.mxu0 0.0
      %504 = vmatpush1.msra.mxu0 0.0
      %505 = vmatprep.subr.mxu0 0.0
      %506 = vmatpush1.msra.mxu0 0.0
      %507 = vmatprep.subr.mxu0 0.0
      %508 = vmatpush1.msra.mxu0 0.0
      %509 = vmatprep.subr.mxu0 0.0
      %510 = vmatpush1.msra.mxu0 0.0
      %511 = vmatprep.subr.mxu0 0.0
      %512 = vmatpush1.msra.mxu0 0.0
      %513 = vmatprep.subr.mxu0 0.0
      %514 = vmatpush1.msra.mxu0 0.0
      %515 = vmatprep.subr.mxu0 0.0
      %516 = vmatpush1.msra.mxu0 0.0
      %517 = vmatprep.subr.mxu0 0.0
      %518 = vmatpush1.msra.mxu0 0.0
      %519 = vmatprep.subr.mxu0 0.0
      %520 = vmatpush1.msra.mxu0 0.0
      %521 = vmatprep.subr.mxu0 0.0
      %522 = vmatpush1.msra.mxu0 0.0
      %523 = vmatprep.subr.mxu0 0.0
      %524 = vmatpush1.msra.mxu0 0.0
      %525 = vmatprep.subr.mxu0 0.0
      %526 = vmatpush1.msra.mxu0 0.0
      %527 = vmatprep.subr.mxu0 0.0
      %528 = vmatpush1.msra.mxu0 0.0
      %529 = vmatprep.subr.mxu0 0.0
      %530 = vmatpush1.msra.mxu0 0.0
      %531 = vmatprep.subr.mxu0 0.0
      %532 = vmatpush1.msra.mxu0 0.0
      %533 = vmatprep.subr.mxu0 0.0
      %534 = vmatpush1.msra.mxu0 0.0
      %535 = vmatprep.subr.mxu0 0.0
      %536 = vmatpush1.msra.mxu0 0.0
      %537 = vmatprep.subr.mxu0 0.0
      %538 = vmatpush1.msra.mxu0 0.0
      %539 = vmatprep.subr.mxu0 0.0
      %540 = vmatpush1.msra.mxu0 0.0
      %541 = vmatprep.mubr.f32.mxu0 0.0
      %542 = vmatmul.mubr.f32.gmra.mrb[0].mxu0 %v475
      %v543 = vpop.f32.mrb[0].mxu0
      %v544 = vadd.f32 0.0, %v543
      %v545 = vpop.f32.mrb[0].mxu0
      %546 = vdwg.mxu0
      %v547 = vadd.f32 %v463, %v544
      %s548 = scalar_lea.vmem %s1, 24
      %v549 = vld [vmem:[%s548] sm:$0xff]
      %550 = vrot.lane.b32.xlu0 %v306, 118
      %v551 = vpop.permute.xlu0 %550
      %552 = vrot.lane.b32.xlu0 %v307, 118
      %v553 = vpop.permute.xlu0 %552
      %v557 = vsel %vm319, %v549, 0
      %559 = vmatprep.subr.mxu0 0.0
      %560 = vmatpush1.msra.mxu0 %v551
      %561 = vmatprep.subr.mxu0 0.0
      %562 = vmatpush1.msra.mxu0 %v553
      %563 = vmatprep.subr.mxu0 0.0
      %564 = vmatpush1.msra.mxu0 0.0
      %565 = vmatprep.subr.mxu0 0.0
      %566 = vmatpush1.msra.mxu0 0.0
      %567 = vmatprep.subr.mxu0 0.0
      %568 = vmatpush1.msra.mxu0 0.0
      %569 = vmatprep.subr.mxu0 0.0
      %570 = vmatpush1.msra.mxu0 0.0
      %571 = vmatprep.subr.mxu0 0.0
      %572 = vmatpush1.msra.mxu0 0.0
      %573 = vmatprep.subr.mxu0 0.0
      %574 = vmatpush1.msra.mxu0 0.0
      %575 = vmatprep.subr.mxu0 0.0
      %576 = vmatpush1.msra.mxu0 0.0
      %577 = vmatprep.subr.mxu0 0.0
      %578 = vmatpush1.msra.mxu0 0.0
      %579 = vmatprep.subr.mxu0 0.0
      %580 = vmatpush1.msra.mxu0 0.0
      %581 = vmatprep.subr.mxu0 0.0
      %582 = vmatpush1.msra.mxu0 0.0
      %583 = vmatprep.subr.mxu0 0.0
      %584 = vmatpush1.msra.mxu0 0.0
      %585 = vmatprep.subr.mxu0 0.0
      %586 = vmatpush1.msra.mxu0 0.0
      %587 = vmatprep.subr.mxu0 0.0
      %588 = vmatpush1.msra.mxu0 0.0
      %589 = vmatprep.subr.mxu0 0.0
      %590 = vmatpush1.msra.mxu0 0.0
      %591 = vmatprep.subr.mxu0 0.0
      %592 = vmatpush1.msra.mxu0 0.0
      %593 = vmatprep.subr.mxu0 0.0
      %594 = vmatpush1.msra.mxu0 0.0
      %595 = vmatprep.subr.mxu0 0.0
      %596 = vmatpush1.msra.mxu0 0.0
      %597 = vmatprep.subr.mxu0 0.0
      %598 = vmatpush1.msra.mxu0 0.0
      %599 = vmatprep.subr.mxu0 0.0
      %600 = vmatpush1.msra.mxu0 0.0
      %601 = vmatprep.subr.mxu0 0.0
      %602 = vmatpush1.msra.mxu0 0.0
      %603 = vmatprep.subr.mxu0 0.0
      %604 = vmatpush1.msra.mxu0 0.0
      %605 = vmatprep.subr.mxu0 0.0
      %606 = vmatpush1.msra.mxu0 0.0
      %607 = vmatprep.subr.mxu0 0.0
      %608 = vmatpush1.msra.mxu0 0.0
      %609 = vmatprep.subr.mxu0 0.0
      %610 = vmatpush1.msra.mxu0 0.0
      %611 = vmatprep.subr.mxu0 0.0
      %612 = vmatpush1.msra.mxu0 0.0
      %613 = vmatprep.subr.mxu0 0.0
      %614 = vmatpush1.msra.mxu0 0.0
      %615 = vmatprep.subr.mxu0 0.0
      %616 = vmatpush1.msra.mxu0 0.0
      %617 = vmatprep.subr.mxu0 0.0
      %618 = vmatpush1.msra.mxu0 0.0
      %619 = vmatprep.subr.mxu0 0.0
      %620 = vmatpush1.msra.mxu0 0.0
      %621 = vmatprep.subr.mxu0 0.0
      %622 = vmatpush1.msra.mxu0 0.0
      %623 = vmatprep.mubr.f32.mxu0 0.0
      %624 = vmatmul.mubr.f32.gmra.mrb[0].mxu0 %v557
      %v625 = vpop.f32.mrb[0].mxu0
      %v626 = vadd.f32 0.0, %v625
      %v627 = vpop.f32.mrb[0].mxu0
      %628 = vdwg.mxu0
      %v629 = vadd.f32 %v547, %v626
      %v630 = vmax.f32 %v629, 0.0
      %v631 = vld [vmem:[%s2] sm:$0xff]
      %v632 = vld [vmem:[%s2 + $0x8] sm:$0xff]
      %v633 = vld [vmem:[%s2 + $0x10] sm:$0xff]
      %v634 = vld [vmem:[%s2 + $0x18] sm:$0xff]
      %v635 = vld [vmem:[%s2 + $0x20] sm:$0xff]
      %v636 = vld [vmem:[%s2 + $0x28] sm:$0xff]
      %v637 = vld [vmem:[%s2 + $0x30] sm:$0xff]
      %v638 = vld [vmem:[%s2 + $0x38] sm:$0xff]
      %v639 = vld [vmem:[%s2 + $0x40] sm:$0xff]
      %v640 = vld [vmem:[%s2 + $0x48] sm:$0xff]
      %v641 = vld [vmem:[%s2 + $0x50] sm:$0xff]
      %v642 = vld [vmem:[%s2 + $0x58] sm:$0xff]
      %v643 = vld [vmem:[%s2 + $0x60] sm:$0xff]
      %v644 = vld [vmem:[%s2 + $0x68] sm:$0xff]
      %v645 = vld [vmem:[%s2 + $0x70] sm:$0xff]
      %v646 = vld [vmem:[%s2 + $0x78] sm:$0xff]
      %v647 = vld [vmem:[%s2 + $0x80] sm:$0xff]
      %v648 = vld [vmem:[%s2 + $0x88] sm:$0xff]
      %v649 = vld [vmem:[%s2 + $0x90] sm:$0xff]
      %v650 = vld [vmem:[%s2 + $0x98] sm:$0xff]
      %v651 = vld [vmem:[%s2 + $0xa0] sm:$0xff]
      %v652 = vld [vmem:[%s2 + $0xa8] sm:$0xff]
      %v653 = vld [vmem:[%s2 + $0xb0] sm:$0xff]
      %v654 = vld [vmem:[%s2 + $0xb8] sm:$0xff]
      %v655 = vld [vmem:[%s2 + $0xc0] sm:$0xff]
      %v656 = vld [vmem:[%s2 + $0xc8] sm:$0xff]
      %v657 = vld [vmem:[%s2 + $0xd0] sm:$0xff]
      %v658 = vld [vmem:[%s2 + $0xd8] sm:$0xff]
      %v659 = vld [vmem:[%s2 + $0xe0] sm:$0xff]
      %v660 = vld [vmem:[%s2 + $0xe8] sm:$0xff]
      %v661 = vld [vmem:[%s2 + $0xf0] sm:$0xff]
      %v662 = vld [vmem:[%s2 + $0xf8] sm:$0xff]
      %v663 = vld [vmem:[%s2 + $0x100] sm:$0xff]
      %v664 = vld [vmem:[%s2 + $0x108] sm:$0xff]
      %v665 = vld [vmem:[%s2 + $0x110] sm:$0xff]
      %v666 = vld [vmem:[%s2 + $0x118] sm:$0xff]
      %vm667 = vcmask 588800
      %v669 = vsel %vm667, %v630, 0
      %671 = vmatprep.subr.mxu0 %v632
      %672 = vmatpush1.msra.mxu0 %v631
      %673 = vmatprep.subr.mxu0 %v636
      %674 = vmatpush1.msra.mxu0 %v635
      %675 = vmatprep.subr.mxu0 %v640
      %676 = vmatpush1.msra.mxu0 %v639
      %677 = vmatprep.subr.mxu0 %v644
      %678 = vmatpush1.msra.mxu0 %v643
      %679 = vmatprep.subr.mxu0 %v648
      %680 = vmatpush1.msra.mxu0 %v647
      %681 = vmatprep.subr.mxu0 %v652
      %682 = vmatpush1.msra.mxu0 %v651
      %683 = vmatprep.subr.mxu0 %v656
      %684 = vmatpush1.msra.mxu0 %v655
      %685 = vmatprep.subr.mxu0 %v660
      %686 = vmatpush1.msra.mxu0 %v659
      %687 = vmatprep.subr.mxu0 %v664
      %688 = vmatpush1.msra.mxu0 %v663
      %689 = vmatprep.subr.mxu0 0.0
      %690 = vmatpush1.msra.mxu0 0.0
      %691 = vmatprep.subr.mxu0 0.0
      %692 = vmatpush1.msra.mxu0 0.0
      %693 = vmatprep.subr.mxu0 0.0
      %694 = vmatpush1.msra.mxu0 0.0
      %695 = vmatprep.subr.mxu0 0.0
      %696 = vmatpush1.msra.mxu0 0.0
      %697 = vmatprep.subr.mxu0 0.0
      %698 = vmatpush1.msra.mxu0 0.0
      %699 = vmatprep.subr.mxu0 0.0
      %700 = vmatpush1.msra.mxu0 0.0
      %701 = vmatprep.subr.mxu0 0.0
      %702 = vmatpush1.msra.mxu0 0.0
      %703 = vmatprep.subr.mxu0 0.0
      %704 = vmatpush1.msra.mxu0 0.0
      %705 = vmatprep.subr.mxu0 0.0
      %706 = vmatpush1.msra.mxu0 0.0
      %707 = vmatprep.subr.mxu0 0.0
      %708 = vmatpush1.msra.mxu0 0.0
      %709 = vmatprep.subr.mxu0 0.0
      %710 = vmatpush1.msra.mxu0 0.0
      %711 = vmatprep.subr.mxu0 0.0
      %712 = vmatpush1.msra.mxu0 0.0
      %713 = vmatprep.subr.mxu0 0.0
      %714 = vmatpush1.msra.mxu0 0.0
      %715 = vmatprep.subr.mxu0 0.0
      %716 = vmatpush1.msra.mxu0 0.0
      %717 = vmatprep.subr.mxu0 0.0
      %718 = vmatpush1.msra.mxu0 0.0
      %719 = vmatprep.subr.mxu0 0.0
      %720 = vmatpush1.msra.mxu0 0.0
      %721 = vmatprep.subr.mxu0 0.0
      %722 = vmatpush1.msra.mxu0 0.0
      %723 = vmatprep.subr.mxu0 0.0
      %724 = vmatpush1.msra.mxu0 0.0
      %725 = vmatprep.subr.mxu0 0.0
      %726 = vmatpush1.msra.mxu0 0.0
      %727 = vmatprep.subr.mxu0 0.0
      %728 = vmatpush1.msra.mxu0 0.0
      %729 = vmatprep.subr.mxu0 0.0
      %730 = vmatpush1.msra.mxu0 0.0
      %731 = vmatprep.subr.mxu0 0.0
      %732 = vmatpush1.msra.mxu0 0.0
      %733 = vmatprep.subr.mxu0 0.0
      %734 = vmatpush1.msra.mxu0 0.0
      %735 = vmatprep.mubr.f32.mxu0 0.0
      %736 = vmatmul.mubr.f32.gmra.mrb[0].mxu0 %v669
      %v737 = vpop.f32.mrb[0].mxu0
      %v738 = vadd.f32 0.0, %v737
      %v739 = vpop.f32.mrb[0].mxu0
      %v740 = vadd.f32 0.0, %v739
      %741 = vdwg.mxu0
      %742 = vmatprep.subr.mxu0 %v634
      %743 = vmatpush1.msra.mxu0 %v633
      %744 = vmatprep.subr.mxu0 %v638
      %745 = vmatpush1.msra.mxu0 %v637
      %746 = vmatprep.subr.mxu0 %v642
      %747 = vmatpush1.msra.mxu0 %v641
      %748 = vmatprep.subr.mxu0 %v646
      %749 = vmatpush1.msra.mxu0 %v645
      %750 = vmatprep.subr.mxu0 %v650
      %751 = vmatpush1.msra.mxu0 %v649
      %752 = vmatprep.subr.mxu0 %v654
      %753 = vmatpush1.msra.mxu0 %v653
      %754 = vmatprep.subr.mxu0 %v658
      %755 = vmatpush1.msra.mxu0 %v657
      %756 = vmatprep.subr.mxu0 %v662
      %757 = vmatpush1.msra.mxu0 %v661
      %758 = vmatprep.subr.mxu0 %v666
      %759 = vmatpush1.msra.mxu0 %v665
      %760 = vmatprep.subr.mxu0 0.0
      %761 = vmatpush1.msra.mxu0 0.0
      %762 = vmatprep.subr.mxu0 0.0
      %763 = vmatpush1.msra.mxu0 0.0
      %764 = vmatprep.subr.mxu0 0.0
      %765 = vmatpush1.msra.mxu0 0.0
      %766 = vmatprep.subr.mxu0 0.0
      %767 = vmatpush1.msra.mxu0 0.0
      %768 = vmatprep.subr.mxu0 0.0
      %769 = vmatpush1.msra.mxu0 0.0
      %770 = vmatprep.subr.mxu0 0.0
      %771 = vmatpush1.msra.mxu0 0.0
      %772 = vmatprep.subr.mxu0 0.0
      %773 = vmatpush1.msra.mxu0 0.0
      %774 = vmatprep.subr.mxu0 0.0
      %775 = vmatpush1.msra.mxu0 0.0
      %776 = vmatprep.subr.mxu0 0.0
      %777 = vmatpush1.msra.mxu0 0.0
      %778 = vmatprep.subr.mxu0 0.0
      %779 = vmatpush1.msra.mxu0 0.0
      %780 = vmatprep.subr.mxu0 0.0
      %781 = vmatpush1.msra.mxu0 0.0
      %782 = vmatprep.subr.mxu0 0.0
      %783 = vmatpush1.msra.mxu0 0.0
      %784 = vmatprep.subr.mxu0 0.0
      %785 = vmatpush1.msra.mxu0 0.0
      %786 = vmatprep.subr.mxu0 0.0
      %787 = vmatpush1.msra.mxu0 0.0
      %788 = vmatprep.subr.mxu0 0.0
      %789 = vmatpush1.msra.mxu0 0.0
      %790 = vmatprep.subr.mxu0 0.0
      %791 = vmatpush1.msra.mxu0 0.0
      %792 = vmatprep.subr.mxu0 0.0
      %793 = vmatpush1.msra.mxu0 0.0
      %794 = vmatprep.subr.mxu0 0.0
      %795 = vmatpush1.msra.mxu0 0.0
      %796 = vmatprep.subr.mxu0 0.0
      %797 = vmatpush1.msra.mxu0 0.0
      %798 = vmatprep.subr.mxu0 0.0
      %799 = vmatpush1.msra.mxu0 0.0
      %800 = vmatprep.subr.mxu0 0.0
      %801 = vmatpush1.msra.mxu0 0.0
      %802 = vmatprep.subr.mxu0 0.0
      %803 = vmatpush1.msra.mxu0 0.0
      %804 = vmatprep.subr.mxu0 0.0
      %805 = vmatpush1.msra.mxu0 0.0
      %806 = vmatprep.mubr.f32.mxu0 0.0
      %807 = vmatmul.mubr.f32.gmra.mrb[0].mxu0 %v669
      %v808 = vpop.f32.mrb[0].mxu0
      %v809 = vadd.f32 0.0, %v808
      %v810 = vpop.f32.mrb[0].mxu0
      %v811 = vadd.f32 0.0, %v810
      %812 = vdwg.mxu0
      %v813 = vld [vmem:[%s3] sm:$0xf]
      %s814 = scalar_lea.vmem %s3, 4
      %v815 = vld [vmem:[%s814] sm:$0xf]
      %819 = vrot.lane.b32.xlu0 %v738, 127
      %v820 = vpop.permute.xlu0 %819
      %821 = vrot.lane.b32.xlu0 %v740, 127
      %v822 = vpop.permute.xlu0 %821
      %823 = vrot.lane.b32.xlu0 %v809, 127
      %v824 = vpop.permute.xlu0 %823
      %vm825 = vcmask 1039360
      %v826 = vsel %vm825, %v820, %v822
      %v827 = vsel %vm825, %v822, %v824
      %vm831 = vcmask 64512
      %v833 = vsel %vm831, %v815, 0
      %835 = vmatprep.subr.mxu0 %v827
      %836 = vmatpush1.msra.mxu0 %v826
      %837 = vmatprep.subr.mxu0 0.0
      %838 = vmatpush1.msra.mxu0 0.0
      %839 = vmatprep.subr.mxu0 0.0
      %840 = vmatpush1.msra.mxu0 0.0
      %841 = vmatprep.subr.mxu0 0.0
      %842 = vmatpush1.msra.mxu0 0.0
      %843 = vmatprep.subr.mxu0 0.0
      %844 = vmatpush1.msra.mxu0 0.0
      %845 = vmatprep.subr.mxu0 0.0
      %846 = vmatpush1.msra.mxu0 0.0
      %847 = vmatprep.subr.mxu0 0.0
      %848 = vmatpush1.msra.mxu0 0.0
      %849 = vmatprep.subr.mxu0 0.0
      %850 = vmatpush1.msra.mxu0 0.0
      %851 = vmatprep.subr.mxu0 0.0
      %852 = vmatpush1.msra.mxu0 0.0
      %853 = vmatprep.subr.mxu0 0.0
      %854 = vmatpush1.msra.mxu0 0.0
      %855 = vmatprep.subr.mxu0 0.0
      %856 = vmatpush1.msra.mxu0 0.0
      %857 = vmatprep.subr.mxu0 0.0
      %858 = vmatpush1.msra.mxu0 0.0
      %859 = vmatprep.subr.mxu0 0.0
      %860 = vmatpush1.msra.mxu0 0.0
      %861 = vmatprep.subr.mxu0 0.0
      %862 = vmatpush1.msra.mxu0 0.0
      %863 = vmatprep.subr.mxu0 0.0
      %864 = vmatpush1.msra.mxu0 0.0
      %865 = vmatprep.subr.mxu0 0.0
      %866 = vmatpush1.msra.mxu0 0.0
      %867 = vmatprep.subr.mxu0 0.0
      %868 = vmatpush1.msra.mxu0 0.0
      %869 = vmatprep.subr.mxu0 0.0
      %870 = vmatpush1.msra.mxu0 0.0
      %871 = vmatprep.subr.mxu0 0.0
      %872 = vmatpush1.msra.mxu0 0.0
      %873 = vmatprep.subr.mxu0 0.0
      %874 = vmatpush1.msra.mxu0 0.0
      %875 = vmatprep.subr.mxu0 0.0
      %876 = vmatpush1.msra.mxu0 0.0
      %877 = vmatprep.subr.mxu0 0.0
      %878 = vmatpush1.msra.mxu0 0.0
      %879 = vmatprep.subr.mxu0 0.0
      %880 = vmatpush1.msra.mxu0 0.0
      %881 = vmatprep.subr.mxu0 0.0
      %882 = vmatpush1.msra.mxu0 0.0
      %883 = vmatprep.subr.mxu0 0.0
      %884 = vmatpush1.msra.mxu0 0.0
      %885 = vmatprep.subr.mxu0 0.0
      %886 = vmatpush1.msra.mxu0 0.0
      %887 = vmatprep.subr.mxu0 0.0
      %888 = vmatpush1.msra.mxu0 0.0
      %889 = vmatprep.subr.mxu0 0.0
      %890 = vmatpush1.msra.mxu0 0.0
      %891 = vmatprep.subr.mxu0 0.0
      %892 = vmatpush1.msra.mxu0 0.0
      %893 = vmatprep.subr.mxu0 0.0
      %894 = vmatpush1.msra.mxu0 0.0
      %895 = vmatprep.subr.mxu0 0.0
      %896 = vmatpush1.msra.mxu0 0.0
      %897 = vmatprep.subr.mxu0 0.0
      %898 = vmatpush1.msra.mxu0 0.0
      %899 = vmatprep.mubr.f32.mxu0 0.0
      %900 = vmatmul.mubr.f32.gmra.mrb[0].mxu0 %v833
      %v901 = vpop.f32.mrb[0].mxu0
      %v902 = vadd.f32 0.0, %v901
      %v903 = vpop.f32.mrb[0].mxu0
      %v904 = vadd.f32 0.0, %v903
      %905 = vdwg.mxu0
      %906 = vmatprep.subr.mxu0 0.0
      %907 = vmatpush1.msra.mxu0 %v824
      %908 = vmatprep.subr.mxu0 0.0
      %909 = vmatpush1.msra.mxu0 0.0
      %910 = vmatprep.subr.mxu0 0.0
      %911 = vmatpush1.msra.mxu0 0.0
      %912 = vmatprep.subr.mxu0 0.0
      %913 = vmatpush1.msra.mxu0 0.0
      %914 = vmatprep.subr.mxu0 0.0
      %915 = vmatpush1.msra.mxu0 0.0
      %916 = vmatprep.subr.mxu0 0.0
      %917 = vmatpush1.msra.mxu0 0.0
      %918 = vmatprep.subr.mxu0 0.0
      %919 = vmatpush1.msra.mxu0 0.0
      %920 = vmatprep.subr.mxu0 0.0
      %921 = vmatpush1.msra.mxu0 0.0
      %922 = vmatprep.subr.mxu0 0.0
      %923 = vmatpush1.msra.mxu0 0.0
      %924 = vmatprep.subr.mxu0 0.0
      %925 = vmatpush1.msra.mxu0 0.0
      %926 = vmatprep.subr.mxu0 0.0
      %927 = vmatpush1.msra.mxu0 0.0
      %928 = vmatprep.subr.mxu0 0.0
      %929 = vmatpush1.msra.mxu0 0.0
      %930 = vmatprep.subr.mxu0 0.0
      %931 = vmatpush1.msra.mxu0 0.0
      %932 = vmatprep.subr.mxu0 0.0
      %933 = vmatpush1.msra.mxu0 0.0
      %934 = vmatprep.subr.mxu0 0.0
      %935 = vmatpush1.msra.mxu0 0.0
      %936 = vmatprep.subr.mxu0 0.0
      %937 = vmatpush1.msra.mxu0 0.0
      %938 = vmatprep.subr.mxu0 0.0
      %939 = vmatpush1.msra.mxu0 0.0
      %940 = vmatprep.subr.mxu0 0.0
      %941 = vmatpush1.msra.mxu0 0.0
      %942 = vmatprep.subr.mxu0 0.0
      %943 = vmatpush1.msra.mxu0 0.0
      %944 = vmatprep.subr.mxu0 0.0
      %945 = vmatpush1.msra.mxu0 0.0
      %946 = vmatprep.subr.mxu0 0.0
      %947 = vmatpush1.msra.mxu0 0.0
      %948 = vmatprep.subr.mxu0 0.0
      %949 = vmatpush1.msra.mxu0 0.0
      %950 = vmatprep.subr.mxu0 0.0
      %951 = vmatpush1.msra.mxu0 0.0
      %952 = vmatprep.subr.mxu0 0.0
      %953 = vmatpush1.msra.mxu0 0.0
      %954 = vmatprep.subr.mxu0 0.0
      %955 = vmatpush1.msra.mxu0 0.0
      %956 = vmatprep.subr.mxu0 0.0
      %957 = vmatpush1.msra.mxu0 0.0
      %958 = vmatprep.subr.mxu0 0.0
      %959 = vmatpush1.msra.mxu0 0.0
      %960 = vmatprep.subr.mxu0 0.0
      %961 = vmatpush1.msra.mxu0 0.0
      %962 = vmatprep.subr.mxu0 0.0
      %963 = vmatpush1.msra.mxu0 0.0
      %964 = vmatprep.subr.mxu0 0.0
      %965 = vmatpush1.msra.mxu0 0.0
      %966 = vmatprep.subr.mxu0 0.0
      %967 = vmatpush1.msra.mxu0 0.0
      %968 = vmatprep.subr.mxu0 0.0
      %969 = vmatpush1.msra.mxu0 0.0
      %970 = vmatprep.mubr.f32.mxu0 0.0
      %971 = vmatmul.mubr.f32.gmra.mrb[0].mxu0 %v833
      %v972 = vpop.f32.mrb[0].mxu0
      %v973 = vadd.f32 0.0, %v972
      %v974 = vpop.f32.mrb[0].mxu0
      %975 = vdwg.mxu0
      %v977 = vsel %vm831, %v813, 0
      %979 = vmatprep.subr.mxu0 %v740
      %980 = vmatpush1.msra.mxu0 %v738
      %981 = vmatprep.subr.mxu0 0.0
      %982 = vmatpush1.msra.mxu0 0.0
      %983 = vmatprep.subr.mxu0 0.0
      %984 = vmatpush1.msra.mxu0 0.0
      %985 = vmatprep.subr.mxu0 0.0
      %986 = vmatpush1.msra.mxu0 0.0
      %987 = vmatprep.subr.mxu0 0.0
      %988 = vmatpush1.msra.mxu0 0.0
      %989 = vmatprep.subr.mxu0 0.0
      %990 = vmatpush1.msra.mxu0 0.0
      %991 = vmatprep.subr.mxu0 0.0
      %992 = vmatpush1.msra.mxu0 0.0
      %993 = vmatprep.subr.mxu0 0.0
      %994 = vmatpush1.msra.mxu0 0.0
      %995 = vmatprep.subr.mxu0 0.0
      %996 = vmatpush1.msra.mxu0 0.0
      %997 = vmatprep.subr.mxu0 0.0
      %998 = vmatpush1.msra.mxu0 0.0
      %999 = vmatprep.subr.mxu0 0.0
      %1000 = vmatpush1.msra.mxu0 0.0
      %1001 = vmatprep.subr.mxu0 0.0
      %1002 = vmatpush1.msra.mxu0 0.0
      %1003 = vmatprep.subr.mxu0 0.0
      %1004 = vmatpush1.msra.mxu0 0.0
      %1005 = vmatprep.subr.mxu0 0.0
      %1006 = vmatpush1.msra.mxu0 0.0
      %1007 = vmatprep.subr.mxu0 0.0
      %1008 = vmatpush1.msra.mxu0 0.0
      %1009 = vmatprep.subr.mxu0 0.0
      %1010 = vmatpush1.msra.mxu0 0.0
      %1011 = vmatprep.subr.mxu0 0.0
      %1012 = vmatpush1.msra.mxu0 0.0
      %1013 = vmatprep.subr.mxu0 0.0
      %1014 = vmatpush1.msra.mxu0 0.0
      %1015 = vmatprep.subr.mxu0 0.0
      %1016 = vmatpush1.msra.mxu0 0.0
      %1017 = vmatprep.subr.mxu0 0.0
      %1018 = vmatpush1.msra.mxu0 0.0
      %1019 = vmatprep.subr.mxu0 0.0
      %1020 = vmatpush1.msra.mxu0 0.0
      %1021 = vmatprep.subr.mxu0 0.0
      %1022 = vmatpush1.msra.mxu0 0.0
      %1023 = vmatprep.subr.mxu0 0.0
      %1024 = vmatpush1.msra.mxu0 0.0
      %1025 = vmatprep.subr.mxu0 0.0
      %1026 = vmatpush1.msra.mxu0 0.0
      %1027 = vmatprep.subr.mxu0 0.0
      %1028 = vmatpush1.msra.mxu0 0.0
      %1029 = vmatprep.subr.mxu0 0.0
      %1030 = vmatpush1.msra.mxu0 0.0
      %1031 = vmatprep.subr.mxu0 0.0
      %1032 = vmatpush1.msra.mxu0 0.0
      %1033 = vmatprep.subr.mxu0 0.0
      %1034 = vmatpush1.msra.mxu0 0.0
      %1035 = vmatprep.subr.mxu0 0.0
      %1036 = vmatpush1.msra.mxu0 0.0
      %1037 = vmatprep.subr.mxu0 0.0
      %1038 = vmatpush1.msra.mxu0 0.0
      %1039 = vmatprep.subr.mxu0 0.0
      %1040 = vmatpush1.msra.mxu0 0.0
      %1041 = vmatprep.subr.mxu0 0.0
      %1042 = vmatpush1.msra.mxu0 0.0
      %1043 = vmatprep.mubr.f32.mxu0 0.0
      %1044 = vmatmul.mubr.f32.gmra.mrb[0].mxu0 %v977
      %v1045 = vpop.f32.mrb[0].mxu0
      %v1046 = vadd.f32 %v902, %v1045
      %v1047 = vpop.f32.mrb[0].mxu0
      %v1048 = vadd.f32 %v904, %v1047
      %1049 = vdwg.mxu0
      %1050 = vmatprep.subr.mxu0 0.0
      %1051 = vmatpush1.msra.mxu0 %v809
      %1052 = vmatprep.subr.mxu0 0.0
      %1053 = vmatpush1.msra.mxu0 0.0
      %1054 = vmatprep.subr.mxu0 0.0
      %1055 = vmatpush1.msra.mxu0 0.0
      %1056 = vmatprep.subr.mxu0 0.0
      %1057 = vmatpush1.msra.mxu0 0.0
      %1058 = vmatprep.subr.mxu0 0.0
      %1059 = vmatpush1.msra.mxu0 0.0
      %1060 = vmatprep.subr.mxu0 0.0
      %1061 = vmatpush1.msra.mxu0 0.0
      %1062 = vmatprep.subr.mxu0 0.0
      %1063 = vmatpush1.msra.mxu0 0.0
      %1064 = vmatprep.subr.mxu0 0.0
      %1065 = vmatpush1.msra.mxu0 0.0
      %1066 = vmatprep.subr.mxu0 0.0
      %1067 = vmatpush1.msra.mxu0 0.0
      %1068 = vmatprep.subr.mxu0 0.0
      %1069 = vmatpush1.msra.mxu0 0.0
      %1070 = vmatprep.subr.mxu0 0.0
      %1071 = vmatpush1.msra.mxu0 0.0
      %1072 = vmatprep.subr.mxu0 0.0
      %1073 = vmatpush1.msra.mxu0 0.0
      %1074 = vmatprep.subr.mxu0 0.0
      %1075 = vmatpush1.msra.mxu0 0.0
      %1076 = vmatprep.subr.mxu0 0.0
      %1077 = vmatpush1.msra.mxu0 0.0
      %1078 = vmatprep.subr.mxu0 0.0
      %1079 = vmatpush1.msra.mxu0 0.0
      %1080 = vmatprep.subr.mxu0 0.0
      %1081 = vmatpush1.msra.mxu0 0.0
      %1082 = vmatprep.subr.mxu0 0.0
      %1083 = vmatpush1.msra.mxu0 0.0
      %1084 = vmatprep.subr.mxu0 0.0
      %1085 = vmatpush1.msra.mxu0 0.0
      %1086 = vmatprep.subr.mxu0 0.0
      %1087 = vmatpush1.msra.mxu0 0.0
      %1088 = vmatprep.subr.mxu0 0.0
      %1089 = vmatpush1.msra.mxu0 0.0
      %1090 = vmatprep.subr.mxu0 0.0
      %1091 = vmatpush1.msra.mxu0 0.0
      %1092 = vmatprep.subr.mxu0 0.0
      %1093 = vmatpush1.msra.mxu0 0.0
      %1094 = vmatprep.subr.mxu0 0.0
      %1095 = vmatpush1.msra.mxu0 0.0
      %1096 = vmatprep.subr.mxu0 0.0
      %1097 = vmatpush1.msra.mxu0 0.0
      %1098 = vmatprep.subr.mxu0 0.0
      %1099 = vmatpush1.msra.mxu0 0.0
      %1100 = vmatprep.subr.mxu0 0.0
      %1101 = vmatpush1.msra.mxu0 0.0
      %1102 = vmatprep.subr.mxu0 0.0
      %1103 = vmatpush1.msra.mxu0 0.0
      %1104 = vmatprep.subr.mxu0 0.0
      %1105 = vmatpush1.msra.mxu0 0.0
      %1106 = vmatprep.subr.mxu0 0.0
      %1107 = vmatpush1.msra.mxu0 0.0
      %1108 = vmatprep.subr.mxu0 0.0
      %1109 = vmatpush1.msra.mxu0 0.0
      %1110 = vmatprep.subr.mxu0 0.0
      %1111 = vmatpush1.msra.mxu0 0.0
      %1112 = vmatprep.subr.mxu0 0.0
      %1113 = vmatpush1.msra.mxu0 0.0
      %1114 = vmatprep.mubr.f32.mxu0 0.0
      %1115 = vmatmul.mubr.f32.gmra.mrb[0].mxu0 %v977
      %v1116 = vpop.f32.mrb[0].mxu0
      %v1117 = vadd.f32 %v973, %v1116
      %v1118 = vpop.f32.mrb[0].mxu0
      %1119 = vdwg.mxu0
      %s1120 = scalar_lea.vmem %s3, 8
      %v1121 = vld [vmem:[%s1120] sm:$0xf]
      %1122 = vrot.lane.b32.xlu0 %v738, 126
      %v1123 = vpop.permute.xlu0 %1122
      %1124 = vrot.lane.b32.xlu0 %v740, 126
      %v1125 = vpop.permute.xlu0 %1124
      %1126 = vrot.lane.b32.xlu0 %v809, 126
      %v1127 = vpop.permute.xlu0 %1126
      %vm1128 = vcmask 1031168
      %v1129 = vsel %vm1128, %v1123, %v1125
      %v1130 = vsel %vm1128, %v1125, %v1127
      %v1135 = vsel %vm831, %v1121, 0
      %1137 = vmatprep.subr.mxu0 %v1130
      %1138 = vmatpush1.msra.mxu0 %v1129
      %1139 = vmatprep.subr.mxu0 0.0
      %1140 = vmatpush1.msra.mxu0 0.0
      %1141 = vmatprep.subr.mxu0 0.0
      %1142 = vmatpush1.msra.mxu0 0.0
      %1143 = vmatprep.subr.mxu0 0.0
      %1144 = vmatpush1.msra.mxu0 0.0
      %1145 = vmatprep.subr.mxu0 0.0
      %1146 = vmatpush1.msra.mxu0 0.0
      %1147 = vmatprep.subr.mxu0 0.0
      %1148 = vmatpush1.msra.mxu0 0.0
      %1149 = vmatprep.subr.mxu0 0.0
      %1150 = vmatpush1.msra.mxu0 0.0
      %1151 = vmatprep.subr.mxu0 0.0
      %1152 = vmatpush1.msra.mxu0 0.0
      %1153 = vmatprep.subr.mxu0 0.0
      %1154 = vmatpush1.msra.mxu0 0.0
      %1155 = vmatprep.subr.mxu0 0.0
      %1156 = vmatpush1.msra.mxu0 0.0
      %1157 = vmatprep.subr.mxu0 0.0
      %1158 = vmatpush1.msra.mxu0 0.0
      %1159 = vmatprep.subr.mxu0 0.0
      %1160 = vmatpush1.msra.mxu0 0.0
      %1161 = vmatprep.subr.mxu0 0.0
      %1162 = vmatpush1.msra.mxu0 0.0
      %1163 = vmatprep.subr.mxu0 0.0
      %1164 = vmatpush1.msra.mxu0 0.0
      %1165 = vmatprep.subr.mxu0 0.0
      %1166 = vmatpush1.msra.mxu0 0.0
      %1167 = vmatprep.subr.mxu0 0.0
      %1168 = vmatpush1.msra.mxu0 0.0
      %1169 = vmatprep.subr.mxu0 0.0
      %1170 = vmatpush1.msra.mxu0 0.0
      %1171 = vmatprep.subr.mxu0 0.0
      %1172 = vmatpush1.msra.mxu0 0.0
      %1173 = vmatprep.subr.mxu0 0.0
      %1174 = vmatpush1.msra.mxu0 0.0
      %1175 = vmatprep.subr.mxu0 0.0
      %1176 = vmatpush1.msra.mxu0 0.0
      %1177 = vmatprep.subr.mxu0 0.0
      %1178 = vmatpush1.msra.mxu0 0.0
      %1179 = vmatprep.subr.mxu0 0.0
      %1180 = vmatpush1.msra.mxu0 0.0
      %1181 = vmatprep.subr.mxu0 0.0
      %1182 = vmatpush1.msra.mxu0 0.0
      %1183 = vmatprep.subr.mxu0 0.0
      %1184 = vmatpush1.msra.mxu0 0.0
      %1185 = vmatprep.subr.mxu0 0.0
      %1186 = vmatpush1.msra.mxu0 0.0
      %1187 = vmatprep.subr.mxu0 0.0
      %1188 = vmatpush1.msra.mxu0 0.0
      %1189 = vmatprep.subr.mxu0 0.0
      %1190 = vmatpush1.msra.mxu0 0.0
      %1191 = vmatprep.subr.mxu0 0.0
      %1192 = vmatpush1.msra.mxu0 0.0
      %1193 = vmatprep.subr.mxu0 0.0
      %1194 = vmatpush1.msra.mxu0 0.0
      %1195 = vmatprep.subr.mxu0 0.0
      %1196 = vmatpush1.msra.mxu0 0.0
      %1197 = vmatprep.subr.mxu0 0.0
      %1198 = vmatpush1.msra.mxu0 0.0
      %1199 = vmatprep.subr.mxu0 0.0
      %1200 = vmatpush1.msra.mxu0 0.0
      %1201 = vmatprep.mubr.f32.mxu0 0.0
      %1202 = vmatmul.mubr.f32.gmra.mrb[0].mxu0 %v1135
      %v1203 = vpop.f32.mrb[0].mxu0
      %v1204 = vadd.f32 0.0, %v1203
      %v1205 = vpop.f32.mrb[0].mxu0
      %v1206 = vadd.f32 0.0, %v1205
      %1207 = vdwg.mxu0
      %1208 = vmatprep.subr.mxu0 0.0
      %1209 = vmatpush1.msra.mxu0 %v1127
      %1210 = vmatprep.subr.mxu0 0.0
      %1211 = vmatpush1.msra.mxu0 0.0
      %1212 = vmatprep.subr.mxu0 0.0
      %1213 = vmatpush1.msra.mxu0 0.0
      %1214 = vmatprep.subr.mxu0 0.0
      %1215 = vmatpush1.msra.mxu0 0.0
      %1216 = vmatprep.subr.mxu0 0.0
      %1217 = vmatpush1.msra.mxu0 0.0
      %1218 = vmatprep.subr.mxu0 0.0
      %1219 = vmatpush1.msra.mxu0 0.0
      %1220 = vmatprep.subr.mxu0 0.0
      %1221 = vmatpush1.msra.mxu0 0.0
      %1222 = vmatprep.subr.mxu0 0.0
      %1223 = vmatpush1.msra.mxu0 0.0
      %1224 = vmatprep.subr.mxu0 0.0
      %1225 = vmatpush1.msra.mxu0 0.0
      %1226 = vmatprep.subr.mxu0 0.0
      %1227 = vmatpush1.msra.mxu0 0.0
      %1228 = vmatprep.subr.mxu0 0.0
      %1229 = vmatpush1.msra.mxu0 0.0
      %1230 = vmatprep.subr.mxu0 0.0
      %1231 = vmatpush1.msra.mxu0 0.0
      %1232 = vmatprep.subr.mxu0 0.0
      %1233 = vmatpush1.msra.mxu0 0.0
      %1234 = vmatprep.subr.mxu0 0.0
      %1235 = vmatpush1.msra.mxu0 0.0
      %1236 = vmatprep.subr.mxu0 0.0
      %1237 = vmatpush1.msra.mxu0 0.0
      %1238 = vmatprep.subr.mxu0 0.0
      %1239 = vmatpush1.msra.mxu0 0.0
      %1240 = vmatprep.subr.mxu0 0.0
      %1241 = vmatpush1.msra.mxu0 0.0
      %1242 = vmatprep.subr.mxu0 0.0
      %1243 = vmatpush1.msra.mxu0 0.0
      %1244 = vmatprep.subr.mxu0 0.0
      %1245 = vmatpush1.msra.mxu0 0.0
      %1246 = vmatprep.subr.mxu0 0.0
      %1247 = vmatpush1.msra.mxu0 0.0
      %1248 = vmatprep.subr.mxu0 0.0
      %1249 = vmatpush1.msra.mxu0 0.0
      %1250 = vmatprep.subr.mxu0 0.0
      %1251 = vmatpush1.msra.mxu0 0.0
      %1252 = vmatprep.subr.mxu0 0.0
      %1253 = vmatpush1.msra.mxu0 0.0
      %1254 = vmatprep.subr.mxu0 0.0
      %1255 = vmatpush1.msra.mxu0 0.0
      %1256 = vmatprep.subr.mxu0 0.0
      %1257 = vmatpush1.msra.mxu0 0.0
      %1258 = vmatprep.subr.mxu0 0.0
      %1259 = vmatpush1.msra.mxu0 0.0
      %1260 = vmatprep.subr.mxu0 0.0
      %1261 = vmatpush1.msra.mxu0 0.0
      %1262 = vmatprep.subr.mxu0 0.0
      %1263 = vmatpush1.msra.mxu0 0.0
      %1264 = vmatprep.subr.mxu0 0.0
      %1265 = vmatpush1.msra.mxu0 0.0
      %1266 = vmatprep.subr.mxu0 0.0
      %1267 = vmatpush1.msra.mxu0 0.0
      %1268 = vmatprep.subr.mxu0 0.0
      %1269 = vmatpush1.msra.mxu0 0.0
      %1270 = vmatprep.subr.mxu0 0.0
      %1271 = vmatpush1.msra.mxu0 0.0
      %1272 = vmatprep.mubr.f32.mxu0 0.0
      %1273 = vmatmul.mubr.f32.gmra.mrb[0].mxu0 %v1135
      %v1274 = vpop.f32.mrb[0].mxu0
      %v1275 = vadd.f32 0.0, %v1274
      %v1276 = vpop.f32.mrb[0].mxu0
      %1277 = vdwg.mxu0
      %v1278 = vadd.f32 %v1046, %v1204
      %v1279 = vadd.f32 %v1048, %v1206
      %v1280 = vadd.f32 %v1117, %v1275
      %s1281 = scalar_lea.vmem %s3, 12
      %v1282 = vld [vmem:[%s1281] sm:$0xf]
      %1283 = vrot.lane.b32.xlu0 %v738, 125
      %v1284 = vpop.permute.xlu0 %1283
      %1285 = vrot.lane.b32.xlu0 %v740, 125
      %v1286 = vpop.permute.xlu0 %1285
      %1287 = vrot.lane.b32.xlu0 %v809, 125
      %v1288 = vpop.permute.xlu0 %1287
      %vm1289 = vcmask 1022976
      %v1290 = vsel %vm1289, %v1284, %v1286
      %v1291 = vsel %vm1289, %v1286, %v1288
      %v1296 = vsel %vm831, %v1282, 0
      %1298 = vmatprep.subr.mxu0 %v1291
      %1299 = vmatpush1.msra.mxu0 %v1290
      %1300 = vmatprep.subr.mxu0 0.0
      %1301 = vmatpush1.msra.mxu0 0.0
      %1302 = vmatprep.subr.mxu0 0.0
      %1303 = vmatpush1.msra.mxu0 0.0
      %1304 = vmatprep.subr.mxu0 0.0
      %1305 = vmatpush1.msra.mxu0 0.0
      %1306 = vmatprep.subr.mxu0 0.0
      %1307 = vmatpush1.msra.mxu0 0.0
      %1308 = vmatprep.subr.mxu0 0.0
      %1309 = vmatpush1.msra.mxu0 0.0
      %1310 = vmatprep.subr.mxu0 0.0
      %1311 = vmatpush1.msra.mxu0 0.0
      %1312 = vmatprep.subr.mxu0 0.0
      %1313 = vmatpush1.msra.mxu0 0.0
      %1314 = vmatprep.subr.mxu0 0.0
      %1315 = vmatpush1.msra.mxu0 0.0
      %1316 = vmatprep.subr.mxu0 0.0
      %1317 = vmatpush1.msra.mxu0 0.0
      %1318 = vmatprep.subr.mxu0 0.0
      %1319 = vmatpush1.msra.mxu0 0.0
      %1320 = vmatprep.subr.mxu0 0.0
      %1321 = vmatpush1.msra.mxu0 0.0
      %1322 = vmatprep.subr.mxu0 0.0
      %1323 = vmatpush1.msra.mxu0 0.0
      %1324 = vmatprep.subr.mxu0 0.0
      %1325 = vmatpush1.msra.mxu0 0.0
      %1326 = vmatprep.subr.mxu0 0.0
      %1327 = vmatpush1.msra.mxu0 0.0
      %1328 = vmatprep.subr.mxu0 0.0
      %1329 = vmatpush1.msra.mxu0 0.0
      %1330 = vmatprep.subr.mxu0 0.0
      %1331 = vmatpush1.msra.mxu0 0.0
      %1332 = vmatprep.subr.mxu0 0.0
      %1333 = vmatpush1.msra.mxu0 0.0
      %1334 = vmatprep.subr.mxu0 0.0
      %1335 = vmatpush1.msra.mxu0 0.0
      %1336 = vmatprep.subr.mxu0 0.0
      %1337 = vmatpush1.msra.mxu0 0.0
      %1338 = vmatprep.subr.mxu0 0.0
      %1339 = vmatpush1.msra.mxu0 0.0
      %1340 = vmatprep.subr.mxu0 0.0
      %1341 = vmatpush1.msra.mxu0 0.0
      %1342 = vmatprep.subr.mxu0 0.0
      %1343 = vmatpush1.msra.mxu0 0.0
      %1344 = vmatprep.subr.mxu0 0.0
      %1345 = vmatpush1.msra.mxu0 0.0
      %1346 = vmatprep.subr.mxu0 0.0
      %1347 = vmatpush1.msra.mxu0 0.0
      %1348 = vmatprep.subr.mxu0 0.0
      %1349 = vmatpush1.msra.mxu0 0.0
      %1350 = vmatprep.subr.mxu0 0.0
      %1351 = vmatpush1.msra.mxu0 0.0
      %1352 = vmatprep.subr.mxu0 0.0
      %1353 = vmatpush1.msra.mxu0 0.0
      %1354 = vmatprep.subr.mxu0 0.0
      %1355 = vmatpush1.msra.mxu0 0.0
      %1356 = vmatprep.subr.mxu0 0.0
      %1357 = vmatpush1.msra.mxu0 0.0
      %1358 = vmatprep.subr.mxu0 0.0
      %1359 = vmatpush1.msra.mxu0 0.0
      %1360 = vmatprep.subr.mxu0 0.0
      %1361 = vmatpush1.msra.mxu0 0.0
      %1362 = vmatprep.mubr.f32.mxu0 0.0
      %1363 = vmatmul.mubr.f32.gmra.mrb[0].mxu0 %v1296
      %v1364 = vpop.f32.mrb[0].mxu0
      %v1365 = vadd.f32 0.0, %v1364
      %v1366 = vpop.f32.mrb[0].mxu0
      %v1367 = vadd.f32 0.0, %v1366
      %1368 = vdwg.mxu0
      %1369 = vmatprep.subr.mxu0 0.0
      %1370 = vmatpush1.msra.mxu0 %v1288
      %1371 = vmatprep.subr.mxu0 0.0
      %1372 = vmatpush1.msra.mxu0 0.0
      %1373 = vmatprep.subr.mxu0 0.0
      %1374 = vmatpush1.msra.mxu0 0.0
      %1375 = vmatprep.subr.mxu0 0.0
      %1376 = vmatpush1.msra.mxu0 0.0
      %1377 = vmatprep.subr.mxu0 0.0
      %1378 = vmatpush1.msra.mxu0 0.0
      %1379 = vmatprep.subr.mxu0 0.0
      %1380 = vmatpush1.msra.mxu0 0.0
      %1381 = vmatprep.subr.mxu0 0.0
      %1382 = vmatpush1.msra.mxu0 0.0
      %1383 = vmatprep.subr.mxu0 0.0
      %1384 = vmatpush1.msra.mxu0 0.0
      %1385 = vmatprep.subr.mxu0 0.0
      %1386 = vmatpush1.msra.mxu0 0.0
      %1387 = vmatprep.subr.mxu0 0.0
      %1388 = vmatpush1.msra.mxu0 0.0
      %1389 = vmatprep.subr.mxu0 0.0
      %1390 = vmatpush1.msra.mxu0 0.0
      %1391 = vmatprep.subr.mxu0 0.0
      %1392 = vmatpush1.msra.mxu0 0.0
      %1393 = vmatprep.subr.mxu0 0.0
      %1394 = vmatpush1.msra.mxu0 0.0
      %1395 = vmatprep.subr.mxu0 0.0
      %1396 = vmatpush1.msra.mxu0 0.0
      %1397 = vmatprep.subr.mxu0 0.0
      %1398 = vmatpush1.msra.mxu0 0.0
      %1399 = vmatprep.subr.mxu0 0.0
      %1400 = vmatpush1.msra.mxu0 0.0
      %1401 = vmatprep.subr.mxu0 0.0
      %1402 = vmatpush1.msra.mxu0 0.0
      %1403 = vmatprep.subr.mxu0 0.0
      %1404 = vmatpush1.msra.mxu0 0.0
      %1405 = vmatprep.subr.mxu0 0.0
      %1406 = vmatpush1.msra.mxu0 0.0
      %1407 = vmatprep.subr.mxu0 0.0
      %1408 = vmatpush1.msra.mxu0 0.0
      %1409 = vmatprep.subr.mxu0 0.0
      %1410 = vmatpush1.msra.mxu0 0.0
      %1411 = vmatprep.subr.mxu0 0.0
      %1412 = vmatpush1.msra.mxu0 0.0
      %1413 = vmatprep.subr.mxu0 0.0
      %1414 = vmatpush1.msra.mxu0 0.0
      %1415 = vmatprep.subr.mxu0 0.0
      %1416 = vmatpush1.msra.mxu0 0.0
      %1417 = vmatprep.subr.mxu0 0.0
      %1418 = vmatpush1.msra.mxu0 0.0
      %1419 = vmatprep.subr.mxu0 0.0
      %1420 = vmatpush1.msra.mxu0 0.0
      %1421 = vmatprep.subr.mxu0 0.0
      %1422 = vmatpush1.msra.mxu0 0.0
      %1423 = vmatprep.subr.mxu0 0.0
      %1424 = vmatpush1.msra.mxu0 0.0
      %1425 = vmatprep.subr.mxu0 0.0
      %1426 = vmatpush1.msra.mxu0 0.0
      %1427 = vmatprep.subr.mxu0 0.0
      %1428 = vmatpush1.msra.mxu0 0.0
      %1429 = vmatprep.subr.mxu0 0.0
      %1430 = vmatpush1.msra.mxu0 0.0
      %1431 = vmatprep.subr.mxu0 0.0
      %1432 = vmatpush1.msra.mxu0 0.0
      %1433 = vmatprep.mubr.f32.mxu0 0.0
      %1434 = vmatmul.mubr.f32.gmra.mrb[0].mxu0 %v1296
      %v1435 = vpop.f32.mrb[0].mxu0
      %v1436 = vadd.f32 0.0, %v1435
      %v1437 = vpop.f32.mrb[0].mxu0
      %1438 = vdwg.mxu0
      %v1439 = vadd.f32 %v1278, %v1365
      %v1440 = vadd.f32 %v1279, %v1367
      %v1441 = vadd.f32 %v1280, %v1436
      %s1442 = scalar_lea.vmem %s3, 16
      %v1443 = vld [vmem:[%s1442] sm:$0xf]
      %1444 = vrot.lane.b32.xlu0 %v738, 124
      %v1445 = vpop.permute.xlu0 %1444
      %1446 = vrot.lane.b32.xlu0 %v740, 124
      %v1447 = vpop.permute.xlu0 %1446
      %1448 = vrot.lane.b32.xlu0 %v809, 124
      %v1449 = vpop.permute.xlu0 %1448
      %vm1450 = vcmask 1014784
      %v1451 = vsel %vm1450, %v1445, %v1447
      %v1452 = vsel %vm1450, %v1447, %v1449
      %v1457 = vsel %vm831, %v1443, 0
      %1459 = vmatprep.subr.mxu0 %v1452
      %1460 = vmatpush1.msra.mxu0 %v1451
      %1461 = vmatprep.subr.mxu0 0.0
      %1462 = vmatpush1.msra.mxu0 0.0
      %1463 = vmatprep.subr.mxu0 0.0
      %1464 = vmatpush1.msra.mxu0 0.0
      %1465 = vmatprep.subr.mxu0 0.0
      %1466 = vmatpush1.msra.mxu0 0.0
      %1467 = vmatprep.subr.mxu0 0.0
      %1468 = vmatpush1.msra.mxu0 0.0
      %1469 = vmatprep.subr.mxu0 0.0
      %1470 = vmatpush1.msra.mxu0 0.0
      %1471 = vmatprep.subr.mxu0 0.0
      %1472 = vmatpush1.msra.mxu0 0.0
      %1473 = vmatprep.subr.mxu0 0.0
      %1474 = vmatpush1.msra.mxu0 0.0
      %1475 = vmatprep.subr.mxu0 0.0
      %1476 = vmatpush1.msra.mxu0 0.0
      %1477 = vmatprep.subr.mxu0 0.0
      %1478 = vmatpush1.msra.mxu0 0.0
      %1479 = vmatprep.subr.mxu0 0.0
      %1480 = vmatpush1.msra.mxu0 0.0
      %1481 = vmatprep.subr.mxu0 0.0
      %1482 = vmatpush1.msra.mxu0 0.0
      %1483 = vmatprep.subr.mxu0 0.0
      %1484 = vmatpush1.msra.mxu0 0.0
      %1485 = vmatprep.subr.mxu0 0.0
      %1486 = vmatpush1.msra.mxu0 0.0
      %1487 = vmatprep.subr.mxu0 0.0
      %1488 = vmatpush1.msra.mxu0 0.0
      %1489 = vmatprep.subr.mxu0 0.0
      %1490 = vmatpush1.msra.mxu0 0.0
      %1491 = vmatprep.subr.mxu0 0.0
      %1492 = vmatpush1.msra.mxu0 0.0
      %1493 = vmatprep.subr.mxu0 0.0
      %1494 = vmatpush1.msra.mxu0 0.0
      %1495 = vmatprep.subr.mxu0 0.0
      %1496 = vmatpush1.msra.mxu0 0.0
      %1497 = vmatprep.subr.mxu0 0.0
      %1498 = vmatpush1.msra.mxu0 0.0
      %1499 = vmatprep.subr.mxu0 0.0
      %1500 = vmatpush1.msra.mxu0 0.0
      %1501 = vmatprep.subr.mxu0 0.0
      %1502 = vmatpush1.msra.mxu0 0.0
      %1503 = vmatprep.subr.mxu0 0.0
      %1504 = vmatpush1.msra.mxu0 0.0
      %1505 = vmatprep.subr.mxu0 0.0
      %1506 = vmatpush1.msra.mxu0 0.0
      %1507 = vmatprep.subr.mxu0 0.0
      %1508 = vmatpush1.msra.mxu0 0.0
      %1509 = vmatprep.subr.mxu0 0.0
      %1510 = vmatpush1.msra.mxu0 0.0
      %1511 = vmatprep.subr.mxu0 0.0
      %1512 = vmatpush1.msra.mxu0 0.0
      %1513 = vmatprep.subr.mxu0 0.0
      %1514 = vmatpush1.msra.mxu0 0.0
      %1515 = vmatprep.subr.mxu0 0.0
      %1516 = vmatpush1.msra.mxu0 0.0
      %1517 = vmatprep.subr.mxu0 0.0
      %1518 = vmatpush1.msra.mxu0 0.0
      %1519 = vmatprep.subr.mxu0 0.0
      %1520 = vmatpush1.msra.mxu0 0.0
      %1521 = vmatprep.subr.mxu0 0.0
      %1522 = vmatpush1.msra.mxu0 0.0
      %1523 = vmatprep.mubr.f32.mxu0 0.0
      %1524 = vmatmul.mubr.f32.gmra.mrb[0].mxu0 %v1457
      %v1525 = vpop.f32.mrb[0].mxu0
      %v1526 = vadd.f32 0.0, %v1525
      %v1527 = vpop.f32.mrb[0].mxu0
      %v1528 = vadd.f32 0.0, %v1527
      %1529 = vdwg.mxu0
      %1530 = vmatprep.subr.mxu0 0.0
      %1531 = vmatpush1.msra.mxu0 %v1449
      %1532 = vmatprep.subr.mxu0 0.0
      %1533 = vmatpush1.msra.mxu0 0.0
      %1534 = vmatprep.subr.mxu0 0.0
      %1535 = vmatpush1.msra.mxu0 0.0
      %1536 = vmatprep.subr.mxu0 0.0
      %1537 = vmatpush1.msra.mxu0 0.0
      %1538 = vmatprep.subr.mxu0 0.0
      %1539 = vmatpush1.msra.mxu0 0.0
      %1540 = vmatprep.subr.mxu0 0.0
      %1541 = vmatpush1.msra.mxu0 0.0
      %1542 = vmatprep.subr.mxu0 0.0
      %1543 = vmatpush1.msra.mxu0 0.0
      %1544 = vmatprep.subr.mxu0 0.0
      %1545 = vmatpush1.msra.mxu0 0.0
      %1546 = vmatprep.subr.mxu0 0.0
      %1547 = vmatpush1.msra.mxu0 0.0
      %1548 = vmatprep.subr.mxu0 0.0
      %1549 = vmatpush1.msra.mxu0 0.0
      %1550 = vmatprep.subr.mxu0 0.0
      %1551 = vmatpush1.msra.mxu0 0.0
      %1552 = vmatprep.subr.mxu0 0.0
      %1553 = vmatpush1.msra.mxu0 0.0
      %1554 = vmatprep.subr.mxu0 0.0
      %1555 = vmatpush1.msra.mxu0 0.0
      %1556 = vmatprep.subr.mxu0 0.0
      %1557 = vmatpush1.msra.mxu0 0.0
      %1558 = vmatprep.subr.mxu0 0.0
      %1559 = vmatpush1.msra.mxu0 0.0
      %1560 = vmatprep.subr.mxu0 0.0
      %1561 = vmatpush1.msra.mxu0 0.0
      %1562 = vmatprep.subr.mxu0 0.0
      %1563 = vmatpush1.msra.mxu0 0.0
      %1564 = vmatprep.subr.mxu0 0.0
      %1565 = vmatpush1.msra.mxu0 0.0
      %1566 = vmatprep.subr.mxu0 0.0
      %1567 = vmatpush1.msra.mxu0 0.0
      %1568 = vmatprep.subr.mxu0 0.0
      %1569 = vmatpush1.msra.mxu0 0.0
      %1570 = vmatprep.subr.mxu0 0.0
      %1571 = vmatpush1.msra.mxu0 0.0
      %1572 = vmatprep.subr.mxu0 0.0
      %1573 = vmatpush1.msra.mxu0 0.0
      %1574 = vmatprep.subr.mxu0 0.0
      %1575 = vmatpush1.msra.mxu0 0.0
      %1576 = vmatprep.subr.mxu0 0.0
      %1577 = vmatpush1.msra.mxu0 0.0
      %1578 = vmatprep.subr.mxu0 0.0
      %1579 = vmatpush1.msra.mxu0 0.0
      %1580 = vmatprep.subr.mxu0 0.0
      %1581 = vmatpush1.msra.mxu0 0.0
      %1582 = vmatprep.subr.mxu0 0.0
      %1583 = vmatpush1.msra.mxu0 0.0
      %1584 = vmatprep.subr.mxu0 0.0
      %1585 = vmatpush1.msra.mxu0 0.0
      %1586 = vmatprep.subr.mxu0 0.0
      %1587 = vmatpush1.msra.mxu0 0.0
      %1588 = vmatprep.subr.mxu0 0.0
      %1589 = vmatpush1.msra.mxu0 0.0
      %1590 = vmatprep.subr.mxu0 0.0
      %1591 = vmatpush1.msra.mxu0 0.0
      %1592 = vmatprep.subr.mxu0 0.0
      %1593 = vmatpush1.msra.mxu0 0.0
      %1594 = vmatprep.mubr.f32.mxu0 0.0
      %1595 = vmatmul.mubr.f32.gmra.mrb[0].mxu0 %v1457
      %v1596 = vpop.f32.mrb[0].mxu0
      %v1597 = vadd.f32 0.0, %v1596
      %v1598 = vpop.f32.mrb[0].mxu0
      %1599 = vdwg.mxu0
      %v1600 = vadd.f32 %v1439, %v1526
      %v1601 = vadd.f32 %v1440, %v1528
      %v1602 = vadd.f32 %v1441, %v1597
      %s1603 = scalar_lea.vmem %s3, 20
      %v1604 = vld [vmem:[%s1603] sm:$0xf]
      %1605 = vrot.lane.b32.xlu0 %v738, 108
      %v1606 = vpop.permute.xlu0 %1605
      %1607 = vrot.lane.b32.xlu0 %v740, 108
      %v1608 = vpop.permute.xlu0 %1607
      %1609 = vrot.lane.b32.xlu0 %v809, 108
      %v1610 = vpop.permute.xlu0 %1609
      %vm1611 = vcmask 883712
      %v1612 = vsel %vm1611, %v1606, %v1608
      %v1613 = vsel %vm1611, %v1608, %v1610
      %v1618 = vsel %vm831, %v1604, 0
      %1620 = vmatprep.subr.mxu0 %v1613
      %1621 = vmatpush1.msra.mxu0 %v1612
      %1622 = vmatprep.subr.mxu0 0.0
      %1623 = vmatpush1.msra.mxu0 0.0
      %1624 = vmatprep.subr.mxu0 0.0
      %1625 = vmatpush1.msra.mxu0 0.0
      %1626 = vmatprep.subr.mxu0 0.0
      %1627 = vmatpush1.msra.mxu0 0.0
      %1628 = vmatprep.subr.mxu0 0.0
      %1629 = vmatpush1.msra.mxu0 0.0
      %1630 = vmatprep.subr.mxu0 0.0
      %1631 = vmatpush1.msra.mxu0 0.0
      %1632 = vmatprep.subr.mxu0 0.0
      %1633 = vmatpush1.msra.mxu0 0.0
      %1634 = vmatprep.subr.mxu0 0.0
      %1635 = vmatpush1.msra.mxu0 0.0
      %1636 = vmatprep.subr.mxu0 0.0
      %1637 = vmatpush1.msra.mxu0 0.0
      %1638 = vmatprep.subr.mxu0 0.0
      %1639 = vmatpush1.msra.mxu0 0.0
      %1640 = vmatprep.subr.mxu0 0.0
      %1641 = vmatpush1.msra.mxu0 0.0
      %1642 = vmatprep.subr.mxu0 0.0
      %1643 = vmatpush1.msra.mxu0 0.0
      %1644 = vmatprep.subr.mxu0 0.0
      %1645 = vmatpush1.msra.mxu0 0.0
      %1646 = vmatprep.subr.mxu0 0.0
      %1647 = vmatpush1.msra.mxu0 0.0
      %1648 = vmatprep.subr.mxu0 0.0
      %1649 = vmatpush1.msra.mxu0 0.0
      %1650 = vmatprep.subr.mxu0 0.0
      %1651 = vmatpush1.msra.mxu0 0.0
      %1652 = vmatprep.subr.mxu0 0.0
      %1653 = vmatpush1.msra.mxu0 0.0
      %1654 = vmatprep.subr.mxu0 0.0
      %1655 = vmatpush1.msra.mxu0 0.0
      %1656 = vmatprep.subr.mxu0 0.0
      %1657 = vmatpush1.msra.mxu0 0.0
      %1658 = vmatprep.subr.mxu0 0.0
      %1659 = vmatpush1.msra.mxu0 0.0
      %1660 = vmatprep.subr.mxu0 0.0
      %1661 = vmatpush1.msra.mxu0 0.0
      %1662 = vmatprep.subr.mxu0 0.0
      %1663 = vmatpush1.msra.mxu0 0.0
      %1664 = vmatprep.subr.mxu0 0.0
      %1665 = vmatpush1.msra.mxu0 0.0
      %1666 = vmatprep.subr.mxu0 0.0
      %1667 = vmatpush1.msra.mxu0 0.0
      %1668 = vmatprep.subr.mxu0 0.0
      %1669 = vmatpush1.msra.mxu0 0.0
      %1670 = vmatprep.subr.mxu0 0.0
      %1671 = vmatpush1.msra.mxu0 0.0
      %1672 = vmatprep.subr.mxu0 0.0
      %1673 = vmatpush1.msra.mxu0 0.0
      %1674 = vmatprep.subr.mxu0 0.0
      %1675 = vmatpush1.msra.mxu0 0.0
      %1676 = vmatprep.subr.mxu0 0.0
      %1677 = vmatpush1.msra.mxu0 0.0
      %1678 = vmatprep.subr.mxu0 0.0
      %1679 = vmatpush1.msra.mxu0 0.0
      %1680 = vmatprep.subr.mxu0 0.0
      %1681 = vmatpush1.msra.mxu0 0.0
      %1682 = vmatprep.subr.mxu0 0.0
      %1683 = vmatpush1.msra.mxu0 0.0
      %1684 = vmatprep.mubr.f32.mxu0 0.0
      %1685 = vmatmul.mubr.f32.gmra.mrb[0].mxu0 %v1618
      %v1686 = vpop.f32.mrb[0].mxu0
      %v1687 = vadd.f32 0.0, %v1686
      %v1688 = vpop.f32.mrb[0].mxu0
      %v1689 = vadd.f32 0.0, %v1688
      %1690 = vdwg.mxu0
      %1691 = vmatprep.subr.mxu0 0.0
      %1692 = vmatpush1.msra.mxu0 %v1610
      %1693 = vmatprep.subr.mxu0 0.0
      %1694 = vmatpush1.msra.mxu0 0.0
      %1695 = vmatprep.subr.mxu0 0.0
      %1696 = vmatpush1.msra.mxu0 0.0
      %1697 = vmatprep.subr.mxu0 0.0
      %1698 = vmatpush1.msra.mxu0 0.0
      %1699 = vmatprep.subr.mxu0 0.0
      %1700 = vmatpush1.msra.mxu0 0.0
      %1701 = vmatprep.subr.mxu0 0.0
      %1702 = vmatpush1.msra.mxu0 0.0
      %1703 = vmatprep.subr.mxu0 0.0
      %1704 = vmatpush1.msra.mxu0 0.0
      %1705 = vmatprep.subr.mxu0 0.0
      %1706 = vmatpush1.msra.mxu0 0.0
      %1707 = vmatprep.subr.mxu0 0.0
      %1708 = vmatpush1.msra.mxu0 0.0
      %1709 = vmatprep.subr.mxu0 0.0
      %1710 = vmatpush1.msra.mxu0 0.0
      %1711 = vmatprep.subr.mxu0 0.0
      %1712 = vmatpush1.msra.mxu0 0.0
      %1713 = vmatprep.subr.mxu0 0.0
      %1714 = vmatpush1.msra.mxu0 0.0
      %1715 = vmatprep.subr.mxu0 0.0
      %1716 = vmatpush1.msra.mxu0 0.0
      %1717 = vmatprep.subr.mxu0 0.0
      %1718 = vmatpush1.msra.mxu0 0.0
      %1719 = vmatprep.subr.mxu0 0.0
      %1720 = vmatpush1.msra.mxu0 0.0
      %1721 = vmatprep.subr.mxu0 0.0
      %1722 = vmatpush1.msra.mxu0 0.0
      %1723 = vmatprep.subr.mxu0 0.0
      %1724 = vmatpush1.msra.mxu0 0.0
      %1725 = vmatprep.subr.mxu0 0.0
      %1726 = vmatpush1.msra.mxu0 0.0
      %1727 = vmatprep.subr.mxu0 0.0
      %1728 = vmatpush1.msra.mxu0 0.0
      %1729 = vmatprep.subr.mxu0 0.0
      %1730 = vmatpush1.msra.mxu0 0.0
      %1731 = vmatprep.subr.mxu0 0.0
      %1732 = vmatpush1.msra.mxu0 0.0
      %1733 = vmatprep.subr.mxu0 0.0
      %1734 = vmatpush1.msra.mxu0 0.0
      %1735 = vmatprep.subr.mxu0 0.0
      %1736 = vmatpush1.msra.mxu0 0.0
      %1737 = vmatprep.subr.mxu0 0.0
      %1738 = vmatpush1.msra.mxu0 0.0
      %1739 = vmatprep.subr.mxu0 0.0
      %1740 = vmatpush1.msra.mxu0 0.0
      %1741 = vmatprep.subr.mxu0 0.0
      %1742 = vmatpush1.msra.mxu0 0.0
      %1743 = vmatprep.subr.mxu0 0.0
      %1744 = vmatpush1.msra.mxu0 0.0
      %1745 = vmatprep.subr.mxu0 0.0
      %1746 = vmatpush1.msra.mxu0 0.0
      %1747 = vmatprep.subr.mxu0 0.0
      %1748 = vmatpush1.msra.mxu0 0.0
      %1749 = vmatprep.subr.mxu0 0.0
      %1750 = vmatpush1.msra.mxu0 0.0
      %1751 = vmatprep.subr.mxu0 0.0
      %1752 = vmatpush1.msra.mxu0 0.0
      %1753 = vmatprep.subr.mxu0 0.0
      %1754 = vmatpush1.msra.mxu0 0.0
      %1755 = vmatprep.mubr.f32.mxu0 0.0
      %1756 = vmatmul.mubr.f32.gmra.mrb[0].mxu0 %v1618
      %v1757 = vpop.f32.mrb[0].mxu0
      %v1758 = vadd.f32 0.0, %v1757
      %v1759 = vpop.f32.mrb[0].mxu0
      %1760 = vdwg.mxu0
      %v1761 = vadd.f32 %v1600, %v1687
      %v1762 = vadd.f32 %v1601, %v1689
      %v1763 = vadd.f32 %v1602, %v1758
      %s1764 = scalar_lea.vmem %s3, 24
      %v1765 = vld [vmem:[%s1764] sm:$0xf]
      %1766 = vrot.lane.b32.xlu0 %v738, 107
      %v1767 = vpop.permute.xlu0 %1766
      %1768 = vrot.lane.b32.xlu0 %v740, 107
      %v1769 = vpop.permute.xlu0 %1768
      %1770 = vrot.lane.b32.xlu0 %v809, 107
      %v1771 = vpop.permute.xlu0 %1770
      %vm1772 = vcmask 875520
      %v1773 = vsel %vm1772, %v1767, %v1769
      %v1774 = vsel %vm1772, %v1769, %v1771
      %v1779 = vsel %vm831, %v1765, 0
      %1781 = vmatprep.subr.mxu0 %v1774
      %1782 = vmatpush1.msra.mxu0 %v1773
      %1783 = vmatprep.subr.mxu0 0.0
      %1784 = vmatpush1.msra.mxu0 0.0
      %1785 = vmatprep.subr.mxu0 0.0
      %1786 = vmatpush1.msra.mxu0 0.0
      %1787 = vmatprep.subr.mxu0 0.0
      %1788 = vmatpush1.msra.mxu0 0.0
      %1789 = vmatprep.subr.mxu0 0.0
      %1790 = vmatpush1.msra.mxu0 0.0
      %1791 = vmatprep.subr.mxu0 0.0
      %1792 = vmatpush1.msra.mxu0 0.0
      %1793 = vmatprep.subr.mxu0 0.0
      %1794 = vmatpush1.msra.mxu0 0.0
      %1795 = vmatprep.subr.mxu0 0.0
      %1796 = vmatpush1.msra.mxu0 0.0
      %1797 = vmatprep.subr.mxu0 0.0
      %1798 = vmatpush1.msra.mxu0 0.0
      %1799 = vmatprep.subr.mxu0 0.0
      %1800 = vmatpush1.msra.mxu0 0.0
      %1801 = vmatprep.subr.mxu0 0.0
      %1802 = vmatpush1.msra.mxu0 0.0
      %1803 = vmatprep.subr.mxu0 0.0
      %1804 = vmatpush1.msra.mxu0 0.0
      %1805 = vmatprep.subr.mxu0 0.0
      %1806 = vmatpush1.msra.mxu0 0.0
      %1807 = vmatprep.subr.mxu0 0.0
      %1808 = vmatpush1.msra.mxu0 0.0
      %1809 = vmatprep.subr.mxu0 0.0
      %1810 = vmatpush1.msra.mxu0 0.0
      %1811 = vmatprep.subr.mxu0 0.0
      %1812 = vmatpush1.msra.mxu0 0.0
      %1813 = vmatprep.subr.mxu0 0.0
      %1814 = vmatpush1.msra.mxu0 0.0
      %1815 = vmatprep.subr.mxu0 0.0
      %1816 = vmatpush1.msra.mxu0 0.0
      %1817 = vmatprep.subr.mxu0 0.0
      %1818 = vmatpush1.msra.mxu0 0.0
      %1819 = vmatprep.subr.mxu0 0.0
      %1820 = vmatpush1.msra.mxu0 0.0
      %1821 = vmatprep.subr.mxu0 0.0
      %1822 = vmatpush1.msra.mxu0 0.0
      %1823 = vmatprep.subr.mxu0 0.0
      %1824 = vmatpush1.msra.mxu0 0.0
      %1825 = vmatprep.subr.mxu0 0.0
      %1826 = vmatpush1.msra.mxu0 0.0
      %1827 = vmatprep.subr.mxu0 0.0
      %1828 = vmatpush1.msra.mxu0 0.0
      %1829 = vmatprep.subr.mxu0 0.0
      %1830 = vmatpush1.msra.mxu0 0.0
      %1831 = vmatprep.subr.mxu0 0.0
      %1832 = vmatpush1.msra.mxu0 0.0
      %1833 = vmatprep.subr.mxu0 0.0
      %1834 = vmatpush1.msra.mxu0 0.0
      %1835 = vmatprep.subr.mxu0 0.0
      %1836 = vmatpush1.msra.mxu0 0.0
      %1837 = vmatprep.subr.mxu0 0.0
      %1838 = vmatpush1.msra.mxu0 0.0
      %1839 = vmatprep.subr.mxu0 0.0
      %1840 = vmatpush1.msra.mxu0 0.0
      %1841 = vmatprep.subr.mxu0 0.0
      %1842 = vmatpush1.msra.mxu0 0.0
      %1843 = vmatprep.subr.mxu0 0.0
      %1844 = vmatpush1.msra.mxu0 0.0
      %1845 = vmatprep.mubr.f32.mxu0 0.0
      %1846 = vmatmul.mubr.f32.gmra.mrb[0].mxu0 %v1779
      %v1847 = vpop.f32.mrb[0].mxu0
      %v1848 = vadd.f32 0.0, %v1847
      %v1849 = vpop.f32.mrb[0].mxu0
      %v1850 = vadd.f32 0.0, %v1849
      %1851 = vdwg.mxu0
      %1852 = vmatprep.subr.mxu0 0.0
      %1853 = vmatpush1.msra.mxu0 %v1771
      %1854 = vmatprep.subr.mxu0 0.0
      %1855 = vmatpush1.msra.mxu0 0.0
      %1856 = vmatprep.subr.mxu0 0.0
      %1857 = vmatpush1.msra.mxu0 0.0
      %1858 = vmatprep.subr.mxu0 0.0
      %1859 = vmatpush1.msra.mxu0 0.0
      %1860 = vmatprep.subr.mxu0 0.0
      %1861 = vmatpush1.msra.mxu0 0.0
      %1862 = vmatprep.subr.mxu0 0.0
      %1863 = vmatpush1.msra.mxu0 0.0
      %1864 = vmatprep.subr.mxu0 0.0
      %1865 = vmatpush1.msra.mxu0 0.0
      %1866 = vmatprep.subr.mxu0 0.0
      %1867 = vmatpush1.msra.mxu0 0.0
      %1868 = vmatprep.subr.mxu0 0.0
      %1869 = vmatpush1.msra.mxu0 0.0
      %1870 = vmatprep.subr.mxu0 0.0
      %1871 = vmatpush1.msra.mxu0 0.0
      %1872 = vmatprep.subr.mxu0 0.0
      %1873 = vmatpush1.msra.mxu0 0.0
      %1874 = vmatprep.subr.mxu0 0.0
      %1875 = vmatpush1.msra.mxu0 0.0
      %1876 = vmatprep.subr.mxu0 0.0
      %1877 = vmatpush1.msra.mxu0 0.0
      %1878 = vmatprep.subr.mxu0 0.0
      %1879 = vmatpush1.msra.mxu0 0.0
      %1880 = vmatprep.subr.mxu0 0.0
      %1881 = vmatpush1.msra.mxu0 0.0
      %1882 = vmatprep.subr.mxu0 0.0
      %1883 = vmatpush1.msra.mxu0 0.0
      %1884 = vmatprep.subr.mxu0 0.0
      %1885 = vmatpush1.msra.mxu0 0.0
      %1886 = vmatprep.subr.mxu0 0.0
      %1887 = vmatpush1.msra.mxu0 0.0
      %1888 = vmatprep.subr.mxu0 0.0
      %1889 = vmatpush1.msra.mxu0 0.0
      %1890 = vmatprep.subr.mxu0 0.0
      %1891 = vmatpush1.msra.mxu0 0.0
      %1892 = vmatprep.subr.mxu0 0.0
      %1893 = vmatpush1.msra.mxu0 0.0
      %1894 = vmatprep.subr.mxu0 0.0
      %1895 = vmatpush1.msra.mxu0 0.0
      %1896 = vmatprep.subr.mxu0 0.0
      %1897 = vmatpush1.msra.mxu0 0.0
      %1898 = vmatprep.subr.mxu0 0.0
      %1899 = vmatpush1.msra.mxu0 0.0
      %1900 = vmatprep.subr.mxu0 0.0
      %1901 = vmatpush1.msra.mxu0 0.0
      %1902 = vmatprep.subr.mxu0 0.0
      %1903 = vmatpush1.msra.mxu0 0.0
      %1904 = vmatprep.subr.mxu0 0.0
      %1905 = vmatpush1.msra.mxu0 0.0
      %1906 = vmatprep.subr.mxu0 0.0
      %1907 = vmatpush1.msra.mxu0 0.0
      %1908 = vmatprep.subr.mxu0 0.0
      %1909 = vmatpush1.msra.mxu0 0.0
      %1910 = vmatprep.subr.mxu0 0.0
      %1911 = vmatpush1.msra.mxu0 0.0
      %1912 = vmatprep.subr.mxu0 0.0
      %1913 = vmatpush1.msra.mxu0 0.0
      %1914 = vmatprep.subr.mxu0 0.0
      %1915 = vmatpush1.msra.mxu0 0.0
      %1916 = vmatprep.mubr.f32.mxu0 0.0
      %1917 = vmatmul.mubr.f32.gmra.mrb[0].mxu0 %v1779
      %v1918 = vpop.f32.mrb[0].mxu0
      %v1919 = vadd.f32 0.0, %v1918
      %v1920 = vpop.f32.mrb[0].mxu0
      %1921 = vdwg.mxu0
      %v1922 = vadd.f32 %v1761, %v1848
      %v1923 = vadd.f32 %v1762, %v1850
      %v1924 = vadd.f32 %v1763, %v1919
      %s1925 = scalar_lea.vmem %s3, 28
      %v1926 = vld [vmem:[%s1925] sm:$0xf]
      %1927 = vrot.lane.b32.xlu0 %v738, 106
      %v1928 = vpop.permute.xlu0 %1927
      %1929 = vrot.lane.b32.xlu0 %v740, 106
      %v1930 = vpop.permute.xlu0 %1929
      %1931 = vrot.lane.b32.xlu0 %v809, 106
      %v1932 = vpop.permute.xlu0 %1931
      %vm1933 = vcmask 867328
      %v1934 = vsel %vm1933, %v1928, %v1930
      %v1935 = vsel %vm1933, %v1930, %v1932
      %v1940 = vsel %vm831, %v1926, 0
      %1942 = vmatprep.subr.mxu0 %v1935
      %1943 = vmatpush1.msra.mxu0 %v1934
      %1944 = vmatprep.subr.mxu0 0.0
      %1945 = vmatpush1.msra.mxu0 0.0
      %1946 = vmatprep.subr.mxu0 0.0
      %1947 = vmatpush1.msra.mxu0 0.0
      %1948 = vmatprep.subr.mxu0 0.0
      %1949 = vmatpush1.msra.mxu0 0.0
      %1950 = vmatprep.subr.mxu0 0.0
      %1951 = vmatpush1.msra.mxu0 0.0
      %1952 = vmatprep.subr.mxu0 0.0
      %1953 = vmatpush1.msra.mxu0 0.0
      %1954 = vmatprep.subr.mxu0 0.0
      %1955 = vmatpush1.msra.mxu0 0.0
      %1956 = vmatprep.subr.mxu0 0.0
      %1957 = vmatpush1.msra.mxu0 0.0
      %1958 = vmatprep.subr.mxu0 0.0
      %1959 = vmatpush1.msra.mxu0 0.0
      %1960 = vmatprep.subr.mxu0 0.0
      %1961 = vmatpush1.msra.mxu0 0.0
      %1962 = vmatprep.subr.mxu0 0.0
      %1963 = vmatpush1.msra.mxu0 0.0
      %1964 = vmatprep.subr.mxu0 0.0
      %1965 = vmatpush1.msra.mxu0 0.0
      %1966 = vmatprep.subr.mxu0 0.0
      %1967 = vmatpush1.msra.mxu0 0.0
      %1968 = vmatprep.subr.mxu0 0.0
      %1969 = vmatpush1.msra.mxu0 0.0
      %1970 = vmatprep.subr.mxu0 0.0
      %1971 = vmatpush1.msra.mxu0 0.0
      %1972 = vmatprep.subr.mxu0 0.0
      %1973 = vmatpush1.msra.mxu0 0.0
      %1974 = vmatprep.subr.mxu0 0.0
      %1975 = vmatpush1.msra.mxu0 0.0
      %1976 = vmatprep.subr.mxu0 0.0
      %1977 = vmatpush1.msra.mxu0 0.0
      %1978 = vmatprep.subr.mxu0 0.0
      %1979 = vmatpush1.msra.mxu0 0.0
      %1980 = vmatprep.subr.mxu0 0.0
      %1981 = vmatpush1.msra.mxu0 0.0
      %1982 = vmatprep.subr.mxu0 0.0
      %1983 = vmatpush1.msra.mxu0 0.0
      %1984 = vmatprep.subr.mxu0 0.0
      %1985 = vmatpush1.msra.mxu0 0.0
      %1986 = vmatprep.subr.mxu0 0.0
      %1987 = vmatpush1.msra.mxu0 0.0
      %1988 = vmatprep.subr.mxu0 0.0
      %1989 = vmatpush1.msra.mxu0 0.0
      %1990 = vmatprep.subr.mxu0 0.0
      %1991 = vmatpush1.msra.mxu0 0.0
      %1992 = vmatprep.subr.mxu0 0.0
      %1993 = vmatpush1.msra.mxu0 0.0
      %1994 = vmatprep.subr.mxu0 0.0
      %1995 = vmatpush1.msra.mxu0 0.0
      %1996 = vmatprep.subr.mxu0 0.0
      %1997 = vmatpush1.msra.mxu0 0.0
      %1998 = vmatprep.subr.mxu0 0.0
      %1999 = vmatpush1.msra.mxu0 0.0
      %2000 = vmatprep.subr.mxu0 0.0
      %2001 = vmatpush1.msra.mxu0 0.0
      %2002 = vmatprep.subr.mxu0 0.0
      %2003 = vmatpush1.msra.mxu0 0.0
      %2004 = vmatprep.subr.mxu0 0.0
      %2005 = vmatpush1.msra.mxu0 0.0
      %2006 = vmatprep.mubr.f32.mxu0 0.0
      %2007 = vmatmul.mubr.f32.gmra.mrb[0].mxu0 %v1940
      %v2008 = vpop.f32.mrb[0].mxu0
      %v2009 = vadd.f32 0.0, %v2008
      %v2010 = vpop.f32.mrb[0].mxu0
      %v2011 = vadd.f32 0.0, %v2010
      %2012 = vdwg.mxu0
      %2013 = vmatprep.subr.mxu0 0.0
      %2014 = vmatpush1.msra.mxu0 %v1932
      %2015 = vmatprep.subr.mxu0 0.0
      %2016 = vmatpush1.msra.mxu0 0.0
      %2017 = vmatprep.subr.mxu0 0.0
      %2018 = vmatpush1.msra.mxu0 0.0
      %2019 = vmatprep.subr.mxu0 0.0
      %2020 = vmatpush1.msra.mxu0 0.0
      %2021 = vmatprep.subr.mxu0 0.0
      %2022 = vmatpush1.msra.mxu0 0.0
      %2023 = vmatprep.subr.mxu0 0.0
      %2024 = vmatpush1.msra.mxu0 0.0
      %2025 = vmatprep.subr.mxu0 0.0
      %2026 = vmatpush1.msra.mxu0 0.0
      %2027 = vmatprep.subr.mxu0 0.0
      %2028 = vmatpush1.msra.mxu0 0.0
      %2029 = vmatprep.subr.mxu0 0.0
      %2030 = vmatpush1.msra.mxu0 0.0
      %2031 = vmatprep.subr.mxu0 0.0
      %2032 = vmatpush1.msra.mxu0 0.0
      %2033 = vmatprep.subr.mxu0 0.0
      %2034 = vmatpush1.msra.mxu0 0.0
      %2035 = vmatprep.subr.mxu0 0.0
      %2036 = vmatpush1.msra.mxu0 0.0
      %2037 = vmatprep.subr.mxu0 0.0
      %2038 = vmatpush1.msra.mxu0 0.0
      %2039 = vmatprep.subr.mxu0 0.0
      %2040 = vmatpush1.msra.mxu0 0.0
      %2041 = vmatprep.subr.mxu0 0.0
      %2042 = vmatpush1.msra.mxu0 0.0
      %2043 = vmatprep.subr.mxu0 0.0
      %2044 = vmatpush1.msra.mxu0 0.0
      %2045 = vmatprep.subr.mxu0 0.0
      %2046 = vmatpush1.msra.mxu0 0.0
      %2047 = vmatprep.subr.mxu0 0.0
      %2048 = vmatpush1.msra.mxu0 0.0
      %2049 = vmatprep.subr.mxu0 0.0
      %2050 = vmatpush1.msra.mxu0 0.0
      %2051 = vmatprep.subr.mxu0 0.0
      %2052 = vmatpush1.msra.mxu0 0.0
      %2053 = vmatprep.subr.mxu0 0.0
      %2054 = vmatpush1.msra.mxu0 0.0
      %2055 = vmatprep.subr.mxu0 0.0
      %2056 = vmatpush1.msra.mxu0 0.0
      %2057 = vmatprep.subr.mxu0 0.0
      %2058 = vmatpush1.msra.mxu0 0.0
      %2059 = vmatprep.subr.mxu0 0.0
      %2060 = vmatpush1.msra.mxu0 0.0
      %2061 = vmatprep.subr.mxu0 0.0
      %2062 = vmatpush1.msra.mxu0 0.0
      %2063 = vmatprep.subr.mxu0 0.0
      %2064 = vmatpush1.msra.mxu0 0.0
      %2065 = vmatprep.subr.mxu0 0.0
      %2066 = vmatpush1.msra.mxu0 0.0
      %2067 = vmatprep.subr.mxu0 0.0
      %2068 = vmatpush1.msra.mxu0 0.0
      %2069 = vmatprep.subr.mxu0 0.0
      %2070 = vmatpush1.msra.mxu0 0.0
      %2071 = vmatprep.subr.mxu0 0.0
      %2072 = vmatpush1.msra.mxu0 0.0
      %2073 = vmatprep.subr.mxu0 0.0
      %2074 = vmatpush1.msra.mxu0 0.0
      %2075 = vmatprep.subr.mxu0 0.0
      %2076 = vmatpush1.msra.mxu0 0.0
      %2077 = vmatprep.mubr.f32.mxu0 0.0
      %2078 = vmatmul.mubr.f32.gmra.mrb[0].mxu0 %v1940
      %v2079 = vpop.f32.mrb[0].mxu0
      %v2080 = vadd.f32 0.0, %v2079
      %v2081 = vpop.f32.mrb[0].mxu0
      %2082 = vdwg.mxu0
      %v2083 = vadd.f32 %v1922, %v2009
      %v2084 = vadd.f32 %v1923, %v2011
      %v2085 = vadd.f32 %v1924, %v2080
      %s2086 = scalar_lea.vmem %s3, 32
      %v2087 = vld [vmem:[%s2086] sm:$0xf]
      %2088 = vrot.lane.b32.xlu0 %v738, 105
      %v2089 = vpop.permute.xlu0 %2088
      %2090 = vrot.lane.b32.xlu0 %v740, 105
      %v2091 = vpop.permute.xlu0 %2090
      %2092 = vrot.lane.b32.xlu0 %v809, 105
      %v2093 = vpop.permute.xlu0 %2092
      %vm2094 = vcmask 859136
      %v2095 = vsel %vm2094, %v2089, %v2091
      %v2096 = vsel %vm2094, %v2091, %v2093
      %v2101 = vsel %vm831, %v2087, 0
      %2103 = vmatprep.subr.mxu0 %v2096
      %2104 = vmatpush1.msra.mxu0 %v2095
      %2105 = vmatprep.subr.mxu0 0.0
      %2106 = vmatpush1.msra.mxu0 0.0
      %2107 = vmatprep.subr.mxu0 0.0
      %2108 = vmatpush1.msra.mxu0 0.0
      %2109 = vmatprep.subr.mxu0 0.0
      %2110 = vmatpush1.msra.mxu0 0.0
      %2111 = vmatprep.subr.mxu0 0.0
      %2112 = vmatpush1.msra.mxu0 0.0
      %2113 = vmatprep.subr.mxu0 0.0
      %2114 = vmatpush1.msra.mxu0 0.0
      %2115 = vmatprep.subr.mxu0 0.0
      %2116 = vmatpush1.msra.mxu0 0.0
      %2117 = vmatprep.subr.mxu0 0.0
      %2118 = vmatpush1.msra.mxu0 0.0
      %2119 = vmatprep.subr.mxu0 0.0
      %2120 = vmatpush1.msra.mxu0 0.0
      %2121 = vmatprep.subr.mxu0 0.0
      %2122 = vmatpush1.msra.mxu0 0.0
      %2123 = vmatprep.subr.mxu0 0.0
      %2124 = vmatpush1.msra.mxu0 0.0
      %2125 = vmatprep.subr.mxu0 0.0
      %2126 = vmatpush1.msra.mxu0 0.0
      %2127 = vmatprep.subr.mxu0 0.0
      %2128 = vmatpush1.msra.mxu0 0.0
      %2129 = vmatprep.subr.mxu0 0.0
      %2130 = vmatpush1.msra.mxu0 0.0
      %2131 = vmatprep.subr.mxu0 0.0
      %2132 = vmatpush1.msra.mxu0 0.0
      %2133 = vmatprep.subr.mxu0 0.0
      %2134 = vmatpush1.msra.mxu0 0.0
      %2135 = vmatprep.subr.mxu0 0.0
      %2136 = vmatpush1.msra.mxu0 0.0
      %2137 = vmatprep.subr.mxu0 0.0
      %2138 = vmatpush1.msra.mxu0 0.0
      %2139 = vmatprep.subr.mxu0 0.0
      %2140 = vmatpush1.msra.mxu0 0.0
      %2141 = vmatprep.subr.mxu0 0.0
      %2142 = vmatpush1.msra.mxu0 0.0
      %2143 = vmatprep.subr.mxu0 0.0
      %2144 = vmatpush1.msra.mxu0 0.0
      %2145 = vmatprep.subr.mxu0 0.0
      %2146 = vmatpush1.msra.mxu0 0.0
      %2147 = vmatprep.subr.mxu0 0.0
      %2148 = vmatpush1.msra.mxu0 0.0
      %2149 = vmatprep.subr.mxu0 0.0
      %2150 = vmatpush1.msra.mxu0 0.0
      %2151 = vmatprep.subr.mxu0 0.0
      %2152 = vmatpush1.msra.mxu0 0.0
      %2153 = vmatprep.subr.mxu0 0.0
      %2154 = vmatpush1.msra.mxu0 0.0
      %2155 = vmatprep.subr.mxu0 0.0
      %2156 = vmatpush1.msra.mxu0 0.0
      %2157 = vmatprep.subr.mxu0 0.0
      %2158 = vmatpush1.msra.mxu0 0.0
      %2159 = vmatprep.subr.mxu0 0.0
      %2160 = vmatpush1.msra.mxu0 0.0
      %2161 = vmatprep.subr.mxu0 0.0
      %2162 = vmatpush1.msra.mxu0 0.0
      %2163 = vmatprep.subr.mxu0 0.0
      %2164 = vmatpush1.msra.mxu0 0.0
      %2165 = vmatprep.subr.mxu0 0.0
      %2166 = vmatpush1.msra.mxu0 0.0
      %2167 = vmatprep.mubr.f32.mxu0 0.0
      %2168 = vmatmul.mubr.f32.gmra.mrb[0].mxu0 %v2101
      %v2169 = vpop.f32.mrb[0].mxu0
      %v2170 = vadd.f32 0.0, %v2169
      %v2171 = vpop.f32.mrb[0].mxu0
      %v2172 = vadd.f32 0.0, %v2171
      %2173 = vdwg.mxu0
      %2174 = vmatprep.subr.mxu0 0.0
      %2175 = vmatpush1.msra.mxu0 %v2093
      %2176 = vmatprep.subr.mxu0 0.0
      %2177 = vmatpush1.msra.mxu0 0.0
      %2178 = vmatprep.subr.mxu0 0.0
      %2179 = vmatpush1.msra.mxu0 0.0
      %2180 = vmatprep.subr.mxu0 0.0
      %2181 = vmatpush1.msra.mxu0 0.0
      %2182 = vmatprep.subr.mxu0 0.0
      %2183 = vmatpush1.msra.mxu0 0.0
      %2184 = vmatprep.subr.mxu0 0.0
      %2185 = vmatpush1.msra.mxu0 0.0
      %2186 = vmatprep.subr.mxu0 0.0
      %2187 = vmatpush1.msra.mxu0 0.0
      %2188 = vmatprep.subr.mxu0 0.0
      %2189 = vmatpush1.msra.mxu0 0.0
      %2190 = vmatprep.subr.mxu0 0.0
      %2191 = vmatpush1.msra.mxu0 0.0
      %2192 = vmatprep.subr.mxu0 0.0
      %2193 = vmatpush1.msra.mxu0 0.0
      %2194 = vmatprep.subr.mxu0 0.0
      %2195 = vmatpush1.msra.mxu0 0.0
      %2196 = vmatprep.subr.mxu0 0.0
      %2197 = vmatpush1.msra.mxu0 0.0
      %2198 = vmatprep.subr.mxu0 0.0
      %2199 = vmatpush1.msra.mxu0 0.0
      %2200 = vmatprep.subr.mxu0 0.0
      %2201 = vmatpush1.msra.mxu0 0.0
      %2202 = vmatprep.subr.mxu0 0.0
      %2203 = vmatpush1.msra.mxu0 0.0
      %2204 = vmatprep.subr.mxu0 0.0
      %2205 = vmatpush1.msra.mxu0 0.0
      %2206 = vmatprep.subr.mxu0 0.0
      %2207 = vmatpush1.msra.mxu0 0.0
      %2208 = vmatprep.subr.mxu0 0.0
      %2209 = vmatpush1.msra.mxu0 0.0
      %2210 = vmatprep.subr.mxu0 0.0
      %2211 = vmatpush1.msra.mxu0 0.0
      %2212 = vmatprep.subr.mxu0 0.0
      %2213 = vmatpush1.msra.mxu0 0.0
      %2214 = vmatprep.subr.mxu0 0.0
      %2215 = vmatpush1.msra.mxu0 0.0
      %2216 = vmatprep.subr.mxu0 0.0
      %2217 = vmatpush1.msra.mxu0 0.0
      %2218 = vmatprep.subr.mxu0 0.0
      %2219 = vmatpush1.msra.mxu0 0.0
      %2220 = vmatprep.subr.mxu0 0.0
      %2221 = vmatpush1.msra.mxu0 0.0
      %2222 = vmatprep.subr.mxu0 0.0
      %2223 = vmatpush1.msra.mxu0 0.0
      %2224 = vmatprep.subr.mxu0 0.0
      %2225 = vmatpush1.msra.mxu0 0.0
      %2226 = vmatprep.subr.mxu0 0.0
      %2227 = vmatpush1.msra.mxu0 0.0
      %2228 = vmatprep.subr.mxu0 0.0
      %2229 = vmatpush1.msra.mxu0 0.0
      %2230 = vmatprep.subr.mxu0 0.0
      %2231 = vmatpush1.msra.mxu0 0.0
      %2232 = vmatprep.subr.mxu0 0.0
      %2233 = vmatpush1.msra.mxu0 0.0
      %2234 = vmatprep.subr.mxu0 0.0
      %2235 = vmatpush1.msra.mxu0 0.0
      %2236 = vmatprep.subr.mxu0 0.0
      %2237 = vmatpush1.msra.mxu0 0.0
      %2238 = vmatprep.mubr.f32.mxu0 0.0
      %2239 = vmatmul.mubr.f32.gmra.mrb[0].mxu0 %v2101
      %v2240 = vpop.f32.mrb[0].mxu0
      %v2241 = vadd.f32 0.0, %v2240
      %v2242 = vpop.f32.mrb[0].mxu0
      %2243 = vdwg.mxu0
      %v2244 = vadd.f32 %v2083, %v2170
      %v2245 = vadd.f32 %v2084, %v2172
      %v2246 = vadd.f32 %v2085, %v2241
      %s2247 = scalar_lea.vmem %s3, 36
      %v2248 = vld [vmem:[%s2247] sm:$0xf]
      %2249 = vrot.lane.b32.xlu0 %v738, 104
      %v2250 = vpop.permute.xlu0 %2249
      %2251 = vrot.lane.b32.xlu0 %v740, 104
      %v2252 = vpop.permute.xlu0 %2251
      %2253 = vrot.lane.b32.xlu0 %v809, 104
      %v2254 = vpop.permute.xlu0 %2253
      %vm2255 = vcmask 850944
      %v2256 = vsel %vm2255, %v2250, %v2252
      %v2257 = vsel %vm2255, %v2252, %v2254
      %v2262 = vsel %vm831, %v2248, 0
      %2264 = vmatprep.subr.mxu0 %v2257
      %2265 = vmatpush1.msra.mxu0 %v2256
      %2266 = vmatprep.subr.mxu0 0.0
      %2267 = vmatpush1.msra.mxu0 0.0
      %2268 = vmatprep.subr.mxu0 0.0
      %2269 = vmatpush1.msra.mxu0 0.0
      %2270 = vmatprep.subr.mxu0 0.0
      %2271 = vmatpush1.msra.mxu0 0.0
      %2272 = vmatprep.subr.mxu0 0.0
      %2273 = vmatpush1.msra.mxu0 0.0
      %2274 = vmatprep.subr.mxu0 0.0
      %2275 = vmatpush1.msra.mxu0 0.0
      %2276 = vmatprep.subr.mxu0 0.0
      %2277 = vmatpush1.msra.mxu0 0.0
      %2278 = vmatprep.subr.mxu0 0.0
      %2279 = vmatpush1.msra.mxu0 0.0
      %2280 = vmatprep.subr.mxu0 0.0
      %2281 = vmatpush1.msra.mxu0 0.0
      %2282 = vmatprep.subr.mxu0 0.0
      %2283 = vmatpush1.msra.mxu0 0.0
      %2284 = vmatprep.subr.mxu0 0.0
      %2285 = vmatpush1.msra.mxu0 0.0
      %2286 = vmatprep.subr.mxu0 0.0
      %2287 = vmatpush1.msra.mxu0 0.0
      %2288 = vmatprep.subr.mxu0 0.0
      %2289 = vmatpush1.msra.mxu0 0.0
      %2290 = vmatprep.subr.mxu0 0.0
      %2291 = vmatpush1.msra.mxu0 0.0
      %2292 = vmatprep.subr.mxu0 0.0
      %2293 = vmatpush1.msra.mxu0 0.0
      %2294 = vmatprep.subr.mxu0 0.0
      %2295 = vmatpush1.msra.mxu0 0.0
      %2296 = vmatprep.subr.mxu0 0.0
      %2297 = vmatpush1.msra.mxu0 0.0
      %2298 = vmatprep.subr.mxu0 0.0
      %2299 = vmatpush1.msra.mxu0 0.0
      %2300 = vmatprep.subr.mxu0 0.0
      %2301 = vmatpush1.msra.mxu0 0.0
      %2302 = vmatprep.subr.mxu0 0.0
      %2303 = vmatpush1.msra.mxu0 0.0
      %2304 = vmatprep.subr.mxu0 0.0
      %2305 = vmatpush1.msra.mxu0 0.0
      %2306 = vmatprep.subr.mxu0 0.0
      %2307 = vmatpush1.msra.mxu0 0.0
      %2308 = vmatprep.subr.mxu0 0.0
      %2309 = vmatpush1.msra.mxu0 0.0
      %2310 = vmatprep.subr.mxu0 0.0
      %2311 = vmatpush1.msra.mxu0 0.0
      %2312 = vmatprep.subr.mxu0 0.0
      %2313 = vmatpush1.msra.mxu0 0.0
      %2314 = vmatprep.subr.mxu0 0.0
      %2315 = vmatpush1.msra.mxu0 0.0
      %2316 = vmatprep.subr.mxu0 0.0
      %2317 = vmatpush1.msra.mxu0 0.0
      %2318 = vmatprep.subr.mxu0 0.0
      %2319 = vmatpush1.msra.mxu0 0.0
      %2320 = vmatprep.subr.mxu0 0.0
      %2321 = vmatpush1.msra.mxu0 0.0
      %2322 = vmatprep.subr.mxu0 0.0
      %2323 = vmatpush1.msra.mxu0 0.0
      %2324 = vmatprep.subr.mxu0 0.0
      %2325 = vmatpush1.msra.mxu0 0.0
      %2326 = vmatprep.subr.mxu0 0.0
      %2327 = vmatpush1.msra.mxu0 0.0
      %2328 = vmatprep.mubr.f32.mxu0 0.0
      %2329 = vmatmul.mubr.f32.gmra.mrb[0].mxu0 %v2262
      %v2330 = vpop.f32.mrb[0].mxu0
      %v2331 = vadd.f32 0.0, %v2330
      %v2332 = vpop.f32.mrb[0].mxu0
      %v2333 = vadd.f32 0.0, %v2332
      %2334 = vdwg.mxu0
      %2335 = vmatprep.subr.mxu0 0.0
      %2336 = vmatpush1.msra.mxu0 %v2254
      %2337 = vmatprep.subr.mxu0 0.0
      %2338 = vmatpush1.msra.mxu0 0.0
      %2339 = vmatprep.subr.mxu0 0.0
      %2340 = vmatpush1.msra.mxu0 0.0
      %2341 = vmatprep.subr.mxu0 0.0
      %2342 = vmatpush1.msra.mxu0 0.0
      %2343 = vmatprep.subr.mxu0 0.0
      %2344 = vmatpush1.msra.mxu0 0.0
      %2345 = vmatprep.subr.mxu0 0.0
      %2346 = vmatpush1.msra.mxu0 0.0
      %2347 = vmatprep.subr.mxu0 0.0
      %2348 = vmatpush1.msra.mxu0 0.0
      %2349 = vmatprep.subr.mxu0 0.0
      %2350 = vmatpush1.msra.mxu0 0.0
      %2351 = vmatprep.subr.mxu0 0.0
      %2352 = vmatpush1.msra.mxu0 0.0
      %2353 = vmatprep.subr.mxu0 0.0
      %2354 = vmatpush1.msra.mxu0 0.0
      %2355 = vmatprep.subr.mxu0 0.0
      %2356 = vmatpush1.msra.mxu0 0.0
      %2357 = vmatprep.subr.mxu0 0.0
      %2358 = vmatpush1.msra.mxu0 0.0
      %2359 = vmatprep.subr.mxu0 0.0
      %2360 = vmatpush1.msra.mxu0 0.0
      %2361 = vmatprep.subr.mxu0 0.0
      %2362 = vmatpush1.msra.mxu0 0.0
      %2363 = vmatprep.subr.mxu0 0.0
      %2364 = vmatpush1.msra.mxu0 0.0
      %2365 = vmatprep.subr.mxu0 0.0
      %2366 = vmatpush1.msra.mxu0 0.0
      %2367 = vmatprep.subr.mxu0 0.0
      %2368 = vmatpush1.msra.mxu0 0.0
      %2369 = vmatprep.subr.mxu0 0.0
      %2370 = vmatpush1.msra.mxu0 0.0
      %2371 = vmatprep.subr.mxu0 0.0
      %2372 = vmatpush1.msra.mxu0 0.0
      %2373 = vmatprep.subr.mxu0 0.0
      %2374 = vmatpush1.msra.mxu0 0.0
      %2375 = vmatprep.subr.mxu0 0.0
      %2376 = vmatpush1.msra.mxu0 0.0
      %2377 = vmatprep.subr.mxu0 0.0
      %2378 = vmatpush1.msra.mxu0 0.0
      %2379 = vmatprep.subr.mxu0 0.0
      %2380 = vmatpush1.msra.mxu0 0.0
      %2381 = vmatprep.subr.mxu0 0.0
      %2382 = vmatpush1.msra.mxu0 0.0
      %2383 = vmatprep.subr.mxu0 0.0
      %2384 = vmatpush1.msra.mxu0 0.0
      %2385 = vmatprep.subr.mxu0 0.0
      %2386 = vmatpush1.msra.mxu0 0.0
      %2387 = vmatprep.subr.mxu0 0.0
      %2388 = vmatpush1.msra.mxu0 0.0
      %2389 = vmatprep.subr.mxu0 0.0
      %2390 = vmatpush1.msra.mxu0 0.0
      %2391 = vmatprep.subr.mxu0 0.0
      %2392 = vmatpush1.msra.mxu0 0.0
      %2393 = vmatprep.subr.mxu0 0.0
      %2394 = vmatpush1.msra.mxu0 0.0
      %2395 = vmatprep.subr.mxu0 0.0
      %2396 = vmatpush1.msra.mxu0 0.0
      %2397 = vmatprep.subr.mxu0 0.0
      %2398 = vmatpush1.msra.mxu0 0.0
      %2399 = vmatprep.mubr.f32.mxu0 0.0
      %2400 = vmatmul.mubr.f32.gmra.mrb[0].mxu0 %v2262
      %v2401 = vpop.f32.mrb[0].mxu0
      %v2402 = vadd.f32 0.0, %v2401
      %v2403 = vpop.f32.mrb[0].mxu0
      %2404 = vdwg.mxu0
      %v2405 = vadd.f32 %v2244, %v2331
      %v2406 = vadd.f32 %v2245, %v2333
      %v2407 = vadd.f32 %v2246, %v2402
      %s2408 = scalar_lea.vmem %s3, 40
      %v2409 = vld [vmem:[%s2408] sm:$0xf]
      %2410 = vrot.lane.b32.xlu0 %v738, 88
      %v2411 = vpop.permute.xlu0 %2410
      %2412 = vrot.lane.b32.xlu0 %v740, 88
      %v2413 = vpop.permute.xlu0 %2412
      %2414 = vrot.lane.b32.xlu0 %v809, 88
      %v2415 = vpop.permute.xlu0 %2414
      %vm2416 = vcmask 719872
      %v2417 = vsel %vm2416, %v2411, %v2413
      %v2418 = vsel %vm2416, %v2413, %v2415
      %v2423 = vsel %vm831, %v2409, 0
      %2425 = vmatprep.subr.mxu0 %v2418
      %2426 = vmatpush1.msra.mxu0 %v2417
      %2427 = vmatprep.subr.mxu0 0.0
      %2428 = vmatpush1.msra.mxu0 0.0
      %2429 = vmatprep.subr.mxu0 0.0
      %2430 = vmatpush1.msra.mxu0 0.0
      %2431 = vmatprep.subr.mxu0 0.0
      %2432 = vmatpush1.msra.mxu0 0.0
      %2433 = vmatprep.subr.mxu0 0.0
      %2434 = vmatpush1.msra.mxu0 0.0
      %2435 = vmatprep.subr.mxu0 0.0
      %2436 = vmatpush1.msra.mxu0 0.0
      %2437 = vmatprep.subr.mxu0 0.0
      %2438 = vmatpush1.msra.mxu0 0.0
      %2439 = vmatprep.subr.mxu0 0.0
      %2440 = vmatpush1.msra.mxu0 0.0
      %2441 = vmatprep.subr.mxu0 0.0
      %2442 = vmatpush1.msra.mxu0 0.0
      %2443 = vmatprep.subr.mxu0 0.0
      %2444 = vmatpush1.msra.mxu0 0.0
      %2445 = vmatprep.subr.mxu0 0.0
      %2446 = vmatpush1.msra.mxu0 0.0
      %2447 = vmatprep.subr.mxu0 0.0
      %2448 = vmatpush1.msra.mxu0 0.0
      %2449 = vmatprep.subr.mxu0 0.0
      %2450 = vmatpush1.msra.mxu0 0.0
      %2451 = vmatprep.subr.mxu0 0.0
      %2452 = vmatpush1.msra.mxu0 0.0
      %2453 = vmatprep.subr.mxu0 0.0
      %2454 = vmatpush1.msra.mxu0 0.0
      %2455 = vmatprep.subr.mxu0 0.0
      %2456 = vmatpush1.msra.mxu0 0.0
      %2457 = vmatprep.subr.mxu0 0.0
      %2458 = vmatpush1.msra.mxu0 0.0
      %2459 = vmatprep.subr.mxu0 0.0
      %2460 = vmatpush1.msra.mxu0 0.0
      %2461 = vmatprep.subr.mxu0 0.0
      %2462 = vmatpush1.msra.mxu0 0.0
      %2463 = vmatprep.subr.mxu0 0.0
      %2464 = vmatpush1.msra.mxu0 0.0
      %2465 = vmatprep.subr.mxu0 0.0
      %2466 = vmatpush1.msra.mxu0 0.0
      %2467 = vmatprep.subr.mxu0 0.0
      %2468 = vmatpush1.msra.mxu0 0.0
      %2469 = vmatprep.subr.mxu0 0.0
      %2470 = vmatpush1.msra.mxu0 0.0
      %2471 = vmatprep.subr.mxu0 0.0
      %2472 = vmatpush1.msra.mxu0 0.0
      %2473 = vmatprep.subr.mxu0 0.0
      %2474 = vmatpush1.msra.mxu0 0.0
      %2475 = vmatprep.subr.mxu0 0.0
      %2476 = vmatpush1.msra.mxu0 0.0
      %2477 = vmatprep.subr.mxu0 0.0
      %2478 = vmatpush1.msra.mxu0 0.0
      %2479 = vmatprep.subr.mxu0 0.0
      %2480 = vmatpush1.msra.mxu0 0.0
      %2481 = vmatprep.subr.mxu0 0.0
      %2482 = vmatpush1.msra.mxu0 0.0
      %2483 = vmatprep.subr.mxu0 0.0
      %2484 = vmatpush1.msra.mxu0 0.0
      %2485 = vmatprep.subr.mxu0 0.0
      %2486 = vmatpush1.msra.mxu0 0.0
      %2487 = vmatprep.subr.mxu0 0.0
      %2488 = vmatpush1.msra.mxu0 0.0
      %2489 = vmatprep.mubr.f32.mxu0 0.0
      %2490 = vmatmul.mubr.f32.gmra.mrb[0].mxu0 %v2423
      %v2491 = vpop.f32.mrb[0].mxu0
      %v2492 = vadd.f32 0.0, %v2491
      %v2493 = vpop.f32.mrb[0].mxu0
      %v2494 = vadd.f32 0.0, %v2493
      %2495 = vdwg.mxu0
      %2496 = vmatprep.subr.mxu0 0.0
      %2497 = vmatpush1.msra.mxu0 %v2415
      %2498 = vmatprep.subr.mxu0 0.0
      %2499 = vmatpush1.msra.mxu0 0.0
      %2500 = vmatprep.subr.mxu0 0.0
      %2501 = vmatpush1.msra.mxu0 0.0
      %2502 = vmatprep.subr.mxu0 0.0
      %2503 = vmatpush1.msra.mxu0 0.0
      %2504 = vmatprep.subr.mxu0 0.0
      %2505 = vmatpush1.msra.mxu0 0.0
      %2506 = vmatprep.subr.mxu0 0.0
      %2507 = vmatpush1.msra.mxu0 0.0
      %2508 = vmatprep.subr.mxu0 0.0
      %2509 = vmatpush1.msra.mxu0 0.0
      %2510 = vmatprep.subr.mxu0 0.0
      %2511 = vmatpush1.msra.mxu0 0.0
      %2512 = vmatprep.subr.mxu0 0.0
      %2513 = vmatpush1.msra.mxu0 0.0
      %2514 = vmatprep.subr.mxu0 0.0
      %2515 = vmatpush1.msra.mxu0 0.0
      %2516 = vmatprep.subr.mxu0 0.0
      %2517 = vmatpush1.msra.mxu0 0.0
      %2518 = vmatprep.subr.mxu0 0.0
      %2519 = vmatpush1.msra.mxu0 0.0
      %2520 = vmatprep.subr.mxu0 0.0
      %2521 = vmatpush1.msra.mxu0 0.0
      %2522 = vmatprep.subr.mxu0 0.0
      %2523 = vmatpush1.msra.mxu0 0.0
      %2524 = vmatprep.subr.mxu0 0.0
      %2525 = vmatpush1.msra.mxu0 0.0
      %2526 = vmatprep.subr.mxu0 0.0
      %2527 = vmatpush1.msra.mxu0 0.0
      %2528 = vmatprep.subr.mxu0 0.0
      %2529 = vmatpush1.msra.mxu0 0.0
      %2530 = vmatprep.subr.mxu0 0.0
      %2531 = vmatpush1.msra.mxu0 0.0
      %2532 = vmatprep.subr.mxu0 0.0
      %2533 = vmatpush1.msra.mxu0 0.0
      %2534 = vmatprep.subr.mxu0 0.0
      %2535 = vmatpush1.msra.mxu0 0.0
      %2536 = vmatprep.subr.mxu0 0.0
      %2537 = vmatpush1.msra.mxu0 0.0
      %2538 = vmatprep.subr.mxu0 0.0
      %2539 = vmatpush1.msra.mxu0 0.0
      %2540 = vmatprep.subr.mxu0 0.0
      %2541 = vmatpush1.msra.mxu0 0.0
      %2542 = vmatprep.subr.mxu0 0.0
      %2543 = vmatpush1.msra.mxu0 0.0
      %2544 = vmatprep.subr.mxu0 0.0
      %2545 = vmatpush1.msra.mxu0 0.0
      %2546 = vmatprep.subr.mxu0 0.0
      %2547 = vmatpush1.msra.mxu0 0.0
      %2548 = vmatprep.subr.mxu0 0.0
      %2549 = vmatpush1.msra.mxu0 0.0
      %2550 = vmatprep.subr.mxu0 0.0
      %2551 = vmatpush1.msra.mxu0 0.0
      %2552 = vmatprep.subr.mxu0 0.0
      %2553 = vmatpush1.msra.mxu0 0.0
      %2554 = vmatprep.subr.mxu0 0.0
      %2555 = vmatpush1.msra.mxu0 0.0
      %2556 = vmatprep.subr.mxu0 0.0
      %2557 = vmatpush1.msra.mxu0 0.0
      %2558 = vmatprep.subr.mxu0 0.0
      %2559 = vmatpush1.msra.mxu0 0.0
      %2560 = vmatprep.mubr.f32.mxu0 0.0
      %2561 = vmatmul.mubr.f32.gmra.mrb[0].mxu0 %v2423
      %v2562 = vpop.f32.mrb[0].mxu0
      %v2563 = vadd.f32 0.0, %v2562
      %v2564 = vpop.f32.mrb[0].mxu0
      %2565 = vdwg.mxu0
      %v2566 = vadd.f32 %v2405, %v2492
      %v2567 = vadd.f32 %v2406, %v2494
      %v2568 = vadd.f32 %v2407, %v2563
      %s2569 = scalar_lea.vmem %s3, 44
      %v2570 = vld [vmem:[%s2569] sm:$0xf]
      %2571 = vrot.lane.b32.xlu0 %v738, 87
      %v2572 = vpop.permute.xlu0 %2571
      %2573 = vrot.lane.b32.xlu0 %v740, 87
      %v2574 = vpop.permute.xlu0 %2573
      %2575 = vrot.lane.b32.xlu0 %v809, 87
      %v2576 = vpop.permute.xlu0 %2575
      %vm2577 = vcmask 711680
      %v2578 = vsel %vm2577, %v2572, %v2574
      %v2579 = vsel %vm2577, %v2574, %v2576
      %v2584 = vsel %vm831, %v2570, 0
      %2586 = vmatprep.subr.mxu0 %v2579
      %2587 = vmatpush1.msra.mxu0 %v2578
      %2588 = vmatprep.subr.mxu0 0.0
      %2589 = vmatpush1.msra.mxu0 0.0
      %2590 = vmatprep.subr.mxu0 0.0
      %2591 = vmatpush1.msra.mxu0 0.0
      %2592 = vmatprep.subr.mxu0 0.0
      %2593 = vmatpush1.msra.mxu0 0.0
      %2594 = vmatprep.subr.mxu0 0.0
      %2595 = vmatpush1.msra.mxu0 0.0
      %2596 = vmatprep.subr.mxu0 0.0
      %2597 = vmatpush1.msra.mxu0 0.0
      %2598 = vmatprep.subr.mxu0 0.0
      %2599 = vmatpush1.msra.mxu0 0.0
      %2600 = vmatprep.subr.mxu0 0.0
      %2601 = vmatpush1.msra.mxu0 0.0
      %2602 = vmatprep.subr.mxu0 0.0
      %2603 = vmatpush1.msra.mxu0 0.0
      %2604 = vmatprep.subr.mxu0 0.0
      %2605 = vmatpush1.msra.mxu0 0.0
      %2606 = vmatprep.subr.mxu0 0.0
      %2607 = vmatpush1.msra.mxu0 0.0
      %2608 = vmatprep.subr.mxu0 0.0
      %2609 = vmatpush1.msra.mxu0 0.0
      %2610 = vmatprep.subr.mxu0 0.0
      %2611 = vmatpush1.msra.mxu0 0.0
      %2612 = vmatprep.subr.mxu0 0.0
      %2613 = vmatpush1.msra.mxu0 0.0
      %2614 = vmatprep.subr.mxu0 0.0
      %2615 = vmatpush1.msra.mxu0 0.0
      %2616 = vmatprep.subr.mxu0 0.0
      %2617 = vmatpush1.msra.mxu0 0.0
      %2618 = vmatprep.subr.mxu0 0.0
      %2619 = vmatpush1.msra.mxu0 0.0
      %2620 = vmatprep.subr.mxu0 0.0
      %2621 = vmatpush1.msra.mxu0 0.0
      %2622 = vmatprep.subr.mxu0 0.0
      %2623 = vmatpush1.msra.mxu0 0.0
      %2624 = vmatprep.subr.mxu0 0.0
      %2625 = vmatpush1.msra.mxu0 0.0
      %2626 = vmatprep.subr.mxu0 0.0
      %2627 = vmatpush1.msra.mxu0 0.0
      %2628 = vmatprep.subr.mxu0 0.0
      %2629 = vmatpush1.msra.mxu0 0.0
      %2630 = vmatprep.subr.mxu0 0.0
      %2631 = vmatpush1.msra.mxu0 0.0
      %2632 = vmatprep.subr.mxu0 0.0
      %2633 = vmatpush1.msra.mxu0 0.0
      %2634 = vmatprep.subr.mxu0 0.0
      %2635 = vmatpush1.msra.mxu0 0.0
      %2636 = vmatprep.subr.mxu0 0.0
      %2637 = vmatpush1.msra.mxu0 0.0
      %2638 = vmatprep.subr.mxu0 0.0
      %2639 = vmatpush1.msra.mxu0 0.0
      %2640 = vmatprep.subr.mxu0 0.0
      %2641 = vmatpush1.msra.mxu0 0.0
      %2642 = vmatprep.subr.mxu0 0.0
      %2643 = vmatpush1.msra.mxu0 0.0
      %2644 = vmatprep.subr.mxu0 0.0
      %2645 = vmatpush1.msra.mxu0 0.0
      %2646 = vmatprep.subr.mxu0 0.0
      %2647 = vmatpush1.msra.mxu0 0.0
      %2648 = vmatprep.subr.mxu0 0.0
      %2649 = vmatpush1.msra.mxu0 0.0
      %2650 = vmatprep.mubr.f32.mxu0 0.0
      %2651 = vmatmul.mubr.f32.gmra.mrb[0].mxu0 %v2584
      %v2652 = vpop.f32.mrb[0].mxu0
      %v2653 = vadd.f32 0.0, %v2652
      %v2654 = vpop.f32.mrb[0].mxu0
      %v2655 = vadd.f32 0.0, %v2654
      %2656 = vdwg.mxu0
      %2657 = vmatprep.subr.mxu0 0.0
      %2658 = vmatpush1.msra.mxu0 %v2576
      %2659 = vmatprep.subr.mxu0 0.0
      %2660 = vmatpush1.msra.mxu0 0.0
      %2661 = vmatprep.subr.mxu0 0.0
      %2662 = vmatpush1.msra.mxu0 0.0
      %2663 = vmatprep.subr.mxu0 0.0
      %2664 = vmatpush1.msra.mxu0 0.0
      %2665 = vmatprep.subr.mxu0 0.0
      %2666 = vmatpush1.msra.mxu0 0.0
      %2667 = vmatprep.subr.mxu0 0.0
      %2668 = vmatpush1.msra.mxu0 0.0
      %2669 = vmatprep.subr.mxu0 0.0
      %2670 = vmatpush1.msra.mxu0 0.0
      %2671 = vmatprep.subr.mxu0 0.0
      %2672 = vmatpush1.msra.mxu0 0.0
      %2673 = vmatprep.subr.mxu0 0.0
      %2674 = vmatpush1.msra.mxu0 0.0
      %2675 = vmatprep.subr.mxu0 0.0
      %2676 = vmatpush1.msra.mxu0 0.0
      %2677 = vmatprep.subr.mxu0 0.0
      %2678 = vmatpush1.msra.mxu0 0.0
      %2679 = vmatprep.subr.mxu0 0.0
      %2680 = vmatpush1.msra.mxu0 0.0
      %2681 = vmatprep.subr.mxu0 0.0
      %2682 = vmatpush1.msra.mxu0 0.0
      %2683 = vmatprep.subr.mxu0 0.0
      %2684 = vmatpush1.msra.mxu0 0.0
      %2685 = vmatprep.subr.mxu0 0.0
      %2686 = vmatpush1.msra.mxu0 0.0
      %2687 = vmatprep.subr.mxu0 0.0
      %2688 = vmatpush1.msra.mxu0 0.0
      %2689 = vmatprep.subr.mxu0 0.0
      %2690 = vmatpush1.msra.mxu0 0.0
      %2691 = vmatprep.subr.mxu0 0.0
      %2692 = vmatpush1.msra.mxu0 0.0
      %2693 = vmatprep.subr.mxu0 0.0
      %2694 = vmatpush1.msra.mxu0 0.0
      %2695 = vmatprep.subr.mxu0 0.0
      %2696 = vmatpush1.msra.mxu0 0.0
      %2697 = vmatprep.subr.mxu0 0.0
      %2698 = vmatpush1.msra.mxu0 0.0
      %2699 = vmatprep.subr.mxu0 0.0
      %2700 = vmatpush1.msra.mxu0 0.0
      %2701 = vmatprep.subr.mxu0 0.0
      %2702 = vmatpush1.msra.mxu0 0.0
      %2703 = vmatprep.subr.mxu0 0.0
      %2704 = vmatpush1.msra.mxu0 0.0
      %2705 = vmatprep.subr.mxu0 0.0
      %2706 = vmatpush1.msra.mxu0 0.0
      %2707 = vmatprep.subr.mxu0 0.0
      %2708 = vmatpush1.msra.mxu0 0.0
      %2709 = vmatprep.subr.mxu0 0.0
      %2710 = vmatpush1.msra.mxu0 0.0
      %2711 = vmatprep.subr.mxu0 0.0
      %2712 = vmatpush1.msra.mxu0 0.0
      %2713 = vmatprep.subr.mxu0 0.0
      %2714 = vmatpush1.msra.mxu0 0.0
      %2715 = vmatprep.subr.mxu0 0.0
      %2716 = vmatpush1.msra.mxu0 0.0
      %2717 = vmatprep.subr.mxu0 0.0
      %2718 = vmatpush1.msra.mxu0 0.0
      %2719 = vmatprep.subr.mxu0 0.0
      %2720 = vmatpush1.msra.mxu0 0.0
      %2721 = vmatprep.mubr.f32.mxu0 0.0
      %2722 = vmatmul.mubr.f32.gmra.mrb[0].mxu0 %v2584
      %v2723 = vpop.f32.mrb[0].mxu0
      %v2724 = vadd.f32 0.0, %v2723
      %v2725 = vpop.f32.mrb[0].mxu0
      %2726 = vdwg.mxu0
      %v2727 = vadd.f32 %v2566, %v2653
      %v2728 = vadd.f32 %v2567, %v2655
      %v2729 = vadd.f32 %v2568, %v2724
      %s2730 = scalar_lea.vmem %s3, 48
      %v2731 = vld [vmem:[%s2730] sm:$0xf]
      %2732 = vrot.lane.b32.xlu0 %v738, 86
      %v2733 = vpop.permute.xlu0 %2732
      %2734 = vrot.lane.b32.xlu0 %v740, 86
      %v2735 = vpop.permute.xlu0 %2734
      %2736 = vrot.lane.b32.xlu0 %v809, 86
      %v2737 = vpop.permute.xlu0 %2736
      %vm2738 = vcmask 703488
      %v2739 = vsel %vm2738, %v2733, %v2735
      %v2740 = vsel %vm2738, %v2735, %v2737
      %v2745 = vsel %vm831, %v2731, 0
      %2747 = vmatprep.subr.mxu0 %v2740
      %2748 = vmatpush1.msra.mxu0 %v2739
      %2749 = vmatprep.subr.mxu0 0.0
      %2750 = vmatpush1.msra.mxu0 0.0
      %2751 = vmatprep.subr.mxu0 0.0
      %2752 = vmatpush1.msra.mxu0 0.0
      %2753 = vmatprep.subr.mxu0 0.0
      %2754 = vmatpush1.msra.mxu0 0.0
      %2755 = vmatprep.subr.mxu0 0.0
      %2756 = vmatpush1.msra.mxu0 0.0
      %2757 = vmatprep.subr.mxu0 0.0
      %2758 = vmatpush1.msra.mxu0 0.0
      %2759 = vmatprep.subr.mxu0 0.0
      %2760 = vmatpush1.msra.mxu0 0.0
      %2761 = vmatprep.subr.mxu0 0.0
      %2762 = vmatpush1.msra.mxu0 0.0
      %2763 = vmatprep.subr.mxu0 0.0
      %2764 = vmatpush1.msra.mxu0 0.0
      %2765 = vmatprep.subr.mxu0 0.0
      %2766 = vmatpush1.msra.mxu0 0.0
      %2767 = vmatprep.subr.mxu0 0.0
      %2768 = vmatpush1.msra.mxu0 0.0
      %2769 = vmatprep.subr.mxu0 0.0
      %2770 = vmatpush1.msra.mxu0 0.0
      %2771 = vmatprep.subr.mxu0 0.0
      %2772 = vmatpush1.msra.mxu0 0.0
      %2773 = vmatprep.subr.mxu0 0.0
      %2774 = vmatpush1.msra.mxu0 0.0
      %2775 = vmatprep.subr.mxu0 0.0
      %2776 = vmatpush1.msra.mxu0 0.0
      %2777 = vmatprep.subr.mxu0 0.0
      %2778 = vmatpush1.msra.mxu0 0.0
      %2779 = vmatprep.subr.mxu0 0.0
      %2780 = vmatpush1.msra.mxu0 0.0
      %2781 = vmatprep.subr.mxu0 0.0
      %2782 = vmatpush1.msra.mxu0 0.0
      %2783 = vmatprep.subr.mxu0 0.0
      %2784 = vmatpush1.msra.mxu0 0.0
      %2785 = vmatprep.subr.mxu0 0.0
      %2786 = vmatpush1.msra.mxu0 0.0
      %2787 = vmatprep.subr.mxu0 0.0
      %2788 = vmatpush1.msra.mxu0 0.0
      %2789 = vmatprep.subr.mxu0 0.0
      %2790 = vmatpush1.msra.mxu0 0.0
      %2791 = vmatprep.subr.mxu0 0.0
      %2792 = vmatpush1.msra.mxu0 0.0
      %2793 = vmatprep.subr.mxu0 0.0
      %2794 = vmatpush1.msra.mxu0 0.0
      %2795 = vmatprep.subr.mxu0 0.0
      %2796 = vmatpush1.msra.mxu0 0.0
      %2797 = vmatprep.subr.mxu0 0.0
      %2798 = vmatpush1.msra.mxu0 0.0
      %2799 = vmatprep.subr.mxu0 0.0
      %2800 = vmatpush1.msra.mxu0 0.0
      %2801 = vmatprep.subr.mxu0 0.0
      %2802 = vmatpush1.msra.mxu0 0.0
      %2803 = vmatprep.subr.mxu0 0.0
      %2804 = vmatpush1.msra.mxu0 0.0
      %2805 = vmatprep.subr.mxu0 0.0
      %2806 = vmatpush1.msra.mxu0 0.0
      %2807 = vmatprep.subr.mxu0 0.0
      %2808 = vmatpush1.msra.mxu0 0.0
      %2809 = vmatprep.subr.mxu0 0.0
      %2810 = vmatpush1.msra.mxu0 0.0
      %2811 = vmatprep.mubr.f32.mxu0 0.0
      %2812 = vmatmul.mubr.f32.gmra.mrb[0].mxu0 %v2745
      %v2813 = vpop.f32.mrb[0].mxu0
      %v2814 = vadd.f32 0.0, %v2813
      %v2815 = vpop.f32.mrb[0].mxu0
      %v2816 = vadd.f32 0.0, %v2815
      %2817 = vdwg.mxu0
      %2818 = vmatprep.subr.mxu0 0.0
      %2819 = vmatpush1.msra.mxu0 %v2737
      %2820 = vmatprep.subr.mxu0 0.0
      %2821 = vmatpush1.msra.mxu0 0.0
      %2822 = vmatprep.subr.mxu0 0.0
      %2823 = vmatpush1.msra.mxu0 0.0
      %2824 = vmatprep.subr.mxu0 0.0
      %2825 = vmatpush1.msra.mxu0 0.0
      %2826 = vmatprep.subr.mxu0 0.0
      %2827 = vmatpush1.msra.mxu0 0.0
      %2828 = vmatprep.subr.mxu0 0.0
      %2829 = vmatpush1.msra.mxu0 0.0
      %2830 = vmatprep.subr.mxu0 0.0
      %2831 = vmatpush1.msra.mxu0 0.0
      %2832 = vmatprep.subr.mxu0 0.0
      %2833 = vmatpush1.msra.mxu0 0.0
      %2834 = vmatprep.subr.mxu0 0.0
      %2835 = vmatpush1.msra.mxu0 0.0
      %2836 = vmatprep.subr.mxu0 0.0
      %2837 = vmatpush1.msra.mxu0 0.0
      %2838 = vmatprep.subr.mxu0 0.0
      %2839 = vmatpush1.msra.mxu0 0.0
      %2840 = vmatprep.subr.mxu0 0.0
      %2841 = vmatpush1.msra.mxu0 0.0
      %2842 = vmatprep.subr.mxu0 0.0
      %2843 = vmatpush1.msra.mxu0 0.0
      %2844 = vmatprep.subr.mxu0 0.0
      %2845 = vmatpush1.msra.mxu0 0.0
      %2846 = vmatprep.subr.mxu0 0.0
      %2847 = vmatpush1.msra.mxu0 0.0
      %2848 = vmatprep.subr.mxu0 0.0
      %2849 = vmatpush1.msra.mxu0 0.0
      %2850 = vmatprep.subr.mxu0 0.0
      %2851 = vmatpush1.msra.mxu0 0.0
      %2852 = vmatprep.subr.mxu0 0.0
      %2853 = vmatpush1.msra.mxu0 0.0
      %2854 = vmatprep.subr.mxu0 0.0
      %2855 = vmatpush1.msra.mxu0 0.0
      %2856 = vmatprep.subr.mxu0 0.0
      %2857 = vmatpush1.msra.mxu0 0.0
      %2858 = vmatprep.subr.mxu0 0.0
      %2859 = vmatpush1.msra.mxu0 0.0
      %2860 = vmatprep.subr.mxu0 0.0
      %2861 = vmatpush1.msra.mxu0 0.0
      %2862 = vmatprep.subr.mxu0 0.0
      %2863 = vmatpush1.msra.mxu0 0.0
      %2864 = vmatprep.subr.mxu0 0.0
      %2865 = vmatpush1.msra.mxu0 0.0
      %2866 = vmatprep.subr.mxu0 0.0
      %2867 = vmatpush1.msra.mxu0 0.0
      %2868 = vmatprep.subr.mxu0 0.0
      %2869 = vmatpush1.msra.mxu0 0.0
      %2870 = vmatprep.subr.mxu0 0.0
      %2871 = vmatpush1.msra.mxu0 0.0
      %2872 = vmatprep.subr.mxu0 0.0
      %2873 = vmatpush1.msra.mxu0 0.0
      %2874 = vmatprep.subr.mxu0 0.0
      %2875 = vmatpush1.msra.mxu0 0.0
      %2876 = vmatprep.subr.mxu0 0.0
      %2877 = vmatpush1.msra.mxu0 0.0
      %2878 = vmatprep.subr.mxu0 0.0
      %2879 = vmatpush1.msra.mxu0 0.0
      %2880 = vmatprep.subr.mxu0 0.0
      %2881 = vmatpush1.msra.mxu0 0.0
      %2882 = vmatprep.mubr.f32.mxu0 0.0
      %2883 = vmatmul.mubr.f32.gmra.mrb[0].mxu0 %v2745
      %v2884 = vpop.f32.mrb[0].mxu0
      %v2885 = vadd.f32 0.0, %v2884
      %v2886 = vpop.f32.mrb[0].mxu0
      %2887 = vdwg.mxu0
      %v2888 = vadd.f32 %v2727, %v2814
      %v2889 = vadd.f32 %v2728, %v2816
      %v2890 = vadd.f32 %v2729, %v2885
      %s2891 = scalar_lea.vmem %s3, 52
      %v2892 = vld [vmem:[%s2891] sm:$0xf]
      %2893 = vrot.lane.b32.xlu0 %v738, 85
      %v2894 = vpop.permute.xlu0 %2893
      %2895 = vrot.lane.b32.xlu0 %v740, 85
      %v2896 = vpop.permute.xlu0 %2895
      %2897 = vrot.lane.b32.xlu0 %v809, 85
      %v2898 = vpop.permute.xlu0 %2897
      %vm2899 = vcmask 695296
      %v2900 = vsel %vm2899, %v2894, %v2896
      %v2901 = vsel %vm2899, %v2896, %v2898
      %v2906 = vsel %vm831, %v2892, 0
      %2908 = vmatprep.subr.mxu0 %v2901
      %2909 = vmatpush1.msra.mxu0 %v2900
      %2910 = vmatprep.subr.mxu0 0.0
      %2911 = vmatpush1.msra.mxu0 0.0
      %2912 = vmatprep.subr.mxu0 0.0
      %2913 = vmatpush1.msra.mxu0 0.0
      %2914 = vmatprep.subr.mxu0 0.0
      %2915 = vmatpush1.msra.mxu0 0.0
      %2916 = vmatprep.subr.mxu0 0.0
      %2917 = vmatpush1.msra.mxu0 0.0
      %2918 = vmatprep.subr.mxu0 0.0
      %2919 = vmatpush1.msra.mxu0 0.0
      %2920 = vmatprep.subr.mxu0 0.0
      %2921 = vmatpush1.msra.mxu0 0.0
      %2922 = vmatprep.subr.mxu0 0.0
      %2923 = vmatpush1.msra.mxu0 0.0
      %2924 = vmatprep.subr.mxu0 0.0
      %2925 = vmatpush1.msra.mxu0 0.0
      %2926 = vmatprep.subr.mxu0 0.0
      %2927 = vmatpush1.msra.mxu0 0.0
      %2928 = vmatprep.subr.mxu0 0.0
      %2929 = vmatpush1.msra.mxu0 0.0
      %2930 = vmatprep.subr.mxu0 0.0
      %2931 = vmatpush1.msra.mxu0 0.0
      %2932 = vmatprep.subr.mxu0 0.0
      %2933 = vmatpush1.msra.mxu0 0.0
      %2934 = vmatprep.subr.mxu0 0.0
      %2935 = vmatpush1.msra.mxu0 0.0
      %2936 = vmatprep.subr.mxu0 0.0
      %2937 = vmatpush1.msra.mxu0 0.0
      %2938 = vmatprep.subr.mxu0 0.0
      %2939 = vmatpush1.msra.mxu0 0.0
      %2940 = vmatprep.subr.mxu0 0.0
      %2941 = vmatpush1.msra.mxu0 0.0
      %2942 = vmatprep.subr.mxu0 0.0
      %2943 = vmatpush1.msra.mxu0 0.0
      %2944 = vmatprep.subr.mxu0 0.0
      %2945 = vmatpush1.msra.mxu0 0.0
      %2946 = vmatprep.subr.mxu0 0.0
      %2947 = vmatpush1.msra.mxu0 0.0
      %2948 = vmatprep.subr.mxu0 0.0
      %2949 = vmatpush1.msra.mxu0 0.0
      %2950 = vmatprep.subr.mxu0 0.0
      %2951 = vmatpush1.msra.mxu0 0.0
      %2952 = vmatprep.subr.mxu0 0.0
      %2953 = vmatpush1.msra.mxu0 0.0
      %2954 = vmatprep.subr.mxu0 0.0
      %2955 = vmatpush1.msra.mxu0 0.0
      %2956 = vmatprep.subr.mxu0 0.0
      %2957 = vmatpush1.msra.mxu0 0.0
      %2958 = vmatprep.subr.mxu0 0.0
      %2959 = vmatpush1.msra.mxu0 0.0
      %2960 = vmatprep.subr.mxu0 0.0
      %2961 = vmatpush1.msra.mxu0 0.0
      %2962 = vmatprep.subr.mxu0 0.0
      %2963 = vmatpush1.msra.mxu0 0.0
      %2964 = vmatprep.subr.mxu0 0.0
      %2965 = vmatpush1.msra.mxu0 0.0
      %2966 = vmatprep.subr.mxu0 0.0
      %2967 = vmatpush1.msra.mxu0 0.0
      %2968 = vmatprep.subr.mxu0 0.0
      %2969 = vmatpush1.msra.mxu0 0.0
      %2970 = vmatprep.subr.mxu0 0.0
      %2971 = vmatpush1.msra.mxu0 0.0
      %2972 = vmatprep.mubr.f32.mxu0 0.0
      %2973 = vmatmul.mubr.f32.gmra.mrb[0].mxu0 %v2906
      %v2974 = vpop.f32.mrb[0].mxu0
      %v2975 = vadd.f32 0.0, %v2974
      %v2976 = vpop.f32.mrb[0].mxu0
      %v2977 = vadd.f32 0.0, %v2976
      %2978 = vdwg.mxu0
      %2979 = vmatprep.subr.mxu0 0.0
      %2980 = vmatpush1.msra.mxu0 %v2898
      %2981 = vmatprep.subr.mxu0 0.0
      %2982 = vmatpush1.msra.mxu0 0.0
      %2983 = vmatprep.subr.mxu0 0.0
      %2984 = vmatpush1.msra.mxu0 0.0
      %2985 = vmatprep.subr.mxu0 0.0
      %2986 = vmatpush1.msra.mxu0 0.0
      %2987 = vmatprep.subr.mxu0 0.0
      %2988 = vmatpush1.msra.mxu0 0.0
      %2989 = vmatprep.subr.mxu0 0.0
      %2990 = vmatpush1.msra.mxu0 0.0
      %2991 = vmatprep.subr.mxu0 0.0
      %2992 = vmatpush1.msra.mxu0 0.0
      %2993 = vmatprep.subr.mxu0 0.0
      %2994 = vmatpush1.msra.mxu0 0.0
      %2995 = vmatprep.subr.mxu0 0.0
      %2996 = vmatpush1.msra.mxu0 0.0
      %2997 = vmatprep.subr.mxu0 0.0
      %2998 = vmatpush1.msra.mxu0 0.0
      %2999 = vmatprep.subr.mxu0 0.0
      %3000 = vmatpush1.msra.mxu0 0.0
      %3001 = vmatprep.subr.mxu0 0.0
      %3002 = vmatpush1.msra.mxu0 0.0
      %3003 = vmatprep.subr.mxu0 0.0
      %3004 = vmatpush1.msra.mxu0 0.0
      %3005 = vmatprep.subr.mxu0 0.0
      %3006 = vmatpush1.msra.mxu0 0.0
      %3007 = vmatprep.subr.mxu0 0.0
      %3008 = vmatpush1.msra.mxu0 0.0
      %3009 = vmatprep.subr.mxu0 0.0
      %3010 = vmatpush1.msra.mxu0 0.0
      %3011 = vmatprep.subr.mxu0 0.0
      %3012 = vmatpush1.msra.mxu0 0.0
      %3013 = vmatprep.subr.mxu0 0.0
      %3014 = vmatpush1.msra.mxu0 0.0
      %3015 = vmatprep.subr.mxu0 0.0
      %3016 = vmatpush1.msra.mxu0 0.0
      %3017 = vmatprep.subr.mxu0 0.0
      %3018 = vmatpush1.msra.mxu0 0.0
      %3019 = vmatprep.subr.mxu0 0.0
      %3020 = vmatpush1.msra.mxu0 0.0
      %3021 = vmatprep.subr.mxu0 0.0
      %3022 = vmatpush1.msra.mxu0 0.0
      %3023 = vmatprep.subr.mxu0 0.0
      %3024 = vmatpush1.msra.mxu0 0.0
      %3025 = vmatprep.subr.mxu0 0.0
      %3026 = vmatpush1.msra.mxu0 0.0
      %3027 = vmatprep.subr.mxu0 0.0
      %3028 = vmatpush1.msra.mxu0 0.0
      %3029 = vmatprep.subr.mxu0 0.0
      %3030 = vmatpush1.msra.mxu0 0.0
      %3031 = vmatprep.subr.mxu0 0.0
      %3032 = vmatpush1.msra.mxu0 0.0
      %3033 = vmatprep.subr.mxu0 0.0
      %3034 = vmatpush1.msra.mxu0 0.0
      %3035 = vmatprep.subr.mxu0 0.0
      %3036 = vmatpush1.msra.mxu0 0.0
      %3037 = vmatprep.subr.mxu0 0.0
      %3038 = vmatpush1.msra.mxu0 0.0
      %3039 = vmatprep.subr.mxu0 0.0
      %3040 = vmatpush1.msra.mxu0 0.0
      %3041 = vmatprep.subr.mxu0 0.0
      %3042 = vmatpush1.msra.mxu0 0.0
      %3043 = vmatprep.mubr.f32.mxu0 0.0
      %3044 = vmatmul.mubr.f32.gmra.mrb[0].mxu0 %v2906
      %v3045 = vpop.f32.mrb[0].mxu0
      %v3046 = vadd.f32 0.0, %v3045
      %v3047 = vpop.f32.mrb[0].mxu0
      %3048 = vdwg.mxu0
      %v3049 = vadd.f32 %v2888, %v2975
      %v3050 = vadd.f32 %v2889, %v2977
      %v3051 = vadd.f32 %v2890, %v3046
      %s3052 = scalar_lea.vmem %s3, 56
      %v3053 = vld [vmem:[%s3052] sm:$0xf]
      %3054 = vrot.lane.b32.xlu0 %v738, 84
      %v3055 = vpop.permute.xlu0 %3054
      %3056 = vrot.lane.b32.xlu0 %v740, 84
      %v3057 = vpop.permute.xlu0 %3056
      %3058 = vrot.lane.b32.xlu0 %v809, 84
      %v3059 = vpop.permute.xlu0 %3058
      %vm3060 = vcmask 687104
      %v3061 = vsel %vm3060, %v3055, %v3057
      %v3062 = vsel %vm3060, %v3057, %v3059
      %v3067 = vsel %vm831, %v3053, 0
      %3069 = vmatprep.subr.mxu0 %v3062
      %3070 = vmatpush1.msra.mxu0 %v3061
      %3071 = vmatprep.subr.mxu0 0.0
      %3072 = vmatpush1.msra.mxu0 0.0
      %3073 = vmatprep.subr.mxu0 0.0
      %3074 = vmatpush1.msra.mxu0 0.0
      %3075 = vmatprep.subr.mxu0 0.0
      %3076 = vmatpush1.msra.mxu0 0.0
      %3077 = vmatprep.subr.mxu0 0.0
      %3078 = vmatpush1.msra.mxu0 0.0
      %3079 = vmatprep.subr.mxu0 0.0
      %3080 = vmatpush1.msra.mxu0 0.0
      %3081 = vmatprep.subr.mxu0 0.0
      %3082 = vmatpush1.msra.mxu0 0.0
      %3083 = vmatprep.subr.mxu0 0.0
      %3084 = vmatpush1.msra.mxu0 0.0
      %3085 = vmatprep.subr.mxu0 0.0
      %3086 = vmatpush1.msra.mxu0 0.0
      %3087 = vmatprep.subr.mxu0 0.0
      %3088 = vmatpush1.msra.mxu0 0.0
      %3089 = vmatprep.subr.mxu0 0.0
      %3090 = vmatpush1.msra.mxu0 0.0
      %3091 = vmatprep.subr.mxu0 0.0
      %3092 = vmatpush1.msra.mxu0 0.0
      %3093 = vmatprep.subr.mxu0 0.0
      %3094 = vmatpush1.msra.mxu0 0.0
      %3095 = vmatprep.subr.mxu0 0.0
      %3096 = vmatpush1.msra.mxu0 0.0
      %3097 = vmatprep.subr.mxu0 0.0
      %3098 = vmatpush1.msra.mxu0 0.0
      %3099 = vmatprep.subr.mxu0 0.0
      %3100 = vmatpush1.msra.mxu0 0.0
      %3101 = vmatprep.subr.mxu0 0.0
      %3102 = vmatpush1.msra.mxu0 0.0
      %3103 = vmatprep.subr.mxu0 0.0
      %3104 = vmatpush1.msra.mxu0 0.0
      %3105 = vmatprep.subr.mxu0 0.0
      %3106 = vmatpush1.msra.mxu0 0.0
      %3107 = vmatprep.subr.mxu0 0.0
      %3108 = vmatpush1.msra.mxu0 0.0
      %3109 = vmatprep.subr.mxu0 0.0
      %3110 = vmatpush1.msra.mxu0 0.0
      %3111 = vmatprep.subr.mxu0 0.0
      %3112 = vmatpush1.msra.mxu0 0.0
      %3113 = vmatprep.subr.mxu0 0.0
      %3114 = vmatpush1.msra.mxu0 0.0
      %3115 = vmatprep.subr.mxu0 0.0
      %3116 = vmatpush1.msra.mxu0 0.0
      %3117 = vmatprep.subr.mxu0 0.0
      %3118 = vmatpush1.msra.mxu0 0.0
      %3119 = vmatprep.subr.mxu0 0.0
      %3120 = vmatpush1.msra.mxu0 0.0
      %3121 = vmatprep.subr.mxu0 0.0
      %3122 = vmatpush1.msra.mxu0 0.0
      %3123 = vmatprep.subr.mxu0 0.0
      %3124 = vmatpush1.msra.mxu0 0.0
      %3125 = vmatprep.subr.mxu0 0.0
      %3126 = vmatpush1.msra.mxu0 0.0
      %3127 = vmatprep.subr.mxu0 0.0
      %3128 = vmatpush1.msra.mxu0 0.0
      %3129 = vmatprep.subr.mxu0 0.0
      %3130 = vmatpush1.msra.mxu0 0.0
      %3131 = vmatprep.subr.mxu0 0.0
      %3132 = vmatpush1.msra.mxu0 0.0
      %3133 = vmatprep.mubr.f32.mxu0 0.0
      %3134 = vmatmul.mubr.f32.gmra.mrb[0].mxu0 %v3067
      %v3135 = vpop.f32.mrb[0].mxu0
      %v3136 = vadd.f32 0.0, %v3135
      %v3137 = vpop.f32.mrb[0].mxu0
      %v3138 = vadd.f32 0.0, %v3137
      %3139 = vdwg.mxu0
      %3140 = vmatprep.subr.mxu0 0.0
      %3141 = vmatpush1.msra.mxu0 %v3059
      %3142 = vmatprep.subr.mxu0 0.0
      %3143 = vmatpush1.msra.mxu0 0.0
      %3144 = vmatprep.subr.mxu0 0.0
      %3145 = vmatpush1.msra.mxu0 0.0
      %3146 = vmatprep.subr.mxu0 0.0
      %3147 = vmatpush1.msra.mxu0 0.0
      %3148 = vmatprep.subr.mxu0 0.0
      %3149 = vmatpush1.msra.mxu0 0.0
      %3150 = vmatprep.subr.mxu0 0.0
      %3151 = vmatpush1.msra.mxu0 0.0
      %3152 = vmatprep.subr.mxu0 0.0
      %3153 = vmatpush1.msra.mxu0 0.0
      %3154 = vmatprep.subr.mxu0 0.0
      %3155 = vmatpush1.msra.mxu0 0.0
      %3156 = vmatprep.subr.mxu0 0.0
      %3157 = vmatpush1.msra.mxu0 0.0
      %3158 = vmatprep.subr.mxu0 0.0
      %3159 = vmatpush1.msra.mxu0 0.0
      %3160 = vmatprep.subr.mxu0 0.0
      %3161 = vmatpush1.msra.mxu0 0.0
      %3162 = vmatprep.subr.mxu0 0.0
      %3163 = vmatpush1.msra.mxu0 0.0
      %3164 = vmatprep.subr.mxu0 0.0
      %3165 = vmatpush1.msra.mxu0 0.0
      %3166 = vmatprep.subr.mxu0 0.0
      %3167 = vmatpush1.msra.mxu0 0.0
      %3168 = vmatprep.subr.mxu0 0.0
      %3169 = vmatpush1.msra.mxu0 0.0
      %3170 = vmatprep.subr.mxu0 0.0
      %3171 = vmatpush1.msra.mxu0 0.0
      %3172 = vmatprep.subr.mxu0 0.0
      %3173 = vmatpush1.msra.mxu0 0.0
      %3174 = vmatprep.subr.mxu0 0.0
      %3175 = vmatpush1.msra.mxu0 0.0
      %3176 = vmatprep.subr.mxu0 0.0
      %3177 = vmatpush1.msra.mxu0 0.0
      %3178 = vmatprep.subr.mxu0 0.0
      %3179 = vmatpush1.msra.mxu0 0.0
      %3180 = vmatprep.subr.mxu0 0.0
      %3181 = vmatpush1.msra.mxu0 0.0
      %3182 = vmatprep.subr.mxu0 0.0
      %3183 = vmatpush1.msra.mxu0 0.0
      %3184 = vmatprep.subr.mxu0 0.0
      %3185 = vmatpush1.msra.mxu0 0.0
      %3186 = vmatprep.subr.mxu0 0.0
      %3187 = vmatpush1.msra.mxu0 0.0
      %3188 = vmatprep.subr.mxu0 0.0
      %3189 = vmatpush1.msra.mxu0 0.0
      %3190 = vmatprep.subr.mxu0 0.0
      %3191 = vmatpush1.msra.mxu0 0.0
      %3192 = vmatprep.subr.mxu0 0.0
      %3193 = vmatpush1.msra.mxu0 0.0
      %3194 = vmatprep.subr.mxu0 0.0
      %3195 = vmatpush1.msra.mxu0 0.0
      %3196 = vmatprep.subr.mxu0 0.0
      %3197 = vmatpush1.msra.mxu0 0.0
      %3198 = vmatprep.subr.mxu0 0.0
      %3199 = vmatpush1.msra.mxu0 0.0
      %3200 = vmatprep.subr.mxu0 0.0
      %3201 = vmatpush1.msra.mxu0 0.0
      %3202 = vmatprep.subr.mxu0 0.0
      %3203 = vmatpush1.msra.mxu0 0.0
      %3204 = vmatprep.mubr.f32.mxu0 0.0
      %3205 = vmatmul.mubr.f32.gmra.mrb[0].mxu0 %v3067
      %v3206 = vpop.f32.mrb[0].mxu0
      %v3207 = vadd.f32 0.0, %v3206
      %v3208 = vpop.f32.mrb[0].mxu0
      %3209 = vdwg.mxu0
      %v3210 = vadd.f32 %v3049, %v3136
      %v3211 = vadd.f32 %v3050, %v3138
      %v3212 = vadd.f32 %v3051, %v3207
      %s3213 = scalar_lea.vmem %s3, 60
      %v3214 = vld [vmem:[%s3213] sm:$0xf]
      %3215 = vrot.lane.b32.xlu0 %v738, 68
      %v3216 = vpop.permute.xlu0 %3215
      %3217 = vrot.lane.b32.xlu0 %v740, 68
      %v3218 = vpop.permute.xlu0 %3217
      %3219 = vrot.lane.b32.xlu0 %v809, 68
      %v3220 = vpop.permute.xlu0 %3219
      %vm3221 = vcmask 556032
      %v3222 = vsel %vm3221, %v3216, %v3218
      %v3223 = vsel %vm3221, %v3218, %v3220
      %v3228 = vsel %vm831, %v3214, 0
      %3230 = vmatprep.subr.mxu0 %v3223
      %3231 = vmatpush1.msra.mxu0 %v3222
      %3232 = vmatprep.subr.mxu0 0.0
      %3233 = vmatpush1.msra.mxu0 0.0
      %3234 = vmatprep.subr.mxu0 0.0
      %3235 = vmatpush1.msra.mxu0 0.0
      %3236 = vmatprep.subr.mxu0 0.0
      %3237 = vmatpush1.msra.mxu0 0.0
      %3238 = vmatprep.subr.mxu0 0.0
      %3239 = vmatpush1.msra.mxu0 0.0
      %3240 = vmatprep.subr.mxu0 0.0
      %3241 = vmatpush1.msra.mxu0 0.0
      %3242 = vmatprep.subr.mxu0 0.0
      %3243 = vmatpush1.msra.mxu0 0.0
      %3244 = vmatprep.subr.mxu0 0.0
      %3245 = vmatpush1.msra.mxu0 0.0
      %3246 = vmatprep.subr.mxu0 0.0
      %3247 = vmatpush1.msra.mxu0 0.0
      %3248 = vmatprep.subr.mxu0 0.0
      %3249 = vmatpush1.msra.mxu0 0.0
      %3250 = vmatprep.subr.mxu0 0.0
      %3251 = vmatpush1.msra.mxu0 0.0
      %3252 = vmatprep.subr.mxu0 0.0
      %3253 = vmatpush1.msra.mxu0 0.0
      %3254 = vmatprep.subr.mxu0 0.0
      %3255 = vmatpush1.msra.mxu0 0.0
      %3256 = vmatprep.subr.mxu0 0.0
      %3257 = vmatpush1.msra.mxu0 0.0
      %3258 = vmatprep.subr.mxu0 0.0
      %3259 = vmatpush1.msra.mxu0 0.0
      %3260 = vmatprep.subr.mxu0 0.0
      %3261 = vmatpush1.msra.mxu0 0.0
      %3262 = vmatprep.subr.mxu0 0.0
      %3263 = vmatpush1.msra.mxu0 0.0
      %3264 = vmatprep.subr.mxu0 0.0
      %3265 = vmatpush1.msra.mxu0 0.0
      %3266 = vmatprep.subr.mxu0 0.0
      %3267 = vmatpush1.msra.mxu0 0.0
      %3268 = vmatprep.subr.mxu0 0.0
      %3269 = vmatpush1.msra.mxu0 0.0
      %3270 = vmatprep.subr.mxu0 0.0
      %3271 = vmatpush1.msra.mxu0 0.0
      %3272 = vmatprep.subr.mxu0 0.0
      %3273 = vmatpush1.msra.mxu0 0.0
      %3274 = vmatprep.subr.mxu0 0.0
      %3275 = vmatpush1.msra.mxu0 0.0
      %3276 = vmatprep.subr.mxu0 0.0
      %3277 = vmatpush1.msra.mxu0 0.0
      %3278 = vmatprep.subr.mxu0 0.0
      %3279 = vmatpush1.msra.mxu0 0.0
      %3280 = vmatprep.subr.mxu0 0.0
      %3281 = vmatpush1.msra.mxu0 0.0
      %3282 = vmatprep.subr.mxu0 0.0
      %3283 = vmatpush1.msra.mxu0 0.0
      %3284 = vmatprep.subr.mxu0 0.0
      %3285 = vmatpush1.msra.mxu0 0.0
      %3286 = vmatprep.subr.mxu0 0.0
      %3287 = vmatpush1.msra.mxu0 0.0
      %3288 = vmatprep.subr.mxu0 0.0
      %3289 = vmatpush1.msra.mxu0 0.0
      %3290 = vmatprep.subr.mxu0 0.0
      %3291 = vmatpush1.msra.mxu0 0.0
      %3292 = vmatprep.subr.mxu0 0.0
      %3293 = vmatpush1.msra.mxu0 0.0
      %3294 = vmatprep.mubr.f32.mxu0 0.0
      %3295 = vmatmul.mubr.f32.gmra.mrb[0].mxu0 %v3228
      %v3296 = vpop.f32.mrb[0].mxu0
      %v3297 = vadd.f32 0.0, %v3296
      %v3298 = vpop.f32.mrb[0].mxu0
      %v3299 = vadd.f32 0.0, %v3298
      %3300 = vdwg.mxu0
      %3301 = vmatprep.subr.mxu0 0.0
      %3302 = vmatpush1.msra.mxu0 %v3220
      %3303 = vmatprep.subr.mxu0 0.0
      %3304 = vmatpush1.msra.mxu0 0.0
      %3305 = vmatprep.subr.mxu0 0.0
      %3306 = vmatpush1.msra.mxu0 0.0
      %3307 = vmatprep.subr.mxu0 0.0
      %3308 = vmatpush1.msra.mxu0 0.0
      %3309 = vmatprep.subr.mxu0 0.0
      %3310 = vmatpush1.msra.mxu0 0.0
      %3311 = vmatprep.subr.mxu0 0.0
      %3312 = vmatpush1.msra.mxu0 0.0
      %3313 = vmatprep.subr.mxu0 0.0
      %3314 = vmatpush1.msra.mxu0 0.0
      %3315 = vmatprep.subr.mxu0 0.0
      %3316 = vmatpush1.msra.mxu0 0.0
      %3317 = vmatprep.subr.mxu0 0.0
      %3318 = vmatpush1.msra.mxu0 0.0
      %3319 = vmatprep.subr.mxu0 0.0
      %3320 = vmatpush1.msra.mxu0 0.0
      %3321 = vmatprep.subr.mxu0 0.0
      %3322 = vmatpush1.msra.mxu0 0.0
      %3323 = vmatprep.subr.mxu0 0.0
      %3324 = vmatpush1.msra.mxu0 0.0
      %3325 = vmatprep.subr.mxu0 0.0
      %3326 = vmatpush1.msra.mxu0 0.0
      %3327 = vmatprep.subr.mxu0 0.0
      %3328 = vmatpush1.msra.mxu0 0.0
      %3329 = vmatprep.subr.mxu0 0.0
      %3330 = vmatpush1.msra.mxu0 0.0
      %3331 = vmatprep.subr.mxu0 0.0
      %3332 = vmatpush1.msra.mxu0 0.0
      %3333 = vmatprep.subr.mxu0 0.0
      %3334 = vmatpush1.msra.mxu0 0.0
      %3335 = vmatprep.subr.mxu0 0.0
      %3336 = vmatpush1.msra.mxu0 0.0
      %3337 = vmatprep.subr.mxu0 0.0
      %3338 = vmatpush1.msra.mxu0 0.0
      %3339 = vmatprep.subr.mxu0 0.0
      %3340 = vmatpush1.msra.mxu0 0.0
      %3341 = vmatprep.subr.mxu0 0.0
      %3342 = vmatpush1.msra.mxu0 0.0
      %3343 = vmatprep.subr.mxu0 0.0
      %3344 = vmatpush1.msra.mxu0 0.0
      %3345 = vmatprep.subr.mxu0 0.0
      %3346 = vmatpush1.msra.mxu0 0.0
      %3347 = vmatprep.subr.mxu0 0.0
      %3348 = vmatpush1.msra.mxu0 0.0
      %3349 = vmatprep.subr.mxu0 0.0
      %3350 = vmatpush1.msra.mxu0 0.0
      %3351 = vmatprep.subr.mxu0 0.0
      %3352 = vmatpush1.msra.mxu0 0.0
      %3353 = vmatprep.subr.mxu0 0.0
      %3354 = vmatpush1.msra.mxu0 0.0
      %3355 = vmatprep.subr.mxu0 0.0
      %3356 = vmatpush1.msra.mxu0 0.0
      %3357 = vmatprep.subr.mxu0 0.0
      %3358 = vmatpush1.msra.mxu0 0.0
      %3359 = vmatprep.subr.mxu0 0.0
      %3360 = vmatpush1.msra.mxu0 0.0
      %3361 = vmatprep.subr.mxu0 0.0
      %3362 = vmatpush1.msra.mxu0 0.0
      %3363 = vmatprep.subr.mxu0 0.0
      %3364 = vmatpush1.msra.mxu0 0.0
      %3365 = vmatprep.mubr.f32.mxu0 0.0
      %3366 = vmatmul.mubr.f32.gmra.mrb[0].mxu0 %v3228
      %v3367 = vpop.f32.mrb[0].mxu0
      %v3368 = vadd.f32 0.0, %v3367
      %v3369 = vpop.f32.mrb[0].mxu0
      %3370 = vdwg.mxu0
      %v3371 = vadd.f32 %v3210, %v3297
      %v3372 = vadd.f32 %v3211, %v3299
      %v3373 = vadd.f32 %v3212, %v3368
      %s3374 = scalar_lea.vmem %s3, 64
      %v3375 = vld [vmem:[%s3374] sm:$0xf]
      %3376 = vrot.lane.b32.xlu0 %v738, 67
      %v3377 = vpop.permute.xlu0 %3376
      %3378 = vrot.lane.b32.xlu0 %v740, 67
      %v3379 = vpop.permute.xlu0 %3378
      %3380 = vrot.lane.b32.xlu0 %v809, 67
      %v3381 = vpop.permute.xlu0 %3380
      %vm3382 = vcmask 547840
      %v3383 = vsel %vm3382, %v3377, %v3379
      %v3384 = vsel %vm3382, %v3379, %v3381
      %v3389 = vsel %vm831, %v3375, 0
      %3391 = vmatprep.subr.mxu0 %v3384
      %3392 = vmatpush1.msra.mxu0 %v3383
      %3393 = vmatprep.subr.mxu0 0.0
      %3394 = vmatpush1.msra.mxu0 0.0
      %3395 = vmatprep.subr.mxu0 0.0
      %3396 = vmatpush1.msra.mxu0 0.0
      %3397 = vmatprep.subr.mxu0 0.0
      %3398 = vmatpush1.msra.mxu0 0.0
      %3399 = vmatprep.subr.mxu0 0.0
      %3400 = vmatpush1.msra.mxu0 0.0
      %3401 = vmatprep.subr.mxu0 0.0
      %3402 = vmatpush1.msra.mxu0 0.0
      %3403 = vmatprep.subr.mxu0 0.0
      %3404 = vmatpush1.msra.mxu0 0.0
      %3405 = vmatprep.subr.mxu0 0.0
      %3406 = vmatpush1.msra.mxu0 0.0
      %3407 = vmatprep.subr.mxu0 0.0
      %3408 = vmatpush1.msra.mxu0 0.0
      %3409 = vmatprep.subr.mxu0 0.0
      %3410 = vmatpush1.msra.mxu0 0.0
      %3411 = vmatprep.subr.mxu0 0.0
      %3412 = vmatpush1.msra.mxu0 0.0
      %3413 = vmatprep.subr.mxu0 0.0
      %3414 = vmatpush1.msra.mxu0 0.0
      %3415 = vmatprep.subr.mxu0 0.0
      %3416 = vmatpush1.msra.mxu0 0.0
      %3417 = vmatprep.subr.mxu0 0.0
      %3418 = vmatpush1.msra.mxu0 0.0
      %3419 = vmatprep.subr.mxu0 0.0
      %3420 = vmatpush1.msra.mxu0 0.0
      %3421 = vmatprep.subr.mxu0 0.0
      %3422 = vmatpush1.msra.mxu0 0.0
      %3423 = vmatprep.subr.mxu0 0.0
      %3424 = vmatpush1.msra.mxu0 0.0
      %3425 = vmatprep.subr.mxu0 0.0
      %3426 = vmatpush1.msra.mxu0 0.0
      %3427 = vmatprep.subr.mxu0 0.0
      %3428 = vmatpush1.msra.mxu0 0.0
      %3429 = vmatprep.subr.mxu0 0.0
      %3430 = vmatpush1.msra.mxu0 0.0
      %3431 = vmatprep.subr.mxu0 0.0
      %3432 = vmatpush1.msra.mxu0 0.0
      %3433 = vmatprep.subr.mxu0 0.0
      %3434 = vmatpush1.msra.mxu0 0.0
      %3435 = vmatprep.subr.mxu0 0.0
      %3436 = vmatpush1.msra.mxu0 0.0
      %3437 = vmatprep.subr.mxu0 0.0
      %3438 = vmatpush1.msra.mxu0 0.0
      %3439 = vmatprep.subr.mxu0 0.0
      %3440 = vmatpush1.msra.mxu0 0.0
      %3441 = vmatprep.subr.mxu0 0.0
      %3442 = vmatpush1.msra.mxu0 0.0
      %3443 = vmatprep.subr.mxu0 0.0
      %3444 = vmatpush1.msra.mxu0 0.0
      %3445 = vmatprep.subr.mxu0 0.0
      %3446 = vmatpush1.msra.mxu0 0.0
      %3447 = vmatprep.subr.mxu0 0.0
      %3448 = vmatpush1.msra.mxu0 0.0
      %3449 = vmatprep.subr.mxu0 0.0
      %3450 = vmatpush1.msra.mxu0 0.0
      %3451 = vmatprep.subr.mxu0 0.0
      %3452 = vmatpush1.msra.mxu0 0.0
      %3453 = vmatprep.subr.mxu0 0.0
      %3454 = vmatpush1.msra.mxu0 0.0
      %3455 = vmatprep.mubr.f32.mxu0 0.0
      %3456 = vmatmul.mubr.f32.gmra.mrb[0].mxu0 %v3389
      %v3457 = vpop.f32.mrb[0].mxu0
      %v3458 = vadd.f32 0.0, %v3457
      %v3459 = vpop.f32.mrb[0].mxu0
      %v3460 = vadd.f32 0.0, %v3459
      %3461 = vdwg.mxu0
      %3462 = vmatprep.subr.mxu0 0.0
      %3463 = vmatpush1.msra.mxu0 %v3381
      %3464 = vmatprep.subr.mxu0 0.0
      %3465 = vmatpush1.msra.mxu0 0.0
      %3466 = vmatprep.subr.mxu0 0.0
      %3467 = vmatpush1.msra.mxu0 0.0
      %3468 = vmatprep.subr.mxu0 0.0
      %3469 = vmatpush1.msra.mxu0 0.0
      %3470 = vmatprep.subr.mxu0 0.0
      %3471 = vmatpush1.msra.mxu0 0.0
      %3472 = vmatprep.subr.mxu0 0.0
      %3473 = vmatpush1.msra.mxu0 0.0
      %3474 = vmatprep.subr.mxu0 0.0
      %3475 = vmatpush1.msra.mxu0 0.0
      %3476 = vmatprep.subr.mxu0 0.0
      %3477 = vmatpush1.msra.mxu0 0.0
      %3478 = vmatprep.subr.mxu0 0.0
      %3479 = vmatpush1.msra.mxu0 0.0
      %3480 = vmatprep.subr.mxu0 0.0
      %3481 = vmatpush1.msra.mxu0 0.0
      %3482 = vmatprep.subr.mxu0 0.0
      %3483 = vmatpush1.msra.mxu0 0.0
      %3484 = vmatprep.subr.mxu0 0.0
      %3485 = vmatpush1.msra.mxu0 0.0
      %3486 = vmatprep.subr.mxu0 0.0
      %3487 = vmatpush1.msra.mxu0 0.0
      %3488 = vmatprep.subr.mxu0 0.0
      %3489 = vmatpush1.msra.mxu0 0.0
      %3490 = vmatprep.subr.mxu0 0.0
      %3491 = vmatpush1.msra.mxu0 0.0
      %3492 = vmatprep.subr.mxu0 0.0
      %3493 = vmatpush1.msra.mxu0 0.0
      %3494 = vmatprep.subr.mxu0 0.0
      %3495 = vmatpush1.msra.mxu0 0.0
      %3496 = vmatprep.subr.mxu0 0.0
      %3497 = vmatpush1.msra.mxu0 0.0
      %3498 = vmatprep.subr.mxu0 0.0
      %3499 = vmatpush1.msra.mxu0 0.0
      %3500 = vmatprep.subr.mxu0 0.0
      %3501 = vmatpush1.msra.mxu0 0.0
      %3502 = vmatprep.subr.mxu0 0.0
      %3503 = vmatpush1.msra.mxu0 0.0
      %3504 = vmatprep.subr.mxu0 0.0
      %3505 = vmatpush1.msra.mxu0 0.0
      %3506 = vmatprep.subr.mxu0 0.0
      %3507 = vmatpush1.msra.mxu0 0.0
      %3508 = vmatprep.subr.mxu0 0.0
      %3509 = vmatpush1.msra.mxu0 0.0
      %3510 = vmatprep.subr.mxu0 0.0
      %3511 = vmatpush1.msra.mxu0 0.0
      %3512 = vmatprep.subr.mxu0 0.0
      %3513 = vmatpush1.msra.mxu0 0.0
      %3514 = vmatprep.subr.mxu0 0.0
      %3515 = vmatpush1.msra.mxu0 0.0
      %3516 = vmatprep.subr.mxu0 0.0
      %3517 = vmatpush1.msra.mxu0 0.0
      %3518 = vmatprep.subr.mxu0 0.0
      %3519 = vmatpush1.msra.mxu0 0.0
      %3520 = vmatprep.subr.mxu0 0.0
      %3521 = vmatpush1.msra.mxu0 0.0
      %3522 = vmatprep.subr.mxu0 0.0
      %3523 = vmatpush1.msra.mxu0 0.0
      %3524 = vmatprep.subr.mxu0 0.0
      %3525 = vmatpush1.msra.mxu0 0.0
      %3526 = vmatprep.mubr.f32.mxu0 0.0
      %3527 = vmatmul.mubr.f32.gmra.mrb[0].mxu0 %v3389
      %v3528 = vpop.f32.mrb[0].mxu0
      %v3529 = vadd.f32 0.0, %v3528
      %v3530 = vpop.f32.mrb[0].mxu0
      %3531 = vdwg.mxu0
      %v3532 = vadd.f32 %v3371, %v3458
      %v3533 = vadd.f32 %v3372, %v3460
      %v3534 = vadd.f32 %v3373, %v3529
      %s3535 = scalar_lea.vmem %s3, 68
      %v3536 = vld [vmem:[%s3535] sm:$0xf]
      %3537 = vrot.lane.b32.xlu0 %v738, 66
      %v3538 = vpop.permute.xlu0 %3537
      %3539 = vrot.lane.b32.xlu0 %v740, 66
      %v3540 = vpop.permute.xlu0 %3539
      %3541 = vrot.lane.b32.xlu0 %v809, 66
      %v3542 = vpop.permute.xlu0 %3541
      %vm3543 = vcmask 539648
      %v3544 = vsel %vm3543, %v3538, %v3540
      %v3545 = vsel %vm3543, %v3540, %v3542
      %v3550 = vsel %vm831, %v3536, 0
      %3552 = vmatprep.subr.mxu0 %v3545
      %3553 = vmatpush1.msra.mxu0 %v3544
      %3554 = vmatprep.subr.mxu0 0.0
      %3555 = vmatpush1.msra.mxu0 0.0
      %3556 = vmatprep.subr.mxu0 0.0
      %3557 = vmatpush1.msra.mxu0 0.0
      %3558 = vmatprep.subr.mxu0 0.0
      %3559 = vmatpush1.msra.mxu0 0.0
      %3560 = vmatprep.subr.mxu0 0.0
      %3561 = vmatpush1.msra.mxu0 0.0
      %3562 = vmatprep.subr.mxu0 0.0
      %3563 = vmatpush1.msra.mxu0 0.0
      %3564 = vmatprep.subr.mxu0 0.0
      %3565 = vmatpush1.msra.mxu0 0.0
      %3566 = vmatprep.subr.mxu0 0.0
      %3567 = vmatpush1.msra.mxu0 0.0
      %3568 = vmatprep.subr.mxu0 0.0
      %3569 = vmatpush1.msra.mxu0 0.0
      %3570 = vmatprep.subr.mxu0 0.0
      %3571 = vmatpush1.msra.mxu0 0.0
      %3572 = vmatprep.subr.mxu0 0.0
      %3573 = vmatpush1.msra.mxu0 0.0
      %3574 = vmatprep.subr.mxu0 0.0
      %3575 = vmatpush1.msra.mxu0 0.0
      %3576 = vmatprep.subr.mxu0 0.0
      %3577 = vmatpush1.msra.mxu0 0.0
      %3578 = vmatprep.subr.mxu0 0.0
      %3579 = vmatpush1.msra.mxu0 0.0
      %3580 = vmatprep.subr.mxu0 0.0
      %3581 = vmatpush1.msra.mxu0 0.0
      %3582 = vmatprep.subr.mxu0 0.0
      %3583 = vmatpush1.msra.mxu0 0.0
      %3584 = vmatprep.subr.mxu0 0.0
      %3585 = vmatpush1.msra.mxu0 0.0
      %3586 = vmatprep.subr.mxu0 0.0
      %3587 = vmatpush1.msra.mxu0 0.0
      %3588 = vmatprep.subr.mxu0 0.0
      %3589 = vmatpush1.msra.mxu0 0.0
      %3590 = vmatprep.subr.mxu0 0.0
      %3591 = vmatpush1.msra.mxu0 0.0
      %3592 = vmatprep.subr.mxu0 0.0
      %3593 = vmatpush1.msra.mxu0 0.0
      %3594 = vmatprep.subr.mxu0 0.0
      %3595 = vmatpush1.msra.mxu0 0.0
      %3596 = vmatprep.subr.mxu0 0.0
      %3597 = vmatpush1.msra.mxu0 0.0
      %3598 = vmatprep.subr.mxu0 0.0
      %3599 = vmatpush1.msra.mxu0 0.0
      %3600 = vmatprep.subr.mxu0 0.0
      %3601 = vmatpush1.msra.mxu0 0.0
      %3602 = vmatprep.subr.mxu0 0.0
      %3603 = vmatpush1.msra.mxu0 0.0
      %3604 = vmatprep.subr.mxu0 0.0
      %3605 = vmatpush1.msra.mxu0 0.0
      %3606 = vmatprep.subr.mxu0 0.0
      %3607 = vmatpush1.msra.mxu0 0.0
      %3608 = vmatprep.subr.mxu0 0.0
      %3609 = vmatpush1.msra.mxu0 0.0
      %3610 = vmatprep.subr.mxu0 0.0
      %3611 = vmatpush1.msra.mxu0 0.0
      %3612 = vmatprep.subr.mxu0 0.0
      %3613 = vmatpush1.msra.mxu0 0.0
      %3614 = vmatprep.subr.mxu0 0.0
      %3615 = vmatpush1.msra.mxu0 0.0
      %3616 = vmatprep.mubr.f32.mxu0 0.0
      %3617 = vmatmul.mubr.f32.gmra.mrb[0].mxu0 %v3550
      %v3618 = vpop.f32.mrb[0].mxu0
      %v3619 = vadd.f32 0.0, %v3618
      %v3620 = vpop.f32.mrb[0].mxu0
      %v3621 = vadd.f32 0.0, %v3620
      %3622 = vdwg.mxu0
      %3623 = vmatprep.subr.mxu0 0.0
      %3624 = vmatpush1.msra.mxu0 %v3542
      %3625 = vmatprep.subr.mxu0 0.0
      %3626 = vmatpush1.msra.mxu0 0.0
      %3627 = vmatprep.subr.mxu0 0.0
      %3628 = vmatpush1.msra.mxu0 0.0
      %3629 = vmatprep.subr.mxu0 0.0
      %3630 = vmatpush1.msra.mxu0 0.0
      %3631 = vmatprep.subr.mxu0 0.0
      %3632 = vmatpush1.msra.mxu0 0.0
      %3633 = vmatprep.subr.mxu0 0.0
      %3634 = vmatpush1.msra.mxu0 0.0
      %3635 = vmatprep.subr.mxu0 0.0
      %3636 = vmatpush1.msra.mxu0 0.0
      %3637 = vmatprep.subr.mxu0 0.0
      %3638 = vmatpush1.msra.mxu0 0.0
      %3639 = vmatprep.subr.mxu0 0.0
      %3640 = vmatpush1.msra.mxu0 0.0
      %3641 = vmatprep.subr.mxu0 0.0
      %3642 = vmatpush1.msra.mxu0 0.0
      %3643 = vmatprep.subr.mxu0 0.0
      %3644 = vmatpush1.msra.mxu0 0.0
      %3645 = vmatprep.subr.mxu0 0.0
      %3646 = vmatpush1.msra.mxu0 0.0
      %3647 = vmatprep.subr.mxu0 0.0
      %3648 = vmatpush1.msra.mxu0 0.0
      %3649 = vmatprep.subr.mxu0 0.0
      %3650 = vmatpush1.msra.mxu0 0.0
      %3651 = vmatprep.subr.mxu0 0.0
      %3652 = vmatpush1.msra.mxu0 0.0
      %3653 = vmatprep.subr.mxu0 0.0
      %3654 = vmatpush1.msra.mxu0 0.0
      %3655 = vmatprep.subr.mxu0 0.0
      %3656 = vmatpush1.msra.mxu0 0.0
      %3657 = vmatprep.subr.mxu0 0.0
      %3658 = vmatpush1.msra.mxu0 0.0
      %3659 = vmatprep.subr.mxu0 0.0
      %3660 = vmatpush1.msra.mxu0 0.0
      %3661 = vmatprep.subr.mxu0 0.0
      %3662 = vmatpush1.msra.mxu0 0.0
      %3663 = vmatprep.subr.mxu0 0.0
      %3664 = vmatpush1.msra.mxu0 0.0
      %3665 = vmatprep.subr.mxu0 0.0
      %3666 = vmatpush1.msra.mxu0 0.0
      %3667 = vmatprep.subr.mxu0 0.0
      %3668 = vmatpush1.msra.mxu0 0.0
      %3669 = vmatprep.subr.mxu0 0.0
      %3670 = vmatpush1.msra.mxu0 0.0
      %3671 = vmatprep.subr.mxu0 0.0
      %3672 = vmatpush1.msra.mxu0 0.0
      %3673 = vmatprep.subr.mxu0 0.0
      %3674 = vmatpush1.msra.mxu0 0.0
      %3675 = vmatprep.subr.mxu0 0.0
      %3676 = vmatpush1.msra.mxu0 0.0
      %3677 = vmatprep.subr.mxu0 0.0
      %3678 = vmatpush1.msra.mxu0 0.0
      %3679 = vmatprep.subr.mxu0 0.0
      %3680 = vmatpush1.msra.mxu0 0.0
      %3681 = vmatprep.subr.mxu0 0.0
      %3682 = vmatpush1.msra.mxu0 0.0
      %3683 = vmatprep.subr.mxu0 0.0
      %3684 = vmatpush1.msra.mxu0 0.0
      %3685 = vmatprep.subr.mxu0 0.0
      %3686 = vmatpush1.msra.mxu0 0.0
      %3687 = vmatprep.mubr.f32.mxu0 0.0
      %3688 = vmatmul.mubr.f32.gmra.mrb[0].mxu0 %v3550
      %v3689 = vpop.f32.mrb[0].mxu0
      %v3690 = vadd.f32 0.0, %v3689
      %v3691 = vpop.f32.mrb[0].mxu0
      %3692 = vdwg.mxu0
      %v3693 = vadd.f32 %v3532, %v3619
      %v3694 = vadd.f32 %v3533, %v3621
      %v3695 = vadd.f32 %v3534, %v3690
      %s3696 = scalar_lea.vmem %s3, 72
      %v3697 = vld [vmem:[%s3696] sm:$0xf]
      %3698 = vrot.lane.b32.xlu0 %v738, 65
      %v3699 = vpop.permute.xlu0 %3698
      %3700 = vrot.lane.b32.xlu0 %v740, 65
      %v3701 = vpop.permute.xlu0 %3700
      %3702 = vrot.lane.b32.xlu0 %v809, 65
      %v3703 = vpop.permute.xlu0 %3702
      %vm3704 = vcmask 531456
      %v3705 = vsel %vm3704, %v3699, %v3701
      %v3706 = vsel %vm3704, %v3701, %v3703
      %v3711 = vsel %vm831, %v3697, 0
      %3713 = vmatprep.subr.mxu0 %v3706
      %3714 = vmatpush1.msra.mxu0 %v3705
      %3715 = vmatprep.subr.mxu0 0.0
      %3716 = vmatpush1.msra.mxu0 0.0
      %3717 = vmatprep.subr.mxu0 0.0
      %3718 = vmatpush1.msra.mxu0 0.0
      %3719 = vmatprep.subr.mxu0 0.0
      %3720 = vmatpush1.msra.mxu0 0.0
      %3721 = vmatprep.subr.mxu0 0.0
      %3722 = vmatpush1.msra.mxu0 0.0
      %3723 = vmatprep.subr.mxu0 0.0
      %3724 = vmatpush1.msra.mxu0 0.0
      %3725 = vmatprep.subr.mxu0 0.0
      %3726 = vmatpush1.msra.mxu0 0.0
      %3727 = vmatprep.subr.mxu0 0.0
      %3728 = vmatpush1.msra.mxu0 0.0
      %3729 = vmatprep.subr.mxu0 0.0
      %3730 = vmatpush1.msra.mxu0 0.0
      %3731 = vmatprep.subr.mxu0 0.0
      %3732 = vmatpush1.msra.mxu0 0.0
      %3733 = vmatprep.subr.mxu0 0.0
      %3734 = vmatpush1.msra.mxu0 0.0
      %3735 = vmatprep.subr.mxu0 0.0
      %3736 = vmatpush1.msra.mxu0 0.0
      %3737 = vmatprep.subr.mxu0 0.0
      %3738 = vmatpush1.msra.mxu0 0.0
      %3739 = vmatprep.subr.mxu0 0.0
      %3740 = vmatpush1.msra.mxu0 0.0
      %3741 = vmatprep.subr.mxu0 0.0
      %3742 = vmatpush1.msra.mxu0 0.0
      %3743 = vmatprep.subr.mxu0 0.0
      %3744 = vmatpush1.msra.mxu0 0.0
      %3745 = vmatprep.subr.mxu0 0.0
      %3746 = vmatpush1.msra.mxu0 0.0
      %3747 = vmatprep.subr.mxu0 0.0
      %3748 = vmatpush1.msra.mxu0 0.0
      %3749 = vmatprep.subr.mxu0 0.0
      %3750 = vmatpush1.msra.mxu0 0.0
      %3751 = vmatprep.subr.mxu0 0.0
      %3752 = vmatpush1.msra.mxu0 0.0
      %3753 = vmatprep.subr.mxu0 0.0
      %3754 = vmatpush1.msra.mxu0 0.0
      %3755 = vmatprep.subr.mxu0 0.0
      %3756 = vmatpush1.msra.mxu0 0.0
      %3757 = vmatprep.subr.mxu0 0.0
      %3758 = vmatpush1.msra.mxu0 0.0
      %3759 = vmatprep.subr.mxu0 0.0
      %3760 = vmatpush1.msra.mxu0 0.0
      %3761 = vmatprep.subr.mxu0 0.0
      %3762 = vmatpush1.msra.mxu0 0.0
      %3763 = vmatprep.subr.mxu0 0.0
      %3764 = vmatpush1.msra.mxu0 0.0
      %3765 = vmatprep.subr.mxu0 0.0
      %3766 = vmatpush1.msra.mxu0 0.0
      %3767 = vmatprep.subr.mxu0 0.0
      %3768 = vmatpush1.msra.mxu0 0.0
      %3769 = vmatprep.subr.mxu0 0.0
      %3770 = vmatpush1.msra.mxu0 0.0
      %3771 = vmatprep.subr.mxu0 0.0
      %3772 = vmatpush1.msra.mxu0 0.0
      %3773 = vmatprep.subr.mxu0 0.0
      %3774 = vmatpush1.msra.mxu0 0.0
      %3775 = vmatprep.subr.mxu0 0.0
      %3776 = vmatpush1.msra.mxu0 0.0
      %3777 = vmatprep.mubr.f32.mxu0 0.0
      %3778 = vmatmul.mubr.f32.gmra.mrb[0].mxu0 %v3711
      %v3779 = vpop.f32.mrb[0].mxu0
      %v3780 = vadd.f32 0.0, %v3779
      %v3781 = vpop.f32.mrb[0].mxu0
      %v3782 = vadd.f32 0.0, %v3781
      %3783 = vdwg.mxu0
      %3784 = vmatprep.subr.mxu0 0.0
      %3785 = vmatpush1.msra.mxu0 %v3703
      %3786 = vmatprep.subr.mxu0 0.0
      %3787 = vmatpush1.msra.mxu0 0.0
      %3788 = vmatprep.subr.mxu0 0.0
      %3789 = vmatpush1.msra.mxu0 0.0
      %3790 = vmatprep.subr.mxu0 0.0
      %3791 = vmatpush1.msra.mxu0 0.0
      %3792 = vmatprep.subr.mxu0 0.0
      %3793 = vmatpush1.msra.mxu0 0.0
      %3794 = vmatprep.subr.mxu0 0.0
      %3795 = vmatpush1.msra.mxu0 0.0
      %3796 = vmatprep.subr.mxu0 0.0
      %3797 = vmatpush1.msra.mxu0 0.0
      %3798 = vmatprep.subr.mxu0 0.0
      %3799 = vmatpush1.msra.mxu0 0.0
      %3800 = vmatprep.subr.mxu0 0.0
      %3801 = vmatpush1.msra.mxu0 0.0
      %3802 = vmatprep.subr.mxu0 0.0
      %3803 = vmatpush1.msra.mxu0 0.0
      %3804 = vmatprep.subr.mxu0 0.0
      %3805 = vmatpush1.msra.mxu0 0.0
      %3806 = vmatprep.subr.mxu0 0.0
      %3807 = vmatpush1.msra.mxu0 0.0
      %3808 = vmatprep.subr.mxu0 0.0
      %3809 = vmatpush1.msra.mxu0 0.0
      %3810 = vmatprep.subr.mxu0 0.0
      %3811 = vmatpush1.msra.mxu0 0.0
      %3812 = vmatprep.subr.mxu0 0.0
      %3813 = vmatpush1.msra.mxu0 0.0
      %3814 = vmatprep.subr.mxu0 0.0
      %3815 = vmatpush1.msra.mxu0 0.0
      %3816 = vmatprep.subr.mxu0 0.0
      %3817 = vmatpush1.msra.mxu0 0.0
      %3818 = vmatprep.subr.mxu0 0.0
      %3819 = vmatpush1.msra.mxu0 0.0
      %3820 = vmatprep.subr.mxu0 0.0
      %3821 = vmatpush1.msra.mxu0 0.0
      %3822 = vmatprep.subr.mxu0 0.0
      %3823 = vmatpush1.msra.mxu0 0.0
      %3824 = vmatprep.subr.mxu0 0.0
      %3825 = vmatpush1.msra.mxu0 0.0
      %3826 = vmatprep.subr.mxu0 0.0
      %3827 = vmatpush1.msra.mxu0 0.0
      %3828 = vmatprep.subr.mxu0 0.0
      %3829 = vmatpush1.msra.mxu0 0.0
      %3830 = vmatprep.subr.mxu0 0.0
      %3831 = vmatpush1.msra.mxu0 0.0
      %3832 = vmatprep.subr.mxu0 0.0
      %3833 = vmatpush1.msra.mxu0 0.0
      %3834 = vmatprep.subr.mxu0 0.0
      %3835 = vmatpush1.msra.mxu0 0.0
      %3836 = vmatprep.subr.mxu0 0.0
      %3837 = vmatpush1.msra.mxu0 0.0
      %3838 = vmatprep.subr.mxu0 0.0
      %3839 = vmatpush1.msra.mxu0 0.0
      %3840 = vmatprep.subr.mxu0 0.0
      %3841 = vmatpush1.msra.mxu0 0.0
      %3842 = vmatprep.subr.mxu0 0.0
      %3843 = vmatpush1.msra.mxu0 0.0
      %3844 = vmatprep.subr.mxu0 0.0
      %3845 = vmatpush1.msra.mxu0 0.0
      %3846 = vmatprep.subr.mxu0 0.0
      %3847 = vmatpush1.msra.mxu0 0.0
      %3848 = vmatprep.mubr.f32.mxu0 0.0
      %3849 = vmatmul.mubr.f32.gmra.mrb[0].mxu0 %v3711
      %v3850 = vpop.f32.mrb[0].mxu0
      %v3851 = vadd.f32 0.0, %v3850
      %v3852 = vpop.f32.mrb[0].mxu0
      %3853 = vdwg.mxu0
      %v3854 = vadd.f32 %v3693, %v3780
      %v3855 = vadd.f32 %v3694, %v3782
      %v3856 = vadd.f32 %v3695, %v3851
      %s3857 = scalar_lea.vmem %s3, 76
      %v3858 = vld [vmem:[%s3857] sm:$0xf]
      %3859 = vrot.lane.b32.xlu0 %v738, 64
      %v3860 = vpop.permute.xlu0 %3859
      %3861 = vrot.lane.b32.xlu0 %v740, 64
      %v3862 = vpop.permute.xlu0 %3861
      %3863 = vrot.lane.b32.xlu0 %v809, 64
      %v3864 = vpop.permute.xlu0 %3863
      %vm3865 = vcmask 523264
      %v3866 = vsel %vm3865, %v3860, %v3862
      %v3867 = vsel %vm3865, %v3862, %v3864
      %v3872 = vsel %vm831, %v3858, 0
      %3874 = vmatprep.subr.mxu0 %v3867
      %3875 = vmatpush1.msra.mxu0 %v3866
      %3876 = vmatprep.subr.mxu0 0.0
      %3877 = vmatpush1.msra.mxu0 0.0
      %3878 = vmatprep.subr.mxu0 0.0
      %3879 = vmatpush1.msra.mxu0 0.0
      %3880 = vmatprep.subr.mxu0 0.0
      %3881 = vmatpush1.msra.mxu0 0.0
      %3882 = vmatprep.subr.mxu0 0.0
      %3883 = vmatpush1.msra.mxu0 0.0
      %3884 = vmatprep.subr.mxu0 0.0
      %3885 = vmatpush1.msra.mxu0 0.0
      %3886 = vmatprep.subr.mxu0 0.0
      %3887 = vmatpush1.msra.mxu0 0.0
      %3888 = vmatprep.subr.mxu0 0.0
      %3889 = vmatpush1.msra.mxu0 0.0
      %3890 = vmatprep.subr.mxu0 0.0
      %3891 = vmatpush1.msra.mxu0 0.0
      %3892 = vmatprep.subr.mxu0 0.0
      %3893 = vmatpush1.msra.mxu0 0.0
      %3894 = vmatprep.subr.mxu0 0.0
      %3895 = vmatpush1.msra.mxu0 0.0
      %3896 = vmatprep.subr.mxu0 0.0
      %3897 = vmatpush1.msra.mxu0 0.0
      %3898 = vmatprep.subr.mxu0 0.0
      %3899 = vmatpush1.msra.mxu0 0.0
      %3900 = vmatprep.subr.mxu0 0.0
      %3901 = vmatpush1.msra.mxu0 0.0
      %3902 = vmatprep.subr.mxu0 0.0
      %3903 = vmatpush1.msra.mxu0 0.0
      %3904 = vmatprep.subr.mxu0 0.0
      %3905 = vmatpush1.msra.mxu0 0.0
      %3906 = vmatprep.subr.mxu0 0.0
      %3907 = vmatpush1.msra.mxu0 0.0
      %3908 = vmatprep.subr.mxu0 0.0
      %3909 = vmatpush1.msra.mxu0 0.0
      %3910 = vmatprep.subr.mxu0 0.0
      %3911 = vmatpush1.msra.mxu0 0.0
      %3912 = vmatprep.subr.mxu0 0.0
      %3913 = vmatpush1.msra.mxu0 0.0
      %3914 = vmatprep.subr.mxu0 0.0
      %3915 = vmatpush1.msra.mxu0 0.0
      %3916 = vmatprep.subr.mxu0 0.0
      %3917 = vmatpush1.msra.mxu0 0.0
      %3918 = vmatprep.subr.mxu0 0.0
      %3919 = vmatpush1.msra.mxu0 0.0
      %3920 = vmatprep.subr.mxu0 0.0
      %3921 = vmatpush1.msra.mxu0 0.0
      %3922 = vmatprep.subr.mxu0 0.0
      %3923 = vmatpush1.msra.mxu0 0.0
      %3924 = vmatprep.subr.mxu0 0.0
      %3925 = vmatpush1.msra.mxu0 0.0
      %3926 = vmatprep.subr.mxu0 0.0
      %3927 = vmatpush1.msra.mxu0 0.0
      %3928 = vmatprep.subr.mxu0 0.0
      %3929 = vmatpush1.msra.mxu0 0.0
      %3930 = vmatprep.subr.mxu0 0.0
      %3931 = vmatpush1.msra.mxu0 0.0
      %3932 = vmatprep.subr.mxu0 0.0
      %3933 = vmatpush1.msra.mxu0 0.0
      %3934 = vmatprep.subr.mxu0 0.0
      %3935 = vmatpush1.msra.mxu0 0.0
      %3936 = vmatprep.subr.mxu0 0.0
      %3937 = vmatpush1.msra.mxu0 0.0
      %3938 = vmatprep.mubr.f32.mxu0 0.0
      %3939 = vmatmul.mubr.f32.gmra.mrb[0].mxu0 %v3872
      %v3940 = vpop.f32.mrb[0].mxu0
      %v3941 = vadd.f32 0.0, %v3940
      %v3942 = vpop.f32.mrb[0].mxu0
      %v3943 = vadd.f32 0.0, %v3942
      %3944 = vdwg.mxu0
      %3945 = vmatprep.subr.mxu0 0.0
      %3946 = vmatpush1.msra.mxu0 %v3864
      %3947 = vmatprep.subr.mxu0 0.0
      %3948 = vmatpush1.msra.mxu0 0.0
      %3949 = vmatprep.subr.mxu0 0.0
      %3950 = vmatpush1.msra.mxu0 0.0
      %3951 = vmatprep.subr.mxu0 0.0
      %3952 = vmatpush1.msra.mxu0 0.0
      %3953 = vmatprep.subr.mxu0 0.0
      %3954 = vmatpush1.msra.mxu0 0.0
      %3955 = vmatprep.subr.mxu0 0.0
      %3956 = vmatpush1.msra.mxu0 0.0
      %3957 = vmatprep.subr.mxu0 0.0
      %3958 = vmatpush1.msra.mxu0 0.0
      %3959 = vmatprep.subr.mxu0 0.0
      %3960 = vmatpush1.msra.mxu0 0.0
      %3961 = vmatprep.subr.mxu0 0.0
      %3962 = vmatpush1.msra.mxu0 0.0
      %3963 = vmatprep.subr.mxu0 0.0
      %3964 = vmatpush1.msra.mxu0 0.0
      %3965 = vmatprep.subr.mxu0 0.0
      %3966 = vmatpush1.msra.mxu0 0.0
      %3967 = vmatprep.subr.mxu0 0.0
      %3968 = vmatpush1.msra.mxu0 0.0
      %3969 = vmatprep.subr.mxu0 0.0
      %3970 = vmatpush1.msra.mxu0 0.0
      %3971 = vmatprep.subr.mxu0 0.0
      %3972 = vmatpush1.msra.mxu0 0.0
      %3973 = vmatprep.subr.mxu0 0.0
      %3974 = vmatpush1.msra.mxu0 0.0
      %3975 = vmatprep.subr.mxu0 0.0
      %3976 = vmatpush1.msra.mxu0 0.0
      %3977 = vmatprep.subr.mxu0 0.0
      %3978 = vmatpush1.msra.mxu0 0.0
      %3979 = vmatprep.subr.mxu0 0.0
      %3980 = vmatpush1.msra.mxu0 0.0
      %3981 = vmatprep.subr.mxu0 0.0
      %3982 = vmatpush1.msra.mxu0 0.0
      %3983 = vmatprep.subr.mxu0 0.0
      %3984 = vmatpush1.msra.mxu0 0.0
      %3985 = vmatprep.subr.mxu0 0.0
      %3986 = vmatpush1.msra.mxu0 0.0
      %3987 = vmatprep.subr.mxu0 0.0
      %3988 = vmatpush1.msra.mxu0 0.0
      %3989 = vmatprep.subr.mxu0 0.0
      %3990 = vmatpush1.msra.mxu0 0.0
      %3991 = vmatprep.subr.mxu0 0.0
      %3992 = vmatpush1.msra.mxu0 0.0
      %3993 = vmatprep.subr.mxu0 0.0
      %3994 = vmatpush1.msra.mxu0 0.0
      %3995 = vmatprep.subr.mxu0 0.0
      %3996 = vmatpush1.msra.mxu0 0.0
      %3997 = vmatprep.subr.mxu0 0.0
      %3998 = vmatpush1.msra.mxu0 0.0
      %3999 = vmatprep.subr.mxu0 0.0
      %4000 = vmatpush1.msra.mxu0 0.0
      %4001 = vmatprep.subr.mxu0 0.0
      %4002 = vmatpush1.msra.mxu0 0.0
      %4003 = vmatprep.subr.mxu0 0.0
      %4004 = vmatpush1.msra.mxu0 0.0
      %4005 = vmatprep.subr.mxu0 0.0
      %4006 = vmatpush1.msra.mxu0 0.0
      %4007 = vmatprep.subr.mxu0 0.0
      %4008 = vmatpush1.msra.mxu0 0.0
      %4009 = vmatprep.mubr.f32.mxu0 0.0
      %4010 = vmatmul.mubr.f32.gmra.mrb[0].mxu0 %v3872
      %v4011 = vpop.f32.mrb[0].mxu0
      %v4012 = vadd.f32 0.0, %v4011
      %v4013 = vpop.f32.mrb[0].mxu0
      %4014 = vdwg.mxu0
      %v4015 = vadd.f32 %v3854, %v3941
      %v4016 = vadd.f32 %v3855, %v3943
      %v4017 = vadd.f32 %v3856, %v4012
      %s4018 = scalar_lea.vmem %s3, 80
      %v4019 = vld [vmem:[%s4018] sm:$0xf]
      %4021 = vrot.lane.b32.xlu0 %v738, 48
      %v4022 = vpop.permute.xlu0 %4021
      %4023 = vrot.lane.b32.xlu0 %v740, 48
      %v4024 = vpop.permute.xlu0 %4023
      %4025 = vrot.lane.b32.xlu0 %v809, 48
      %v4026 = vpop.permute.xlu0 %4025
      %4027 = vrot.lane.b32.xlu0 %v811, 48
      %v4028 = vpop.permute.xlu0 %4027
      %vm4029 = vcmask 392192
      %v4030 = vsel %vm4029, %v4022, %v4024
      %v4031 = vsel %vm4029, %v4024, %v4026
      %v4032 = vsel %vm4029, %v4026, %v4028
      %v4037 = vsel %vm831, %v4019, 0
      %4039 = vmatprep.subr.mxu0 %v4031
      %4040 = vmatpush1.msra.mxu0 %v4030
      %4041 = vmatprep.subr.mxu0 0.0
      %4042 = vmatpush1.msra.mxu0 0.0
      %4043 = vmatprep.subr.mxu0 0.0
      %4044 = vmatpush1.msra.mxu0 0.0
      %4045 = vmatprep.subr.mxu0 0.0
      %4046 = vmatpush1.msra.mxu0 0.0
      %4047 = vmatprep.subr.mxu0 0.0
      %4048 = vmatpush1.msra.mxu0 0.0
      %4049 = vmatprep.subr.mxu0 0.0
      %4050 = vmatpush1.msra.mxu0 0.0
      %4051 = vmatprep.subr.mxu0 0.0
      %4052 = vmatpush1.msra.mxu0 0.0
      %4053 = vmatprep.subr.mxu0 0.0
      %4054 = vmatpush1.msra.mxu0 0.0
      %4055 = vmatprep.subr.mxu0 0.0
      %4056 = vmatpush1.msra.mxu0 0.0
      %4057 = vmatprep.subr.mxu0 0.0
      %4058 = vmatpush1.msra.mxu0 0.0
      %4059 = vmatprep.subr.mxu0 0.0
      %4060 = vmatpush1.msra.mxu0 0.0
      %4061 = vmatprep.subr.mxu0 0.0
      %4062 = vmatpush1.msra.mxu0 0.0
      %4063 = vmatprep.subr.mxu0 0.0
      %4064 = vmatpush1.msra.mxu0 0.0
      %4065 = vmatprep.subr.mxu0 0.0
      %4066 = vmatpush1.msra.mxu0 0.0
      %4067 = vmatprep.subr.mxu0 0.0
      %4068 = vmatpush1.msra.mxu0 0.0
      %4069 = vmatprep.subr.mxu0 0.0
      %4070 = vmatpush1.msra.mxu0 0.0
      %4071 = vmatprep.subr.mxu0 0.0
      %4072 = vmatpush1.msra.mxu0 0.0
      %4073 = vmatprep.subr.mxu0 0.0
      %4074 = vmatpush1.msra.mxu0 0.0
      %4075 = vmatprep.subr.mxu0 0.0
      %4076 = vmatpush1.msra.mxu0 0.0
      %4077 = vmatprep.subr.mxu0 0.0
      %4078 = vmatpush1.msra.mxu0 0.0
      %4079 = vmatprep.subr.mxu0 0.0
      %4080 = vmatpush1.msra.mxu0 0.0
      %4081 = vmatprep.subr.mxu0 0.0
      %4082 = vmatpush1.msra.mxu0 0.0
      %4083 = vmatprep.subr.mxu0 0.0
      %4084 = vmatpush1.msra.mxu0 0.0
      %4085 = vmatprep.subr.mxu0 0.0
      %4086 = vmatpush1.msra.mxu0 0.0
      %4087 = vmatprep.subr.mxu0 0.0
      %4088 = vmatpush1.msra.mxu0 0.0
      %4089 = vmatprep.subr.mxu0 0.0
      %4090 = vmatpush1.msra.mxu0 0.0
      %4091 = vmatprep.subr.mxu0 0.0
      %4092 = vmatpush1.msra.mxu0 0.0
      %4093 = vmatprep.subr.mxu0 0.0
      %4094 = vmatpush1.msra.mxu0 0.0
      %4095 = vmatprep.subr.mxu0 0.0
      %4096 = vmatpush1.msra.mxu0 0.0
      %4097 = vmatprep.subr.mxu0 0.0
      %4098 = vmatpush1.msra.mxu0 0.0
      %4099 = vmatprep.subr.mxu0 0.0
      %4100 = vmatpush1.msra.mxu0 0.0
      %4101 = vmatprep.subr.mxu0 0.0
      %4102 = vmatpush1.msra.mxu0 0.0
      %4103 = vmatprep.mubr.f32.mxu0 0.0
      %4104 = vmatmul.mubr.f32.gmra.mrb[0].mxu0 %v4037
      %v4105 = vpop.f32.mrb[0].mxu0
      %v4106 = vadd.f32 0.0, %v4105
      %v4107 = vpop.f32.mrb[0].mxu0
      %v4108 = vadd.f32 0.0, %v4107
      %4109 = vdwg.mxu0
      %4110 = vmatprep.subr.mxu0 0.0
      %4111 = vmatpush1.msra.mxu0 %v4032
      %4112 = vmatprep.subr.mxu0 0.0
      %4113 = vmatpush1.msra.mxu0 0.0
      %4114 = vmatprep.subr.mxu0 0.0
      %4115 = vmatpush1.msra.mxu0 0.0
      %4116 = vmatprep.subr.mxu0 0.0
      %4117 = vmatpush1.msra.mxu0 0.0
      %4118 = vmatprep.subr.mxu0 0.0
      %4119 = vmatpush1.msra.mxu0 0.0
      %4120 = vmatprep.subr.mxu0 0.0
      %4121 = vmatpush1.msra.mxu0 0.0
      %4122 = vmatprep.subr.mxu0 0.0
      %4123 = vmatpush1.msra.mxu0 0.0
      %4124 = vmatprep.subr.mxu0 0.0
      %4125 = vmatpush1.msra.mxu0 0.0
      %4126 = vmatprep.subr.mxu0 0.0
      %4127 = vmatpush1.msra.mxu0 0.0
      %4128 = vmatprep.subr.mxu0 0.0
      %4129 = vmatpush1.msra.mxu0 0.0
      %4130 = vmatprep.subr.mxu0 0.0
      %4131 = vmatpush1.msra.mxu0 0.0
      %4132 = vmatprep.subr.mxu0 0.0
      %4133 = vmatpush1.msra.mxu0 0.0
      %4134 = vmatprep.subr.mxu0 0.0
      %4135 = vmatpush1.msra.mxu0 0.0
      %4136 = vmatprep.subr.mxu0 0.0
      %4137 = vmatpush1.msra.mxu0 0.0
      %4138 = vmatprep.subr.mxu0 0.0
      %4139 = vmatpush1.msra.mxu0 0.0
      %4140 = vmatprep.subr.mxu0 0.0
      %4141 = vmatpush1.msra.mxu0 0.0
      %4142 = vmatprep.subr.mxu0 0.0
      %4143 = vmatpush1.msra.mxu0 0.0
      %4144 = vmatprep.subr.mxu0 0.0
      %4145 = vmatpush1.msra.mxu0 0.0
      %4146 = vmatprep.subr.mxu0 0.0
      %4147 = vmatpush1.msra.mxu0 0.0
      %4148 = vmatprep.subr.mxu0 0.0
      %4149 = vmatpush1.msra.mxu0 0.0
      %4150 = vmatprep.subr.mxu0 0.0
      %4151 = vmatpush1.msra.mxu0 0.0
      %4152 = vmatprep.subr.mxu0 0.0
      %4153 = vmatpush1.msra.mxu0 0.0
      %4154 = vmatprep.subr.mxu0 0.0
      %4155 = vmatpush1.msra.mxu0 0.0
      %4156 = vmatprep.subr.mxu0 0.0
      %4157 = vmatpush1.msra.mxu0 0.0
      %4158 = vmatprep.subr.mxu0 0.0
      %4159 = vmatpush1.msra.mxu0 0.0
      %4160 = vmatprep.subr.mxu0 0.0
      %4161 = vmatpush1.msra.mxu0 0.0
      %4162 = vmatprep.subr.mxu0 0.0
      %4163 = vmatpush1.msra.mxu0 0.0
      %4164 = vmatprep.subr.mxu0 0.0
      %4165 = vmatpush1.msra.mxu0 0.0
      %4166 = vmatprep.subr.mxu0 0.0
      %4167 = vmatpush1.msra.mxu0 0.0
      %4168 = vmatprep.subr.mxu0 0.0
      %4169 = vmatpush1.msra.mxu0 0.0
      %4170 = vmatprep.subr.mxu0 0.0
      %4171 = vmatpush1.msra.mxu0 0.0
      %4172 = vmatprep.subr.mxu0 0.0
      %4173 = vmatpush1.msra.mxu0 0.0
      %4174 = vmatprep.mubr.f32.mxu0 0.0
      %4175 = vmatmul.mubr.f32.gmra.mrb[0].mxu0 %v4037
      %v4176 = vpop.f32.mrb[0].mxu0
      %v4177 = vadd.f32 0.0, %v4176
      %v4178 = vpop.f32.mrb[0].mxu0
      %4179 = vdwg.mxu0
      %v4180 = vadd.f32 %v4015, %v4106
      %v4181 = vadd.f32 %v4016, %v4108
      %v4182 = vadd.f32 %v4017, %v4177
      %s4183 = scalar_lea.vmem %s3, 84
      %v4184 = vld [vmem:[%s4183] sm:$0xf]
      %4185 = vrot.lane.b32.xlu0 %v738, 47
      %v4186 = vpop.permute.xlu0 %4185
      %4187 = vrot.lane.b32.xlu0 %v740, 47
      %v4188 = vpop.permute.xlu0 %4187
      %4189 = vrot.lane.b32.xlu0 %v809, 47
      %v4190 = vpop.permute.xlu0 %4189
      %4191 = vrot.lane.b32.xlu0 %v811, 47
      %v4192 = vpop.permute.xlu0 %4191
      %vm4193 = vcmask 384000
      %v4194 = vsel %vm4193, %v4186, %v4188
      %v4195 = vsel %vm4193, %v4188, %v4190
      %v4196 = vsel %vm4193, %v4190, %v4192
      %v4201 = vsel %vm831, %v4184, 0
      %4203 = vmatprep.subr.mxu0 %v4195
      %4204 = vmatpush1.msra.mxu0 %v4194
      %4205 = vmatprep.subr.mxu0 0.0
      %4206 = vmatpush1.msra.mxu0 0.0
      %4207 = vmatprep.subr.mxu0 0.0
      %4208 = vmatpush1.msra.mxu0 0.0
      %4209 = vmatprep.subr.mxu0 0.0
      %4210 = vmatpush1.msra.mxu0 0.0
      %4211 = vmatprep.subr.mxu0 0.0
      %4212 = vmatpush1.msra.mxu0 0.0
      %4213 = vmatprep.subr.mxu0 0.0
      %4214 = vmatpush1.msra.mxu0 0.0
      %4215 = vmatprep.subr.mxu0 0.0
      %4216 = vmatpush1.msra.mxu0 0.0
      %4217 = vmatprep.subr.mxu0 0.0
      %4218 = vmatpush1.msra.mxu0 0.0
      %4219 = vmatprep.subr.mxu0 0.0
      %4220 = vmatpush1.msra.mxu0 0.0
      %4221 = vmatprep.subr.mxu0 0.0
      %4222 = vmatpush1.msra.mxu0 0.0
      %4223 = vmatprep.subr.mxu0 0.0
      %4224 = vmatpush1.msra.mxu0 0.0
      %4225 = vmatprep.subr.mxu0 0.0
      %4226 = vmatpush1.msra.mxu0 0.0
      %4227 = vmatprep.subr.mxu0 0.0
      %4228 = vmatpush1.msra.mxu0 0.0
      %4229 = vmatprep.subr.mxu0 0.0
      %4230 = vmatpush1.msra.mxu0 0.0
      %4231 = vmatprep.subr.mxu0 0.0
      %4232 = vmatpush1.msra.mxu0 0.0
      %4233 = vmatprep.subr.mxu0 0.0
      %4234 = vmatpush1.msra.mxu0 0.0
      %4235 = vmatprep.subr.mxu0 0.0
      %4236 = vmatpush1.msra.mxu0 0.0
      %4237 = vmatprep.subr.mxu0 0.0
      %4238 = vmatpush1.msra.mxu0 0.0
      %4239 = vmatprep.subr.mxu0 0.0
      %4240 = vmatpush1.msra.mxu0 0.0
      %4241 = vmatprep.subr.mxu0 0.0
      %4242 = vmatpush1.msra.mxu0 0.0
      %4243 = vmatprep.subr.mxu0 0.0
      %4244 = vmatpush1.msra.mxu0 0.0
      %4245 = vmatprep.subr.mxu0 0.0
      %4246 = vmatpush1.msra.mxu0 0.0
      %4247 = vmatprep.subr.mxu0 0.0
      %4248 = vmatpush1.msra.mxu0 0.0
      %4249 = vmatprep.subr.mxu0 0.0
      %4250 = vmatpush1.msra.mxu0 0.0
      %4251 = vmatprep.subr.mxu0 0.0
      %4252 = vmatpush1.msra.mxu0 0.0
      %4253 = vmatprep.subr.mxu0 0.0
      %4254 = vmatpush1.msra.mxu0 0.0
      %4255 = vmatprep.subr.mxu0 0.0
      %4256 = vmatpush1.msra.mxu0 0.0
      %4257 = vmatprep.subr.mxu0 0.0
      %4258 = vmatpush1.msra.mxu0 0.0
      %4259 = vmatprep.subr.mxu0 0.0
      %4260 = vmatpush1.msra.mxu0 0.0
      %4261 = vmatprep.subr.mxu0 0.0
      %4262 = vmatpush1.msra.mxu0 0.0
      %4263 = vmatprep.subr.mxu0 0.0
      %4264 = vmatpush1.msra.mxu0 0.0
      %4265 = vmatprep.subr.mxu0 0.0
      %4266 = vmatpush1.msra.mxu0 0.0
      %4267 = vmatprep.mubr.f32.mxu0 0.0
      %4268 = vmatmul.mubr.f32.gmra.mrb[0].mxu0 %v4201
      %v4269 = vpop.f32.mrb[0].mxu0
      %v4270 = vadd.f32 0.0, %v4269
      %v4271 = vpop.f32.mrb[0].mxu0
      %v4272 = vadd.f32 0.0, %v4271
      %4273 = vdwg.mxu0
      %4274 = vmatprep.subr.mxu0 0.0
      %4275 = vmatpush1.msra.mxu0 %v4196
      %4276 = vmatprep.subr.mxu0 0.0
      %4277 = vmatpush1.msra.mxu0 0.0
      %4278 = vmatprep.subr.mxu0 0.0
      %4279 = vmatpush1.msra.mxu0 0.0
      %4280 = vmatprep.subr.mxu0 0.0
      %4281 = vmatpush1.msra.mxu0 0.0
      %4282 = vmatprep.subr.mxu0 0.0
      %4283 = vmatpush1.msra.mxu0 0.0
      %4284 = vmatprep.subr.mxu0 0.0
      %4285 = vmatpush1.msra.mxu0 0.0
      %4286 = vmatprep.subr.mxu0 0.0
      %4287 = vmatpush1.msra.mxu0 0.0
      %4288 = vmatprep.subr.mxu0 0.0
      %4289 = vmatpush1.msra.mxu0 0.0
      %4290 = vmatprep.subr.mxu0 0.0
      %4291 = vmatpush1.msra.mxu0 0.0
      %4292 = vmatprep.subr.mxu0 0.0
      %4293 = vmatpush1.msra.mxu0 0.0
      %4294 = vmatprep.subr.mxu0 0.0
      %4295 = vmatpush1.msra.mxu0 0.0
      %4296 = vmatprep.subr.mxu0 0.0
      %4297 = vmatpush1.msra.mxu0 0.0
      %4298 = vmatprep.subr.mxu0 0.0
      %4299 = vmatpush1.msra.mxu0 0.0
      %4300 = vmatprep.subr.mxu0 0.0
      %4301 = vmatpush1.msra.mxu0 0.0
      %4302 = vmatprep.subr.mxu0 0.0
      %4303 = vmatpush1.msra.mxu0 0.0
      %4304 = vmatprep.subr.mxu0 0.0
      %4305 = vmatpush1.msra.mxu0 0.0
      %4306 = vmatprep.subr.mxu0 0.0
      %4307 = vmatpush1.msra.mxu0 0.0
      %4308 = vmatprep.subr.mxu0 0.0
      %4309 = vmatpush1.msra.mxu0 0.0
      %4310 = vmatprep.subr.mxu0 0.0
      %4311 = vmatpush1.msra.mxu0 0.0
      %4312 = vmatprep.subr.mxu0 0.0
      %4313 = vmatpush1.msra.mxu0 0.0
      %4314 = vmatprep.subr.mxu0 0.0
      %4315 = vmatpush1.msra.mxu0 0.0
      %4316 = vmatprep.subr.mxu0 0.0
      %4317 = vmatpush1.msra.mxu0 0.0
      %4318 = vmatprep.subr.mxu0 0.0
      %4319 = vmatpush1.msra.mxu0 0.0
      %4320 = vmatprep.subr.mxu0 0.0
      %4321 = vmatpush1.msra.mxu0 0.0
      %4322 = vmatprep.subr.mxu0 0.0
      %4323 = vmatpush1.msra.mxu0 0.0
      %4324 = vmatprep.subr.mxu0 0.0
      %4325 = vmatpush1.msra.mxu0 0.0
      %4326 = vmatprep.subr.mxu0 0.0
      %4327 = vmatpush1.msra.mxu0 0.0
      %4328 = vmatprep.subr.mxu0 0.0
      %4329 = vmatpush1.msra.mxu0 0.0
      %4330 = vmatprep.subr.mxu0 0.0
      %4331 = vmatpush1.msra.mxu0 0.0
      %4332 = vmatprep.subr.mxu0 0.0
      %4333 = vmatpush1.msra.mxu0 0.0
      %4334 = vmatprep.subr.mxu0 0.0
      %4335 = vmatpush1.msra.mxu0 0.0
      %4336 = vmatprep.subr.mxu0 0.0
      %4337 = vmatpush1.msra.mxu0 0.0
      %4338 = vmatprep.mubr.f32.mxu0 0.0
      %4339 = vmatmul.mubr.f32.gmra.mrb[0].mxu0 %v4201
      %v4340 = vpop.f32.mrb[0].mxu0
      %v4341 = vadd.f32 0.0, %v4340
      %v4342 = vpop.f32.mrb[0].mxu0
      %4343 = vdwg.mxu0
      %v4344 = vadd.f32 %v4180, %v4270
      %v4345 = vadd.f32 %v4181, %v4272
      %v4346 = vadd.f32 %v4182, %v4341
      %s4347 = scalar_lea.vmem %s3, 88
      %v4348 = vld [vmem:[%s4347] sm:$0xf]
      %4349 = vrot.lane.b32.xlu0 %v738, 46
      %v4350 = vpop.permute.xlu0 %4349
      %4351 = vrot.lane.b32.xlu0 %v740, 46
      %v4352 = vpop.permute.xlu0 %4351
      %4353 = vrot.lane.b32.xlu0 %v809, 46
      %v4354 = vpop.permute.xlu0 %4353
      %4355 = vrot.lane.b32.xlu0 %v811, 46
      %v4356 = vpop.permute.xlu0 %4355
      %vm4357 = vcmask 375808
      %v4358 = vsel %vm4357, %v4350, %v4352
      %v4359 = vsel %vm4357, %v4352, %v4354
      %v4360 = vsel %vm4357, %v4354, %v4356
      %v4365 = vsel %vm831, %v4348, 0
      %4367 = vmatprep.subr.mxu0 %v4359
      %4368 = vmatpush1.msra.mxu0 %v4358
      %4369 = vmatprep.subr.mxu0 0.0
      %4370 = vmatpush1.msra.mxu0 0.0
      %4371 = vmatprep.subr.mxu0 0.0
      %4372 = vmatpush1.msra.mxu0 0.0
      %4373 = vmatprep.subr.mxu0 0.0
      %4374 = vmatpush1.msra.mxu0 0.0
      %4375 = vmatprep.subr.mxu0 0.0
      %4376 = vmatpush1.msra.mxu0 0.0
      %4377 = vmatprep.subr.mxu0 0.0
      %4378 = vmatpush1.msra.mxu0 0.0
      %4379 = vmatprep.subr.mxu0 0.0
      %4380 = vmatpush1.msra.mxu0 0.0
      %4381 = vmatprep.subr.mxu0 0.0
      %4382 = vmatpush1.msra.mxu0 0.0
      %4383 = vmatprep.subr.mxu0 0.0
      %4384 = vmatpush1.msra.mxu0 0.0
      %4385 = vmatprep.subr.mxu0 0.0
      %4386 = vmatpush1.msra.mxu0 0.0
      %4387 = vmatprep.subr.mxu0 0.0
      %4388 = vmatpush1.msra.mxu0 0.0
      %4389 = vmatprep.subr.mxu0 0.0
      %4390 = vmatpush1.msra.mxu0 0.0
      %4391 = vmatprep.subr.mxu0 0.0
      %4392 = vmatpush1.msra.mxu0 0.0
      %4393 = vmatprep.subr.mxu0 0.0
      %4394 = vmatpush1.msra.mxu0 0.0
      %4395 = vmatprep.subr.mxu0 0.0
      %4396 = vmatpush1.msra.mxu0 0.0
      %4397 = vmatprep.subr.mxu0 0.0
      %4398 = vmatpush1.msra.mxu0 0.0
      %4399 = vmatprep.subr.mxu0 0.0
      %4400 = vmatpush1.msra.mxu0 0.0
      %4401 = vmatprep.subr.mxu0 0.0
      %4402 = vmatpush1.msra.mxu0 0.0
      %4403 = vmatprep.subr.mxu0 0.0
      %4404 = vmatpush1.msra.mxu0 0.0
      %4405 = vmatprep.subr.mxu0 0.0
      %4406 = vmatpush1.msra.mxu0 0.0
      %4407 = vmatprep.subr.mxu0 0.0
      %4408 = vmatpush1.msra.mxu0 0.0
      %4409 = vmatprep.subr.mxu0 0.0
      %4410 = vmatpush1.msra.mxu0 0.0
      %4411 = vmatprep.subr.mxu0 0.0
      %4412 = vmatpush1.msra.mxu0 0.0
      %4413 = vmatprep.subr.mxu0 0.0
      %4414 = vmatpush1.msra.mxu0 0.0
      %4415 = vmatprep.subr.mxu0 0.0
      %4416 = vmatpush1.msra.mxu0 0.0
      %4417 = vmatprep.subr.mxu0 0.0
      %4418 = vmatpush1.msra.mxu0 0.0
      %4419 = vmatprep.subr.mxu0 0.0
      %4420 = vmatpush1.msra.mxu0 0.0
      %4421 = vmatprep.subr.mxu0 0.0
      %4422 = vmatpush1.msra.mxu0 0.0
      %4423 = vmatprep.subr.mxu0 0.0
      %4424 = vmatpush1.msra.mxu0 0.0
      %4425 = vmatprep.subr.mxu0 0.0
      %4426 = vmatpush1.msra.mxu0 0.0
      %4427 = vmatprep.subr.mxu0 0.0
      %4428 = vmatpush1.msra.mxu0 0.0
      %4429 = vmatprep.subr.mxu0 0.0
      %4430 = vmatpush1.msra.mxu0 0.0
      %4431 = vmatprep.mubr.f32.mxu0 0.0
      %4432 = vmatmul.mubr.f32.gmra.mrb[0].mxu0 %v4365
      %v4433 = vpop.f32.mrb[0].mxu0
      %v4434 = vadd.f32 0.0, %v4433
      %v4435 = vpop.f32.mrb[0].mxu0
      %v4436 = vadd.f32 0.0, %v4435
      %4437 = vdwg.mxu0
      %4438 = vmatprep.subr.mxu0 0.0
      %4439 = vmatpush1.msra.mxu0 %v4360
      %4440 = vmatprep.subr.mxu0 0.0
      %4441 = vmatpush1.msra.mxu0 0.0
      %4442 = vmatprep.subr.mxu0 0.0
      %4443 = vmatpush1.msra.mxu0 0.0
      %4444 = vmatprep.subr.mxu0 0.0
      %4445 = vmatpush1.msra.mxu0 0.0
      %4446 = vmatprep.subr.mxu0 0.0
      %4447 = vmatpush1.msra.mxu0 0.0
      %4448 = vmatprep.subr.mxu0 0.0
      %4449 = vmatpush1.msra.mxu0 0.0
      %4450 = vmatprep.subr.mxu0 0.0
      %4451 = vmatpush1.msra.mxu0 0.0
      %4452 = vmatprep.subr.mxu0 0.0
      %4453 = vmatpush1.msra.mxu0 0.0
      %4454 = vmatprep.subr.mxu0 0.0
      %4455 = vmatpush1.msra.mxu0 0.0
      %4456 = vmatprep.subr.mxu0 0.0
      %4457 = vmatpush1.msra.mxu0 0.0
      %4458 = vmatprep.subr.mxu0 0.0
      %4459 = vmatpush1.msra.mxu0 0.0
      %4460 = vmatprep.subr.mxu0 0.0
      %4461 = vmatpush1.msra.mxu0 0.0
      %4462 = vmatprep.subr.mxu0 0.0
      %4463 = vmatpush1.msra.mxu0 0.0
      %4464 = vmatprep.subr.mxu0 0.0
      %4465 = vmatpush1.msra.mxu0 0.0
      %4466 = vmatprep.subr.mxu0 0.0
      %4467 = vmatpush1.msra.mxu0 0.0
      %4468 = vmatprep.subr.mxu0 0.0
      %4469 = vmatpush1.msra.mxu0 0.0
      %4470 = vmatprep.subr.mxu0 0.0
      %4471 = vmatpush1.msra.mxu0 0.0
      %4472 = vmatprep.subr.mxu0 0.0
      %4473 = vmatpush1.msra.mxu0 0.0
      %4474 = vmatprep.subr.mxu0 0.0
      %4475 = vmatpush1.msra.mxu0 0.0
      %4476 = vmatprep.subr.mxu0 0.0
      %4477 = vmatpush1.msra.mxu0 0.0
      %4478 = vmatprep.subr.mxu0 0.0
      %4479 = vmatpush1.msra.mxu0 0.0
      %4480 = vmatprep.subr.mxu0 0.0
      %4481 = vmatpush1.msra.mxu0 0.0
      %4482 = vmatprep.subr.mxu0 0.0
      %4483 = vmatpush1.msra.mxu0 0.0
      %4484 = vmatprep.subr.mxu0 0.0
      %4485 = vmatpush1.msra.mxu0 0.0
      %4486 = vmatprep.subr.mxu0 0.0
      %4487 = vmatpush1.msra.mxu0 0.0
      %4488 = vmatprep.subr.mxu0 0.0
      %4489 = vmatpush1.msra.mxu0 0.0
      %4490 = vmatprep.subr.mxu0 0.0
      %4491 = vmatpush1.msra.mxu0 0.0
      %4492 = vmatprep.subr.mxu0 0.0
      %4493 = vmatpush1.msra.mxu0 0.0
      %4494 = vmatprep.subr.mxu0 0.0
      %4495 = vmatpush1.msra.mxu0 0.0
      %4496 = vmatprep.subr.mxu0 0.0
      %4497 = vmatpush1.msra.mxu0 0.0
      %4498 = vmatprep.subr.mxu0 0.0
      %4499 = vmatpush1.msra.mxu0 0.0
      %4500 = vmatprep.subr.mxu0 0.0
      %4501 = vmatpush1.msra.mxu0 0.0
      %4502 = vmatprep.mubr.f32.mxu0 0.0
      %4503 = vmatmul.mubr.f32.gmra.mrb[0].mxu0 %v4365
      %v4504 = vpop.f32.mrb[0].mxu0
      %v4505 = vadd.f32 0.0, %v4504
      %v4506 = vpop.f32.mrb[0].mxu0
      %4507 = vdwg.mxu0
      %v4508 = vadd.f32 %v4344, %v4434
      %v4509 = vadd.f32 %v4345, %v4436
      %v4510 = vadd.f32 %v4346, %v4505
      %s4511 = scalar_lea.vmem %s3, 92
      %v4512 = vld [vmem:[%s4511] sm:$0xf]
      %4513 = vrot.lane.b32.xlu0 %v738, 45
      %v4514 = vpop.permute.xlu0 %4513
      %4515 = vrot.lane.b32.xlu0 %v740, 45
      %v4516 = vpop.permute.xlu0 %4515
      %4517 = vrot.lane.b32.xlu0 %v809, 45
      %v4518 = vpop.permute.xlu0 %4517
      %4519 = vrot.lane.b32.xlu0 %v811, 45
      %v4520 = vpop.permute.xlu0 %4519
      %vm4521 = vcmask 367616
      %v4522 = vsel %vm4521, %v4514, %v4516
      %v4523 = vsel %vm4521, %v4516, %v4518
      %v4524 = vsel %vm4521, %v4518, %v4520
      %v4529 = vsel %vm831, %v4512, 0
      %4531 = vmatprep.subr.mxu0 %v4523
      %4532 = vmatpush1.msra.mxu0 %v4522
      %4533 = vmatprep.subr.mxu0 0.0
      %4534 = vmatpush1.msra.mxu0 0.0
      %4535 = vmatprep.subr.mxu0 0.0
      %4536 = vmatpush1.msra.mxu0 0.0
      %4537 = vmatprep.subr.mxu0 0.0
      %4538 = vmatpush1.msra.mxu0 0.0
      %4539 = vmatprep.subr.mxu0 0.0
      %4540 = vmatpush1.msra.mxu0 0.0
      %4541 = vmatprep.subr.mxu0 0.0
      %4542 = vmatpush1.msra.mxu0 0.0
      %4543 = vmatprep.subr.mxu0 0.0
      %4544 = vmatpush1.msra.mxu0 0.0
      %4545 = vmatprep.subr.mxu0 0.0
      %4546 = vmatpush1.msra.mxu0 0.0
      %4547 = vmatprep.subr.mxu0 0.0
      %4548 = vmatpush1.msra.mxu0 0.0
      %4549 = vmatprep.subr.mxu0 0.0
      %4550 = vmatpush1.msra.mxu0 0.0
      %4551 = vmatprep.subr.mxu0 0.0
      %4552 = vmatpush1.msra.mxu0 0.0
      %4553 = vmatprep.subr.mxu0 0.0
      %4554 = vmatpush1.msra.mxu0 0.0
      %4555 = vmatprep.subr.mxu0 0.0
      %4556 = vmatpush1.msra.mxu0 0.0
      %4557 = vmatprep.subr.mxu0 0.0
      %4558 = vmatpush1.msra.mxu0 0.0
      %4559 = vmatprep.subr.mxu0 0.0
      %4560 = vmatpush1.msra.mxu0 0.0
      %4561 = vmatprep.subr.mxu0 0.0
      %4562 = vmatpush1.msra.mxu0 0.0
      %4563 = vmatprep.subr.mxu0 0.0
      %4564 = vmatpush1.msra.mxu0 0.0
      %4565 = vmatprep.subr.mxu0 0.0
      %4566 = vmatpush1.msra.mxu0 0.0
      %4567 = vmatprep.subr.mxu0 0.0
      %4568 = vmatpush1.msra.mxu0 0.0
      %4569 = vmatprep.subr.mxu0 0.0
      %4570 = vmatpush1.msra.mxu0 0.0
      %4571 = vmatprep.subr.mxu0 0.0
      %4572 = vmatpush1.msra.mxu0 0.0
      %4573 = vmatprep.subr.mxu0 0.0
      %4574 = vmatpush1.msra.mxu0 0.0
      %4575 = vmatprep.subr.mxu0 0.0
      %4576 = vmatpush1.msra.mxu0 0.0
      %4577 = vmatprep.subr.mxu0 0.0
      %4578 = vmatpush1.msra.mxu0 0.0
      %4579 = vmatprep.subr.mxu0 0.0
      %4580 = vmatpush1.msra.mxu0 0.0
      %4581 = vmatprep.subr.mxu0 0.0
      %4582 = vmatpush1.msra.mxu0 0.0
      %4583 = vmatprep.subr.mxu0 0.0
      %4584 = vmatpush1.msra.mxu0 0.0
      %4585 = vmatprep.subr.mxu0 0.0
      %4586 = vmatpush1.msra.mxu0 0.0
      %4587 = vmatprep.subr.mxu0 0.0
      %4588 = vmatpush1.msra.mxu0 0.0
      %4589 = vmatprep.subr.mxu0 0.0
      %4590 = vmatpush1.msra.mxu0 0.0
      %4591 = vmatprep.subr.mxu0 0.0
      %4592 = vmatpush1.msra.mxu0 0.0
      %4593 = vmatprep.subr.mxu0 0.0
      %4594 = vmatpush1.msra.mxu0 0.0
      %4595 = vmatprep.mubr.f32.mxu0 0.0
      %4596 = vmatmul.mubr.f32.gmra.mrb[0].mxu0 %v4529
      %v4597 = vpop.f32.mrb[0].mxu0
      %v4598 = vadd.f32 0.0, %v4597
      %v4599 = vpop.f32.mrb[0].mxu0
      %v4600 = vadd.f32 0.0, %v4599
      %4601 = vdwg.mxu0
      %4602 = vmatprep.subr.mxu0 0.0
      %4603 = vmatpush1.msra.mxu0 %v4524
      %4604 = vmatprep.subr.mxu0 0.0
      %4605 = vmatpush1.msra.mxu0 0.0
      %4606 = vmatprep.subr.mxu0 0.0
      %4607 = vmatpush1.msra.mxu0 0.0
      %4608 = vmatprep.subr.mxu0 0.0
      %4609 = vmatpush1.msra.mxu0 0.0
      %4610 = vmatprep.subr.mxu0 0.0
      %4611 = vmatpush1.msra.mxu0 0.0
      %4612 = vmatprep.subr.mxu0 0.0
      %4613 = vmatpush1.msra.mxu0 0.0
      %4614 = vmatprep.subr.mxu0 0.0
      %4615 = vmatpush1.msra.mxu0 0.0
      %4616 = vmatprep.subr.mxu0 0.0
      %4617 = vmatpush1.msra.mxu0 0.0
      %4618 = vmatprep.subr.mxu0 0.0
      %4619 = vmatpush1.msra.mxu0 0.0
      %4620 = vmatprep.subr.mxu0 0.0
      %4621 = vmatpush1.msra.mxu0 0.0
      %4622 = vmatprep.subr.mxu0 0.0
      %4623 = vmatpush1.msra.mxu0 0.0
      %4624 = vmatprep.subr.mxu0 0.0
      %4625 = vmatpush1.msra.mxu0 0.0
      %4626 = vmatprep.subr.mxu0 0.0
      %4627 = vmatpush1.msra.mxu0 0.0
      %4628 = vmatprep.subr.mxu0 0.0
      %4629 = vmatpush1.msra.mxu0 0.0
      %4630 = vmatprep.subr.mxu0 0.0
      %4631 = vmatpush1.msra.mxu0 0.0
      %4632 = vmatprep.subr.mxu0 0.0
      %4633 = vmatpush1.msra.mxu0 0.0
      %4634 = vmatprep.subr.mxu0 0.0
      %4635 = vmatpush1.msra.mxu0 0.0
      %4636 = vmatprep.subr.mxu0 0.0
      %4637 = vmatpush1.msra.mxu0 0.0
      %4638 = vmatprep.subr.mxu0 0.0
      %4639 = vmatpush1.msra.mxu0 0.0
      %4640 = vmatprep.subr.mxu0 0.0
      %4641 = vmatpush1.msra.mxu0 0.0
      %4642 = vmatprep.subr.mxu0 0.0
      %4643 = vmatpush1.msra.mxu0 0.0
      %4644 = vmatprep.subr.mxu0 0.0
      %4645 = vmatpush1.msra.mxu0 0.0
      %4646 = vmatprep.subr.mxu0 0.0
      %4647 = vmatpush1.msra.mxu0 0.0
      %4648 = vmatprep.subr.mxu0 0.0
      %4649 = vmatpush1.msra.mxu0 0.0
      %4650 = vmatprep.subr.mxu0 0.0
      %4651 = vmatpush1.msra.mxu0 0.0
      %4652 = vmatprep.subr.mxu0 0.0
      %4653 = vmatpush1.msra.mxu0 0.0
      %4654 = vmatprep.subr.mxu0 0.0
      %4655 = vmatpush1.msra.mxu0 0.0
      %4656 = vmatprep.subr.mxu0 0.0
      %4657 = vmatpush1.msra.mxu0 0.0
      %4658 = vmatprep.subr.mxu0 0.0
      %4659 = vmatpush1.msra.mxu0 0.0
      %4660 = vmatprep.subr.mxu0 0.0
      %4661 = vmatpush1.msra.mxu0 0.0
      %4662 = vmatprep.subr.mxu0 0.0
      %4663 = vmatpush1.msra.mxu0 0.0
      %4664 = vmatprep.subr.mxu0 0.0
      %4665 = vmatpush1.msra.mxu0 0.0
      %4666 = vmatprep.mubr.f32.mxu0 0.0
      %4667 = vmatmul.mubr.f32.gmra.mrb[0].mxu0 %v4529
      %v4668 = vpop.f32.mrb[0].mxu0
      %v4669 = vadd.f32 0.0, %v4668
      %v4670 = vpop.f32.mrb[0].mxu0
      %4671 = vdwg.mxu0
      %v4672 = vadd.f32 %v4508, %v4598
      %v4673 = vadd.f32 %v4509, %v4600
      %v4674 = vadd.f32 %v4510, %v4669
      %s4675 = scalar_lea.vmem %s3, 96
      %v4676 = vld [vmem:[%s4675] sm:$0xf]
      %4677 = vrot.lane.b32.xlu0 %v738, 44
      %v4678 = vpop.permute.xlu0 %4677
      %4679 = vrot.lane.b32.xlu0 %v740, 44
      %v4680 = vpop.permute.xlu0 %4679
      %4681 = vrot.lane.b32.xlu0 %v809, 44
      %v4682 = vpop.permute.xlu0 %4681
      %4683 = vrot.lane.b32.xlu0 %v811, 44
      %v4684 = vpop.permute.xlu0 %4683
      %vm4685 = vcmask 359424
      %v4686 = vsel %vm4685, %v4678, %v4680
      %v4687 = vsel %vm4685, %v4680, %v4682
      %v4688 = vsel %vm4685, %v4682, %v4684
      %v4693 = vsel %vm831, %v4676, 0
      %4695 = vmatprep.subr.mxu0 %v4687
      %4696 = vmatpush1.msra.mxu0 %v4686
      %4697 = vmatprep.subr.mxu0 0.0
      %4698 = vmatpush1.msra.mxu0 0.0
      %4699 = vmatprep.subr.mxu0 0.0
      %4700 = vmatpush1.msra.mxu0 0.0
      %4701 = vmatprep.subr.mxu0 0.0
      %4702 = vmatpush1.msra.mxu0 0.0
      %4703 = vmatprep.subr.mxu0 0.0
      %4704 = vmatpush1.msra.mxu0 0.0
      %4705 = vmatprep.subr.mxu0 0.0
      %4706 = vmatpush1.msra.mxu0 0.0
      %4707 = vmatprep.subr.mxu0 0.0
      %4708 = vmatpush1.msra.mxu0 0.0
      %4709 = vmatprep.subr.mxu0 0.0
      %4710 = vmatpush1.msra.mxu0 0.0
      %4711 = vmatprep.subr.mxu0 0.0
      %4712 = vmatpush1.msra.mxu0 0.0
      %4713 = vmatprep.subr.mxu0 0.0
      %4714 = vmatpush1.msra.mxu0 0.0
      %4715 = vmatprep.subr.mxu0 0.0
      %4716 = vmatpush1.msra.mxu0 0.0
      %4717 = vmatprep.subr.mxu0 0.0
      %4718 = vmatpush1.msra.mxu0 0.0
      %4719 = vmatprep.subr.mxu0 0.0
      %4720 = vmatpush1.msra.mxu0 0.0
      %4721 = vmatprep.subr.mxu0 0.0
      %4722 = vmatpush1.msra.mxu0 0.0
      %4723 = vmatprep.subr.mxu0 0.0
      %4724 = vmatpush1.msra.mxu0 0.0
      %4725 = vmatprep.subr.mxu0 0.0
      %4726 = vmatpush1.msra.mxu0 0.0
      %4727 = vmatprep.subr.mxu0 0.0
      %4728 = vmatpush1.msra.mxu0 0.0
      %4729 = vmatprep.subr.mxu0 0.0
      %4730 = vmatpush1.msra.mxu0 0.0
      %4731 = vmatprep.subr.mxu0 0.0
      %4732 = vmatpush1.msra.mxu0 0.0
      %4733 = vmatprep.subr.mxu0 0.0
      %4734 = vmatpush1.msra.mxu0 0.0
      %4735 = vmatprep.subr.mxu0 0.0
      %4736 = vmatpush1.msra.mxu0 0.0
      %4737 = vmatprep.subr.mxu0 0.0
      %4738 = vmatpush1.msra.mxu0 0.0
      %4739 = vmatprep.subr.mxu0 0.0
      %4740 = vmatpush1.msra.mxu0 0.0
      %4741 = vmatprep.subr.mxu0 0.0
      %4742 = vmatpush1.msra.mxu0 0.0
      %4743 = vmatprep.subr.mxu0 0.0
      %4744 = vmatpush1.msra.mxu0 0.0
      %4745 = vmatprep.subr.mxu0 0.0
      %4746 = vmatpush1.msra.mxu0 0.0
      %4747 = vmatprep.subr.mxu0 0.0
      %4748 = vmatpush1.msra.mxu0 0.0
      %4749 = vmatprep.subr.mxu0 0.0
      %4750 = vmatpush1.msra.mxu0 0.0
      %4751 = vmatprep.subr.mxu0 0.0
      %4752 = vmatpush1.msra.mxu0 0.0
      %4753 = vmatprep.subr.mxu0 0.0
      %4754 = vmatpush1.msra.mxu0 0.0
      %4755 = vmatprep.subr.mxu0 0.0
      %4756 = vmatpush1.msra.mxu0 0.0
      %4757 = vmatprep.subr.mxu0 0.0
      %4758 = vmatpush1.msra.mxu0 0.0
      %4759 = vmatprep.mubr.f32.mxu0 0.0
      %4760 = vmatmul.mubr.f32.gmra.mrb[0].mxu0 %v4693
      %v4761 = vpop.f32.mrb[0].mxu0
      %v4762 = vadd.f32 0.0, %v4761
      %v4763 = vpop.f32.mrb[0].mxu0
      %v4764 = vadd.f32 0.0, %v4763
      %4765 = vdwg.mxu0
      %4766 = vmatprep.subr.mxu0 0.0
      %4767 = vmatpush1.msra.mxu0 %v4688
      %4768 = vmatprep.subr.mxu0 0.0
      %4769 = vmatpush1.msra.mxu0 0.0
      %4770 = vmatprep.subr.mxu0 0.0
      %4771 = vmatpush1.msra.mxu0 0.0
      %4772 = vmatprep.subr.mxu0 0.0
      %4773 = vmatpush1.msra.mxu0 0.0
      %4774 = vmatprep.subr.mxu0 0.0
      %4775 = vmatpush1.msra.mxu0 0.0
      %4776 = vmatprep.subr.mxu0 0.0
      %4777 = vmatpush1.msra.mxu0 0.0
      %4778 = vmatprep.subr.mxu0 0.0
      %4779 = vmatpush1.msra.mxu0 0.0
      %4780 = vmatprep.subr.mxu0 0.0
      %4781 = vmatpush1.msra.mxu0 0.0
      %4782 = vmatprep.subr.mxu0 0.0
      %4783 = vmatpush1.msra.mxu0 0.0
      %4784 = vmatprep.subr.mxu0 0.0
      %4785 = vmatpush1.msra.mxu0 0.0
      %4786 = vmatprep.subr.mxu0 0.0
      %4787 = vmatpush1.msra.mxu0 0.0
      %4788 = vmatprep.subr.mxu0 0.0
      %4789 = vmatpush1.msra.mxu0 0.0
      %4790 = vmatprep.subr.mxu0 0.0
      %4791 = vmatpush1.msra.mxu0 0.0
      %4792 = vmatprep.subr.mxu0 0.0
      %4793 = vmatpush1.msra.mxu0 0.0
      %4794 = vmatprep.subr.mxu0 0.0
      %4795 = vmatpush1.msra.mxu0 0.0
      %4796 = vmatprep.subr.mxu0 0.0
      %4797 = vmatpush1.msra.mxu0 0.0
      %4798 = vmatprep.subr.mxu0 0.0
      %4799 = vmatpush1.msra.mxu0 0.0
      %4800 = vmatprep.subr.mxu0 0.0
      %4801 = vmatpush1.msra.mxu0 0.0
      %4802 = vmatprep.subr.mxu0 0.0
      %4803 = vmatpush1.msra.mxu0 0.0
      %4804 = vmatprep.subr.mxu0 0.0
      %4805 = vmatpush1.msra.mxu0 0.0
      %4806 = vmatprep.subr.mxu0 0.0
      %4807 = vmatpush1.msra.mxu0 0.0
      %4808 = vmatprep.subr.mxu0 0.0
      %4809 = vmatpush1.msra.mxu0 0.0
      %4810 = vmatprep.subr.mxu0 0.0
      %4811 = vmatpush1.msra.mxu0 0.0
      %4812 = vmatprep.subr.mxu0 0.0
      %4813 = vmatpush1.msra.mxu0 0.0
      %4814 = vmatprep.subr.mxu0 0.0
      %4815 = vmatpush1.msra.mxu0 0.0
      %4816 = vmatprep.subr.mxu0 0.0
      %4817 = vmatpush1.msra.mxu0 0.0
      %4818 = vmatprep.subr.mxu0 0.0
      %4819 = vmatpush1.msra.mxu0 0.0
      %4820 = vmatprep.subr.mxu0 0.0
      %4821 = vmatpush1.msra.mxu0 0.0
      %4822 = vmatprep.subr.mxu0 0.0
      %4823 = vmatpush1.msra.mxu0 0.0
      %4824 = vmatprep.subr.mxu0 0.0
      %4825 = vmatpush1.msra.mxu0 0.0
      %4826 = vmatprep.subr.mxu0 0.0
      %4827 = vmatpush1.msra.mxu0 0.0
      %4828 = vmatprep.subr.mxu0 0.0
      %4829 = vmatpush1.msra.mxu0 0.0
      %4830 = vmatprep.mubr.f32.mxu0 0.0
      %4831 = vmatmul.mubr.f32.gmra.mrb[0].mxu0 %v4693
      %v4832 = vpop.f32.mrb[0].mxu0
      %v4833 = vadd.f32 0.0, %v4832
      %v4834 = vpop.f32.mrb[0].mxu0
      %4835 = vdwg.mxu0
      %v4836 = vadd.f32 %v4672, %v4762
      %v4837 = vadd.f32 %v4673, %v4764
      %v4838 = vadd.f32 %v4674, %v4833
      %v4841 = vcombine.low %v4836, %v4837
      %4843 = vst [vmem:[%s291] sm:$0xff] %v4841
      %vm4844 = vcmask 519168
      %4845 = vst.msk [vmem:[%s291 + $0x8] sm:$0xf] %vm4844, %v4838
      %v4846 = vld [vmem:[%s4] sm:$0x7]
      %v4848 = vlaneseq
      %v4849 = vshrl.u32 %v4848, 7
      %v4850 = vsub.s32 0, %v4849
      %v4851 = vrot.slane %v4846, %v4850
      %v4852 = vlaneseq
      %v4853 = vshrl.u32 %v4852, 7
      %v4854 = vsub.s32 1, %v4853
      %v4855 = vrot.slane %v4846, %v4854
      %v4856 = vlaneseq
      %v4857 = vshrl.u32 %v4856, 7
      %v4858 = vsub.s32 2, %v4857
      %v4859 = vrot.slane %v4846, %v4858
      %v4863 = vmul.f32 %v4836, %v4851
      %v4864 = vmul.f32 %v4837, %v4855
      %v4865 = vmul.f32 %v4838, %v4859
      %vm4866 = vcmask 1043456
      %v4867 = vsel %vm4866, %v4863, 0.0
      %v4868 = vsel %vm4866, %v4864, 0.0
      %v4869 = vadd.f32 %v4867, %v4868
      %v4870 = vsel %vm4844, %v4865, 0.0
      %v4871 = vadd.f32 %v4869, %v4870
      %4872 = vadd.xlane.f32.xlu0 %v4871
      %v4873 = vpop.xlane.xlu0 %4872
      %vm4874 = vcmask 3072
      %4875 = vst.msk [vmem:[%s295] sm:$0xf] %vm4874, %v4873
      %v4876 = vmul.f32 %v4863, %v4863
      %v4877 = vmul.f32 %v4864, %v4864
      %v4878 = vmul.f32 %v4865, %v4865
      %v4879 = vsel %vm4866, %v4876, 0.0
      %v4880 = vsel %vm4866, %v4877, 0.0
      %v4881 = vadd.f32 %v4879, %v4880
      %v4882 = vsel %vm4844, %v4878, 0.0
      %v4883 = vadd.f32 %v4881, %v4882
      %4884 = vadd.xlane.f32.xlu0 %v4883
      %v4885 = vpop.xlane.xlu0 %4884
      %4886 = vst.msk [vmem:[%s299] sm:$0xf] %vm4874, %v4885
      %p4887 = scmp.lt.s32.totalorder %s19, 1
      %s4888 = scalar_select %p4887, %s19, 1
      %s4889 = smul.addr %s4888, 3
      %s4890 = smul.addr %s4889, 4
      %s4891 = scalar_lea.vmem %s5, %s4890
      %p4892 = scmp.lt.s32.totalorder %s19, 1
      %s4893 = scalar_select %p4892, %s19, 1
      %s4894 = smul.addr %s4893, 4
      %s4895 = scalar_lea.vmem %s6, %s4894
      %p4896 = scmp.lt.s32.totalorder %s19, 1
      %s4897 = scalar_select %p4896, %s19, 1
      %s4898 = smul.addr %s4897, 4
      %s4899 = scalar_lea.vmem %s7, %s4898
      // Predicated region
      $region41: #{unet_innermost_forward.2} parent=39 // pred_check
        %p4900 = pneg %p147
      $region42: #{unet_innermost_forward.2} parent=39 // pred_check_branch
        %4902 = sbr.rel (%p4900) target = $region44
      $region43: #{unet_innermost_forward.2} parent=39 // pred_region
        _
      $region44: #{unet_innermost_forward.2} parent=39 // pred_fallthru
        _
      // Predicated region
      $region45: #{unet_innermost_forward.2} parent=39 // pred_check
        %p4903 = pneg %p173
      $region46: #{unet_innermost_forward.2} parent=39 // pred_check_branch
        %4905 = sbr.rel (%p4903) target = $region48
      $region47: #{unet_innermost_forward.2} parent=39 // pred_region
        _
      $region48: #{unet_innermost_forward.2} parent=39 // pred_fallthru
        _
      // Predicated region
      $region49: #{unet_innermost_forward.2} parent=39 // pred_check
        %p4906 = pneg %p199
      $region50: #{unet_innermost_forward.2} parent=39 // pred_check_branch
        %4908 = sbr.rel (%p4906) target = $region52
      $region51: #{unet_innermost_forward.2} parent=39 // pred_region
        _
      $region52: #{unet_innermost_forward.2} parent=39 // pred_fallthru
        _
    $region40: #{unet_innermost_forward.2} parent=5 // pred_fallthru
      _
    %p4909 = scmp.le.s32.totalorder 2, %s14
    // Predicated region
    $region53: #{unet_innermost_forward.2} parent=5 // pred_check
      %p4910 = pneg %p4909
    $region54: #{unet_innermost_forward.2} parent=5 // pred_check_branch
      %4912 = sbr.rel (%p4910) target = $region56
    $region55: #{unet_innermost_forward.2} parent=5 // pred_region
      %s4913 = ssub.s32 %s14, 2
      // Predicated region
      $region57: #{unet_innermost_forward.2} parent=55 // pred_check
        %p4914 = pneg %p153
      $region58: #{unet_innermost_forward.2} parent=55 // pred_check_branch
        %4916 = sbr.rel (%p4914) target = $region60
      $region59: #{unet_innermost_forward.2} parent=55 // pred_region
        %p4917 = scmp.lt.s32.totalorder %s20, 1
        %s4918 = scalar_select %p4917, %s20, 1
        %s4919 = smul.addr %s4918, 3
        %s4920 = smul.addr %s4919, 4
        %s4921 = scalar_lea.vmem %s5, %s4920
      $region60: #{unet_innermost_forward.2} parent=55 // pred_fallthru
        _
      // Predicated region
      $region61: #{unet_innermost_forward.2} parent=55 // pred_check
        %p4922 = pneg %p179
      $region62: #{unet_innermost_forward.2} parent=55 // pred_check_branch
        %4924 = sbr.rel (%p4922) target = $region64
      $region63: #{unet_innermost_forward.2} parent=55 // pred_region
        %p4925 = scmp.lt.s32.totalorder %s20, 1
        %s4926 = scalar_select %p4925, %s20, 1
        %s4927 = smul.addr %s4926, 4
        %s4928 = scalar_lea.vmem %s6, %s4927
      $region64: #{unet_innermost_forward.2} parent=55 // pred_fallthru
        _
      // Predicated region
      $region65: #{unet_innermost_forward.2} parent=55 // pred_check
        %p4929 = pneg %p205
      $region66: #{unet_innermost_forward.2} parent=55 // pred_check_branch
        %4931 = sbr.rel (%p4929) target = $region68
      $region67: #{unet_innermost_forward.2} parent=55 // pred_region
        %p4932 = scmp.lt.s32.totalorder %s20, 1
        %s4933 = scalar_select %p4932, %s20, 1
        %s4934 = smul.addr %s4933, 4
        %s4935 = scalar_lea.vmem %s7, %s4934
      $region68: #{unet_innermost_forward.2} parent=55 // pred_fallthru
        _
    $region56: #{unet_innermost_forward.2} parent=5 // pred_fallthru
      _
  $region6: #{unet_innermost_forward.2} parent=0 // loop_footer
    %s18 = sadd.s32 1, %s14
  $region7: #{unet_innermost_forward.2} parent=0 // loop_footer_branch
    %13 = sbr.rel target = $region3
  $region8: #{unet_innermost_forward.2} parent=0 // loop_exit
    _

</llo_original>
